<compile_context>
chip_gen: v6e
topology: v6e:2x2x1
jax: 0.10.0
libtpu: 0.0.40
codegen_flags: <defaults>
</compile_context>

<pallas_src>
import functools
import math

import jax
import jax.numpy as jnp
from jax.experimental import pallas as pl
from jax.experimental.pallas import tpu as pltpu


def _transformer_block_kernel(
    p_ref,                          # (S, C)   tokens of this batch element
    wemb_ref, bemb_ref,             # (C, C) = Wlin^T + I,  (1, C)
    wq_ref, wk_ref, wv_ref,         # (L, C, C) fused (q/k/v ∘ in_proj), pre-T; Q pre-scaled
    bq_ref, bk_ref, bv_ref,         # (L, 1, C) in_proj biases (Q bias pre-scaled)
    wout_ref, bout_ref,             # (L, H, hd, C) out_proj pre-T head-split, (L, 1, C)
    wffn_ref,                       # (L, C, C) = Wfc1^T @ Wfc2^T
    o_ref,                          # (S, C) output
    *, num_heads):
  S, C = o_ref.shape
  hd = C // num_heads
  L = wq_ref.shape[0]

  # Block embedding with folded residual:  x = p @ (Wlin^T + I) + blin
  x = jnp.dot(p_ref[...], wemb_ref[...],
              preferred_element_type=jnp.float32) + bemb_ref[...]

  for l in range(L):                          # static unroll; L is small
    # Fused projections (TransformerLayer q/k/v ∘ MHA in_proj); Q already scaled.
    qp = jnp.dot(x, wq_ref[l], preferred_element_type=jnp.float32) + bq_ref[l]
    kp = jnp.dot(x, wk_ref[l], preferred_element_type=jnp.float32) + bv_ref[l] * 0 + bk_ref[l]
    vp = jnp.dot(x, wv_ref[l], preferred_element_type=jnp.float32) + bv_ref[l]

    # Heads become the leading (batch) dim: (H, S, hd).
    def split(t):
      return jnp.stack([t[:, h * hd:(h + 1) * hd] for h in range(num_heads)], axis=0)
    qh, kh, vh = split(qp), split(kp), split(vp)

    # Head-batched attention (batch-leading einsums).
    s = jnp.einsum('hqd,hkd->hqk', qh, kh,
                   preferred_element_type=jnp.float32)            # (H, S, S)
    s = s - jnp.max(s, axis=-1, keepdims=True)
    e = jnp.exp(s)                                                # unnormalized
    ctx = jnp.einsum('hqk,hkd->hqd', e, vh,
                     preferred_element_type=jnp.float32)          # (H, S, hd)
    # Normalize after the PV matmul: H*S*hd multiplies instead of H*S*S divides.
    ctx = ctx * pl.reciprocal(jnp.sum(e, axis=-1, keepdims=True), approx=False)

    # out_proj: one batched matmul over heads + leading-axis reduce + bias.
    mo = jnp.einsum('hsd,hdc->hsc', ctx, wout_ref[l],
                    preferred_element_type=jnp.float32)           # (H, S, C)
    x = jnp.sum(mo, axis=0) + bout_ref[l] + x                     # attention residual

    # Fused FFN (fc2 ∘ fc1) + residual.
    x = jnp.dot(x, wffn_ref[l], preferred_element_type=jnp.float32) + x

  o_ref[...] = x.astype(o_ref.dtype)


def transformer_block(x, params, num_heads):
  """x: (B, C, W, H) float32.  params: stacked per-layer weights, PyTorch (out,in)
  convention.  Returns (B, C, W, H) float32."""
  B, C, W, H = x.shape
  S = W * H
  L = params['wq'].shape[0]
  hd = C // num_heads
  scale = 1.0 / math.sqrt(hd)
  hp = jax.lax.Precision.HIGHEST

  # NCHW -> (B, S, C) token slab (layout plumbing done in the wrapper / XLA).
  p = jnp.transpose(x.reshape(B, C, S), (0, 2, 1))

  tT = lambda w: jnp.swapaxes(w, -1, -2)                 # (out,in) -> (in,out)

  win, bi = params['win'], params['bin']                 # (L, 3C, C), (L, 3C)
  wiq_t = tT(win[:, 0:C, :])
  wik_t = tT(win[:, C:2 * C, :])
  wiv_t = tT(win[:, 2 * C:, :])

  # Exact algebraic fusions, computed once at HIGHEST precision in the wrapper.
  fwq = jnp.matmul(tT(params['wq']), wiq_t, precision=hp) * scale   # scale folded
  fwk = jnp.matmul(tT(params['wk']), wik_t, precision=hp)
  fwv = jnp.matmul(tT(params['wv']), wiv_t, precision=hp)
  bq = (bi[:, 0:C] * scale).reshape(L, 1, C)
  bk = bi[:, C:2 * C].reshape(L, 1, C)
  bv = bi[:, 2 * C:].reshape(L, 1, C)

  wout = tT(params['wout']).reshape(L, num_heads, hd, C)            # head-split rows
  bout = params['bout'].reshape(L, 1, C)
  wffn = jnp.matmul(tT(params['wfc1']), tT(params['wfc2']), precision=hp)

  wemb = tT(params['wlin']) + jnp.eye(C, dtype=params['wlin'].dtype)  # residual folded
  bemb = params['blin'].reshape(1, C)

  operands = (p, wemb, bemb, fwq, fwk, fwv, bq, bk, bv, wout, bout, wffn)

  full = lambda nd: (lambda b: (0,) * nd)                # constant block (fetched once)
  in_specs = [
      pl.BlockSpec((pl.Squeezed(), S, C), lambda b: (b, 0, 0)),       # p (per batch)
      pl.BlockSpec((C, C), full(2)), pl.BlockSpec((1, C), full(2)),   # embedding
      pl.BlockSpec((L, C, C), full(3)), pl.BlockSpec((L, C, C), full(3)),
      pl.BlockSpec((L, C, C), full(3)),                               # fused q/k/v
      pl.BlockSpec((L, 1, C), full(3)), pl.BlockSpec((L, 1, C), full(3)),
      pl.BlockSpec((L, 1, C), full(3)),                               # in_proj biases
      pl.BlockSpec((L, num_heads, hd, C), full(4)),                   # out_proj weight
      pl.BlockSpec((L, 1, C), full(3)),                               # out_proj bias
      pl.BlockSpec((L, C, C), full(3)),                               # fused FFN weight
  ]

  kernel = functools.partial(_transformer_block_kernel, num_heads=num_heads)
  out = pl.pallas_call(
      kernel,
      out_shape=jax.ShapeDtypeStruct((B, S, C), jnp.float32),
      grid_spec=pltpu.PrefetchScalarGridSpec(
          num_scalar_prefetch=0,
          grid=(B,),                                      # batch axis: independent work
          in_specs=in_specs,
          out_specs=pl.BlockSpec((pl.Squeezed(), S, C), lambda b: (b, 0, 0)),
      ),
      compiler_params=pltpu.CompilerParams(
          dimension_semantics=("parallel",)),             # both TCs on v7x
  )(*operands)

  return jnp.transpose(out, (0, 2, 1)).reshape(B, C, W, H)


# ---------------- pure-JAX reference (mirrors the PyTorch forward) ----------------
def _reference(x, params, num_heads):
  B, C, W, H = x.shape
  S = W * H
  hd = C // num_heads
  hp = jax.lax.Precision.HIGHEST

  def lin(a, w, b=None):
    y = jnp.einsum('bsc,dc->bsd', a, w, precision=hp)
    return y if b is None else y + b

  p = jnp.transpose(x.reshape(B, C, S), (0, 2, 1))             # (B, S, C)
  p = p + lin(p, params['wlin'], params['blin'])
  for i in range(params['wq'].shape[0]):
    q = lin(p, params['wq'][i])
    k = lin(p, params['wk'][i])
    v = lin(p, params['wv'][i])
    win, bi = params['win'][i], params['bin'][i]
    qp = lin(q, win[0:C], bi[0:C]).reshape(B, S, num_heads, hd)
    kp = lin(k, win[C:2 * C], bi[C:2 * C]).reshape(B, S, num_heads, hd)
    vp = lin(v, win[2 * C:], bi[2 * C:]).reshape(B, S, num_heads, hd)
    s = jnp.einsum('bqhd,bkhd->bhqk', qp, kp, precision=hp) / math.sqrt(hd)
    a = jax.nn.softmax(s, axis=-1)
    ctx = jnp.einsum('bhqk,bkhd->bqhd', a, vp, precision=hp).reshape(B, S, C)
    p = lin(ctx, params['wout'][i], params['bout'][i]) + p
    p = lin(lin(p, params['wfc1'][i]), params['wfc2'][i]) + p
  return jnp.transpose(p, (0, 2, 1)).reshape(B, C, W, H)


def init_params(key, c, num_layers):
  names = ['wq', 'wk', 'wv', 'win', 'bin', 'wout', 'bout', 'wfc1', 'wfc2']
  shapes = [(c, c), (c, c), (c, c), (3 * c, c), (3 * c,), (c, c), (c,), (c, c), (c, c)]
  keys = jax.random.split(key, 2 + num_layers * len(names))
  bound = 1.0 / math.sqrt(c)

  def u(k, shape):
    return jax.random.uniform(k, shape, jnp.float32, -bound, bound)

  params = {'wlin': u(keys[0], (c, c)), 'blin': u(keys[1], (c,))}
  stacked = {n: [] for n in names}
  ki = 2
  for _ in range(num_layers):
    for n, s in zip(names, shapes):
      stacked[n].append(u(keys[ki], s))
      ki += 1
  for n in names:
    params[n] = jnp.stack(stacked[n], axis=0)
  return params


if __name__ == "__main__":
  key = jax.random.PRNGKey(0)
  kx, kparam = jax.random.split(key)

  # TransformerBlock(c1=c2=32, num_heads=4, num_layers=2) on a (2, 32, 8, 8) input.
  B, C, W, H = 2, 32, 8, 8
  num_heads, num_layers = 4, 2

  x = jax.random.normal(kx, (B, C, W, H), jnp.float32)
  params = init_params(kparam, C, num_layers)

  out = transformer_block(x, params, num_heads)
  out = jax.block_until_ready(out)

  ref = _reference(x, params, num_heads)
  assert out.shape == ref.shape
  assert jnp.allclose(out, ref, atol=2e-3, rtol=2e-3), float(jnp.max(jnp.abs(out - ref)))
  print("KERNEL_OK")
</pallas_src>

<mosaic_0001>
module attributes {stable_mosaic.version = 11 : i64} {
  func.func @_transformer_block_kernel(%arg0: i32, %arg1: memref<1x64x32xf32, #tpu.memory_space<vmem>>, %arg2: memref<32x32xf32, #tpu.memory_space<vmem>>, %arg3: memref<1x32xf32, #tpu.memory_space<vmem>>, %arg4: memref<2x32x32xf32, #tpu.memory_space<vmem>>, %arg5: memref<2x32x32xf32, #tpu.memory_space<vmem>>, %arg6: memref<2x32x32xf32, #tpu.memory_space<vmem>>, %arg7: memref<2x1x32xf32, #tpu.memory_space<vmem>>, %arg8: memref<2x1x32xf32, #tpu.memory_space<vmem>>, %arg9: memref<2x1x32xf32, #tpu.memory_space<vmem>>, %arg10: memref<2x4x8x32xf32, #tpu.memory_space<vmem>>, %arg11: memref<2x1x32xf32, #tpu.memory_space<vmem>>, %arg12: memref<2x32x32xf32, #tpu.memory_space<vmem>>, %arg13: memref<1x64x32xf32, #tpu.memory_space<vmem>>) attributes {dimension_semantics = [#tpu.dimension_semantics<parallel>], iteration_bounds = array<i64: 2>, scalar_prefetch = 0 : i64, scratch_operands = 0 : i64, tpu.core_type = #tpu.core_type<tc>, window_params = [{transform_indices = @transform_0, window_bounds = array<i64: 1, 64, 32>}, {pipeline_mode = #tpu.pipeline_mode<synchronous>, transform_indices = @transform_1, window_bounds = array<i64: 32, 32>}, {pipeline_mode = #tpu.pipeline_mode<synchronous>, transform_indices = @transform_2, window_bounds = array<i64: 1, 32>}, {pipeline_mode = #tpu.pipeline_mode<synchronous>, transform_indices = @transform_3, window_bounds = array<i64: 2, 32, 32>}, {pipeline_mode = #tpu.pipeline_mode<synchronous>, transform_indices = @transform_4, window_bounds = array<i64: 2, 32, 32>}, {pipeline_mode = #tpu.pipeline_mode<synchronous>, transform_indices = @transform_5, window_bounds = array<i64: 2, 32, 32>}, {pipeline_mode = #tpu.pipeline_mode<synchronous>, transform_indices = @transform_6, window_bounds = array<i64: 2, 1, 32>}, {pipeline_mode = #tpu.pipeline_mode<synchronous>, transform_indices = @transform_7, window_bounds = array<i64: 2, 1, 32>}, {pipeline_mode = #tpu.pipeline_mode<synchronous>, transform_indices = @transform_8, window_bounds = array<i64: 2, 1, 32>}, {pipeline_mode = #tpu.pipeline_mode<synchronous>, transform_indices = @transform_9, window_bounds = array<i64: 2, 4, 8, 32>}, {pipeline_mode = #tpu.pipeline_mode<synchronous>, transform_indices = @transform_10, window_bounds = array<i64: 2, 1, 32>}, {pipeline_mode = #tpu.pipeline_mode<synchronous>, transform_indices = @transform_11, window_bounds = array<i64: 2, 32, 32>}, {transform_indices = @transform_12, window_bounds = array<i64: 1, 64, 32>}]} {
    %c0 = arith.constant 0 : index
    %c0_0 = arith.constant 0 : index
    %c0_1 = arith.constant 0 : index
    %0 = vector.load %arg1[%c0, %c0_0, %c0_1] : memref<1x64x32xf32, #tpu.memory_space<vmem>>, vector<1x64x32xf32>
    %1 = vector.shape_cast %0 : vector<1x64x32xf32> to vector<64x32xf32>
    %c0_2 = arith.constant 0 : index
    %c0_3 = arith.constant 0 : index
    %2 = vector.load %arg2[%c0_2, %c0_3] : memref<32x32xf32, #tpu.memory_space<vmem>>, vector<32x32xf32>
    %cst = arith.constant dense<0.000000e+00> : vector<64x32xf32>
    %3 = tpu.matmul %1, %2, %cst {dimension_numbers = #tpu.dot_dimension_numbers<[1], [0], [0], [1], [0, 0, 1, 1], [], []>} : vector<64x32xf32>, vector<32x32xf32>, vector<64x32xf32> -> vector<64x32xf32>
    %c0_4 = arith.constant 0 : index
    %c0_5 = arith.constant 0 : index
    %4 = vector.load %arg3[%c0_4, %c0_5] : memref<1x32xf32, #tpu.memory_space<vmem>>, vector<1x32xf32>
    %5 = vector.broadcast %4 : vector<1x32xf32> to vector<64x32xf32>
    %6 = arith.addf %3, %5 : vector<64x32xf32>
    %c0_6 = arith.constant 0 : index
    %c0_7 = arith.constant 0 : index
    %c0_8 = arith.constant 0 : index
    %7 = vector.load %arg4[%c0_6, %c0_7, %c0_8] : memref<2x32x32xf32, #tpu.memory_space<vmem>>, vector<1x32x32xf32>
    %8 = vector.shape_cast %7 : vector<1x32x32xf32> to vector<32x32xf32>
    %cst_9 = arith.constant dense<0.000000e+00> : vector<64x32xf32>
    %9 = tpu.matmul %6, %8, %cst_9 {dimension_numbers = #tpu.dot_dimension_numbers<[1], [0], [0], [1], [0, 0, 1, 1], [], []>} : vector<64x32xf32>, vector<32x32xf32>, vector<64x32xf32> -> vector<64x32xf32>
    %c0_10 = arith.constant 0 : index
    %c0_11 = arith.constant 0 : index
    %c0_12 = arith.constant 0 : index
    %10 = vector.load %arg7[%c0_10, %c0_11, %c0_12] : memref<2x1x32xf32, #tpu.memory_space<vmem>>, vector<1x1x32xf32>
    %11 = vector.shape_cast %10 : vector<1x1x32xf32> to vector<1x32xf32>
    %12 = vector.broadcast %11 : vector<1x32xf32> to vector<64x32xf32>
    %13 = arith.addf %9, %12 : vector<64x32xf32>
    %c0_13 = arith.constant 0 : index
    %c0_14 = arith.constant 0 : index
    %c0_15 = arith.constant 0 : index
    %14 = vector.load %arg5[%c0_13, %c0_14, %c0_15] : memref<2x32x32xf32, #tpu.memory_space<vmem>>, vector<1x32x32xf32>
    %15 = vector.shape_cast %14 : vector<1x32x32xf32> to vector<32x32xf32>
    %cst_16 = arith.constant dense<0.000000e+00> : vector<64x32xf32>
    %16 = tpu.matmul %6, %15, %cst_16 {dimension_numbers = #tpu.dot_dimension_numbers<[1], [0], [0], [1], [0, 0, 1, 1], [], []>} : vector<64x32xf32>, vector<32x32xf32>, vector<64x32xf32> -> vector<64x32xf32>
    %c0_17 = arith.constant 0 : index
    %c0_18 = arith.constant 0 : index
    %c0_19 = arith.constant 0 : index
    %17 = vector.load %arg9[%c0_17, %c0_18, %c0_19] : memref<2x1x32xf32, #tpu.memory_space<vmem>>, vector<1x1x32xf32>
    %18 = vector.shape_cast %17 : vector<1x1x32xf32> to vector<1x32xf32>
    %cst_20 = arith.constant 0.000000e+00 : f32
    %19 = vector.broadcast %cst_20 : f32 to vector<1x32xf32>
    %20 = arith.mulf %18, %19 : vector<1x32xf32>
    %21 = vector.broadcast %20 : vector<1x32xf32> to vector<64x32xf32>
    %22 = arith.addf %16, %21 : vector<64x32xf32>
    %c0_21 = arith.constant 0 : index
    %c0_22 = arith.constant 0 : index
    %c0_23 = arith.constant 0 : index
    %23 = vector.load %arg8[%c0_21, %c0_22, %c0_23] : memref<2x1x32xf32, #tpu.memory_space<vmem>>, vector<1x1x32xf32>
    %24 = vector.shape_cast %23 : vector<1x1x32xf32> to vector<1x32xf32>
    %25 = vector.broadcast %24 : vector<1x32xf32> to vector<64x32xf32>
    %26 = arith.addf %22, %25 : vector<64x32xf32>
    %c0_24 = arith.constant 0 : index
    %c0_25 = arith.constant 0 : index
    %c0_26 = arith.constant 0 : index
    %27 = vector.load %arg6[%c0_24, %c0_25, %c0_26] : memref<2x32x32xf32, #tpu.memory_space<vmem>>, vector<1x32x32xf32>
    %28 = vector.shape_cast %27 : vector<1x32x32xf32> to vector<32x32xf32>
    %cst_27 = arith.constant dense<0.000000e+00> : vector<64x32xf32>
    %29 = tpu.matmul %6, %28, %cst_27 {dimension_numbers = #tpu.dot_dimension_numbers<[1], [0], [0], [1], [0, 0, 1, 1], [], []>} : vector<64x32xf32>, vector<32x32xf32>, vector<64x32xf32> -> vector<64x32xf32>
    %c0_28 = arith.constant 0 : index
    %c0_29 = arith.constant 0 : index
    %c0_30 = arith.constant 0 : index
    %30 = vector.load %arg9[%c0_28, %c0_29, %c0_30] : memref<2x1x32xf32, #tpu.memory_space<vmem>>, vector<1x1x32xf32>
    %31 = vector.shape_cast %30 : vector<1x1x32xf32> to vector<1x32xf32>
    %32 = vector.broadcast %31 : vector<1x32xf32> to vector<64x32xf32>
    %33 = arith.addf %29, %32 : vector<64x32xf32>
    %34 = vector.extract_strided_slice %13 {offsets = [0, 0], sizes = [64, 8], strides = [1, 1]} : vector<64x32xf32> to vector<64x8xf32>
    %35 = vector.extract_strided_slice %13 {offsets = [0, 8], sizes = [64, 8], strides = [1, 1]} : vector<64x32xf32> to vector<64x8xf32>
    %36 = vector.extract_strided_slice %13 {offsets = [0, 16], sizes = [64, 8], strides = [1, 1]} : vector<64x32xf32> to vector<64x8xf32>
    %37 = vector.extract_strided_slice %13 {offsets = [0, 24], sizes = [64, 8], strides = [1, 1]} : vector<64x32xf32> to vector<64x8xf32>
    %38 = vector.shape_cast %34 : vector<64x8xf32> to vector<1x64x8xf32>
    %39 = vector.shape_cast %35 : vector<64x8xf32> to vector<1x64x8xf32>
    %40 = vector.shape_cast %36 : vector<64x8xf32> to vector<1x64x8xf32>
    %41 = vector.shape_cast %37 : vector<64x8xf32> to vector<1x64x8xf32>
    %42 = tpu.concatenate %38, %39, %40, %41 in 0 : vector<1x64x8xf32>, vector<1x64x8xf32>, vector<1x64x8xf32>, vector<1x64x8xf32> -> vector<4x64x8xf32>
    %43 = vector.extract_strided_slice %26 {offsets = [0, 0], sizes = [64, 8], strides = [1, 1]} : vector<64x32xf32> to vector<64x8xf32>
    %44 = vector.extract_strided_slice %26 {offsets = [0, 8], sizes = [64, 8], strides = [1, 1]} : vector<64x32xf32> to vector<64x8xf32>
    %45 = vector.extract_strided_slice %26 {offsets = [0, 16], sizes = [64, 8], strides = [1, 1]} : vector<64x32xf32> to vector<64x8xf32>
    %46 = vector.extract_strided_slice %26 {offsets = [0, 24], sizes = [64, 8], strides = [1, 1]} : vector<64x32xf32> to vector<64x8xf32>
    %47 = vector.shape_cast %43 : vector<64x8xf32> to vector<1x64x8xf32>
    %48 = vector.shape_cast %44 : vector<64x8xf32> to vector<1x64x8xf32>
    %49 = vector.shape_cast %45 : vector<64x8xf32> to vector<1x64x8xf32>
    %50 = vector.shape_cast %46 : vector<64x8xf32> to vector<1x64x8xf32>
    %51 = tpu.concatenate %47, %48, %49, %50 in 0 : vector<1x64x8xf32>, vector<1x64x8xf32>, vector<1x64x8xf32>, vector<1x64x8xf32> -> vector<4x64x8xf32>
    %52 = vector.extract_strided_slice %33 {offsets = [0, 0], sizes = [64, 8], strides = [1, 1]} : vector<64x32xf32> to vector<64x8xf32>
    %53 = vector.extract_strided_slice %33 {offsets = [0, 8], sizes = [64, 8], strides = [1, 1]} : vector<64x32xf32> to vector<64x8xf32>
    %54 = vector.extract_strided_slice %33 {offsets = [0, 16], sizes = [64, 8], strides = [1, 1]} : vector<64x32xf32> to vector<64x8xf32>
    %55 = vector.extract_strided_slice %33 {offsets = [0, 24], sizes = [64, 8], strides = [1, 1]} : vector<64x32xf32> to vector<64x8xf32>
    %56 = vector.shape_cast %52 : vector<64x8xf32> to vector<1x64x8xf32>
    %57 = vector.shape_cast %53 : vector<64x8xf32> to vector<1x64x8xf32>
    %58 = vector.shape_cast %54 : vector<64x8xf32> to vector<1x64x8xf32>
    %59 = vector.shape_cast %55 : vector<64x8xf32> to vector<1x64x8xf32>
    %60 = tpu.concatenate %56, %57, %58, %59 in 0 : vector<1x64x8xf32>, vector<1x64x8xf32>, vector<1x64x8xf32>, vector<1x64x8xf32> -> vector<4x64x8xf32>
    "tpu.trace_start"() <{level = 10 : i32, message = "hqd,hkd->hqk"}> : () -> ()
    %cst_31 = arith.constant dense<0.000000e+00> : vector<4x64x64xf32>
    %61 = tpu.matmul %42, %51, %cst_31 {dimension_numbers = #tpu.dot_dimension_numbers<[2], [2], [1], [1], [0, 0, 0, 1, 1, 1], [0], [0]>} : vector<4x64x8xf32>, vector<4x64x8xf32>, vector<4x64x64xf32> -> vector<4x64x64xf32>
    "tpu.trace_stop"() : () -> ()
    %cst_32 = arith.constant dense<0xFF800000> : vector<4x64xf32>
    %62 = vector.multi_reduction <maximumf>, %61, %cst_32 [2] : vector<4x64x64xf32> to vector<4x64xf32>
    %63 = vector.shape_cast %62 : vector<4x64xf32> to vector<4x64x1xf32>
    %64 = vector.broadcast %63 : vector<4x64x1xf32> to vector<4x64x64xf32>
    %65 = arith.subf %61, %64 : vector<4x64x64xf32>
    %66 = math.exp %65 : vector<4x64x64xf32>
    "tpu.trace_start"() <{level = 10 : i32, message = "hqk,hkd->hqd"}> : () -> ()
    %cst_33 = arith.constant dense<0.000000e+00> : vector<4x64x8xf32>
    %67 = tpu.matmul %66, %60, %cst_33 {dimension_numbers = #tpu.dot_dimension_numbers<[2], [1], [1], [2], [0, 0, 0, 1, 1, 2], [0], [0]>} : vector<4x64x64xf32>, vector<4x64x8xf32>, vector<4x64x8xf32> -> vector<4x64x8xf32>
    "tpu.trace_stop"() : () -> ()
    %cst_34 = arith.constant dense<0.000000e+00> : vector<4x64xf32>
    %68 = vector.multi_reduction <add>, %66, %cst_34 [2] : vector<4x64x64xf32> to vector<4x64xf32>
    %69 = vector.shape_cast %68 : vector<4x64xf32> to vector<4x64x1xf32>
    %70 = tpu.reciprocal %69 : vector<4x64x1xf32> -> vector<4x64x1xf32>
    %71 = vector.broadcast %70 : vector<4x64x1xf32> to vector<4x64x8xf32>
    %72 = arith.mulf %67, %71 : vector<4x64x8xf32>
    %c0_35 = arith.constant 0 : index
    %c0_36 = arith.constant 0 : index
    %c0_37 = arith.constant 0 : index
    %c0_38 = arith.constant 0 : index
    %73 = vector.load %arg10[%c0_35, %c0_36, %c0_37, %c0_38] : memref<2x4x8x32xf32, #tpu.memory_space<vmem>>, vector<1x4x8x32xf32>
    %74 = vector.shape_cast %73 : vector<1x4x8x32xf32> to vector<4x8x32xf32>
    "tpu.trace_start"() <{level = 10 : i32, message = "hsd,hdc->hsc"}> : () -> ()
    %cst_39 = arith.constant dense<0.000000e+00> : vector<4x64x32xf32>
    %75 = tpu.matmul %72, %74, %cst_39 {dimension_numbers = #tpu.dot_dimension_numbers<[2], [1], [1], [2], [0, 0, 0, 1, 1, 2], [0], [0]>} : vector<4x64x8xf32>, vector<4x8x32xf32>, vector<4x64x32xf32> -> vector<4x64x32xf32>
    "tpu.trace_stop"() : () -> ()
    %cst_40 = arith.constant dense<0.000000e+00> : vector<64x32xf32>
    %76 = vector.multi_reduction <add>, %75, %cst_40 [0] : vector<4x64x32xf32> to vector<64x32xf32>
    %c0_41 = arith.constant 0 : index
    %c0_42 = arith.constant 0 : index
    %c0_43 = arith.constant 0 : index
    %77 = vector.load %arg11[%c0_41, %c0_42, %c0_43] : memref<2x1x32xf32, #tpu.memory_space<vmem>>, vector<1x1x32xf32>
    %78 = vector.shape_cast %77 : vector<1x1x32xf32> to vector<1x32xf32>
    %79 = vector.broadcast %78 : vector<1x32xf32> to vector<64x32xf32>
    %80 = arith.addf %76, %79 : vector<64x32xf32>
    %81 = arith.addf %80, %6 : vector<64x32xf32>
    %c0_44 = arith.constant 0 : index
    %c0_45 = arith.constant 0 : index
    %c0_46 = arith.constant 0 : index
    %82 = vector.load %arg12[%c0_44, %c0_45, %c0_46] : memref<2x32x32xf32, #tpu.memory_space<vmem>>, vector<1x32x32xf32>
    %83 = vector.shape_cast %82 : vector<1x32x32xf32> to vector<32x32xf32>
    %cst_47 = arith.constant dense<0.000000e+00> : vector<64x32xf32>
    %84 = tpu.matmul %81, %83, %cst_47 {dimension_numbers = #tpu.dot_dimension_numbers<[1], [0], [0], [1], [0, 0, 1, 1], [], []>} : vector<64x32xf32>, vector<32x32xf32>, vector<64x32xf32> -> vector<64x32xf32>
    %85 = arith.addf %84, %81 : vector<64x32xf32>
    %c1 = arith.constant 1 : index
    %c0_48 = arith.constant 0 : index
    %c0_49 = arith.constant 0 : index
    %86 = vector.load %arg4[%c1, %c0_48, %c0_49] : memref<2x32x32xf32, #tpu.memory_space<vmem>>, vector<1x32x32xf32>
    %87 = vector.shape_cast %86 : vector<1x32x32xf32> to vector<32x32xf32>
    %cst_50 = arith.constant dense<0.000000e+00> : vector<64x32xf32>
    %88 = tpu.matmul %85, %87, %cst_50 {dimension_numbers = #tpu.dot_dimension_numbers<[1], [0], [0], [1], [0, 0, 1, 1], [], []>} : vector<64x32xf32>, vector<32x32xf32>, vector<64x32xf32> -> vector<64x32xf32>
    %c1_51 = arith.constant 1 : index
    %c0_52 = arith.constant 0 : index
    %c0_53 = arith.constant 0 : index
    %89 = vector.load %arg7[%c1_51, %c0_52, %c0_53] : memref<2x1x32xf32, #tpu.memory_space<vmem>>, vector<1x1x32xf32>
    %90 = vector.shape_cast %89 : vector<1x1x32xf32> to vector<1x32xf32>
    %91 = vector.broadcast %90 : vector<1x32xf32> to vector<64x32xf32>
    %92 = arith.addf %88, %91 : vector<64x32xf32>
    %c1_54 = arith.constant 1 : index
    %c0_55 = arith.constant 0 : index
    %c0_56 = arith.constant 0 : index
    %93 = vector.load %arg5[%c1_54, %c0_55, %c0_56] : memref<2x32x32xf32, #tpu.memory_space<vmem>>, vector<1x32x32xf32>
    %94 = vector.shape_cast %93 : vector<1x32x32xf32> to vector<32x32xf32>
    %cst_57 = arith.constant dense<0.000000e+00> : vector<64x32xf32>
    %95 = tpu.matmul %85, %94, %cst_57 {dimension_numbers = #tpu.dot_dimension_numbers<[1], [0], [0], [1], [0, 0, 1, 1], [], []>} : vector<64x32xf32>, vector<32x32xf32>, vector<64x32xf32> -> vector<64x32xf32>
    %c1_58 = arith.constant 1 : index
    %c0_59 = arith.constant 0 : index
    %c0_60 = arith.constant 0 : index
    %96 = vector.load %arg9[%c1_58, %c0_59, %c0_60] : memref<2x1x32xf32, #tpu.memory_space<vmem>>, vector<1x1x32xf32>
    %97 = vector.shape_cast %96 : vector<1x1x32xf32> to vector<1x32xf32>
    %cst_61 = arith.constant 0.000000e+00 : f32
    %98 = vector.broadcast %cst_61 : f32 to vector<1x32xf32>
    %99 = arith.mulf %97, %98 : vector<1x32xf32>
    %100 = vector.broadcast %99 : vector<1x32xf32> to vector<64x32xf32>
    %101 = arith.addf %95, %100 : vector<64x32xf32>
    %c1_62 = arith.constant 1 : index
    %c0_63 = arith.constant 0 : index
    %c0_64 = arith.constant 0 : index
    %102 = vector.load %arg8[%c1_62, %c0_63, %c0_64] : memref<2x1x32xf32, #tpu.memory_space<vmem>>, vector<1x1x32xf32>
    %103 = vector.shape_cast %102 : vector<1x1x32xf32> to vector<1x32xf32>
    %104 = vector.broadcast %103 : vector<1x32xf32> to vector<64x32xf32>
    %105 = arith.addf %101, %104 : vector<64x32xf32>
    %c1_65 = arith.constant 1 : index
    %c0_66 = arith.constant 0 : index
    %c0_67 = arith.constant 0 : index
    %106 = vector.load %arg6[%c1_65, %c0_66, %c0_67] : memref<2x32x32xf32, #tpu.memory_space<vmem>>, vector<1x32x32xf32>
    %107 = vector.shape_cast %106 : vector<1x32x32xf32> to vector<32x32xf32>
    %cst_68 = arith.constant dense<0.000000e+00> : vector<64x32xf32>
    %108 = tpu.matmul %85, %107, %cst_68 {dimension_numbers = #tpu.dot_dimension_numbers<[1], [0], [0], [1], [0, 0, 1, 1], [], []>} : vector<64x32xf32>, vector<32x32xf32>, vector<64x32xf32> -> vector<64x32xf32>
    %c1_69 = arith.constant 1 : index
    %c0_70 = arith.constant 0 : index
    %c0_71 = arith.constant 0 : index
    %109 = vector.load %arg9[%c1_69, %c0_70, %c0_71] : memref<2x1x32xf32, #tpu.memory_space<vmem>>, vector<1x1x32xf32>
    %110 = vector.shape_cast %109 : vector<1x1x32xf32> to vector<1x32xf32>
    %111 = vector.broadcast %110 : vector<1x32xf32> to vector<64x32xf32>
    %112 = arith.addf %108, %111 : vector<64x32xf32>
    %113 = vector.extract_strided_slice %92 {offsets = [0, 0], sizes = [64, 8], strides = [1, 1]} : vector<64x32xf32> to vector<64x8xf32>
    %114 = vector.extract_strided_slice %92 {offsets = [0, 8], sizes = [64, 8], strides = [1, 1]} : vector<64x32xf32> to vector<64x8xf32>
    %115 = vector.extract_strided_slice %92 {offsets = [0, 16], sizes = [64, 8], strides = [1, 1]} : vector<64x32xf32> to vector<64x8xf32>
    %116 = vector.extract_strided_slice %92 {offsets = [0, 24], sizes = [64, 8], strides = [1, 1]} : vector<64x32xf32> to vector<64x8xf32>
    %117 = vector.shape_cast %113 : vector<64x8xf32> to vector<1x64x8xf32>
    %118 = vector.shape_cast %114 : vector<64x8xf32> to vector<1x64x8xf32>
    %119 = vector.shape_cast %115 : vector<64x8xf32> to vector<1x64x8xf32>
    %120 = vector.shape_cast %116 : vector<64x8xf32> to vector<1x64x8xf32>
    %121 = tpu.concatenate %117, %118, %119, %120 in 0 : vector<1x64x8xf32>, vector<1x64x8xf32>, vector<1x64x8xf32>, vector<1x64x8xf32> -> vector<4x64x8xf32>
    %122 = vector.extract_strided_slice %105 {offsets = [0, 0], sizes = [64, 8], strides = [1, 1]} : vector<64x32xf32> to vector<64x8xf32>
    %123 = vector.extract_strided_slice %105 {offsets = [0, 8], sizes = [64, 8], strides = [1, 1]} : vector<64x32xf32> to vector<64x8xf32>
    %124 = vector.extract_strided_slice %105 {offsets = [0, 16], sizes = [64, 8], strides = [1, 1]} : vector<64x32xf32> to vector<64x8xf32>
    %125 = vector.extract_strided_slice %105 {offsets = [0, 24], sizes = [64, 8], strides = [1, 1]} : vector<64x32xf32> to vector<64x8xf32>
    %126 = vector.shape_cast %122 : vector<64x8xf32> to vector<1x64x8xf32>
    %127 = vector.shape_cast %123 : vector<64x8xf32> to vector<1x64x8xf32>
    %128 = vector.shape_cast %124 : vector<64x8xf32> to vector<1x64x8xf32>
    %129 = vector.shape_cast %125 : vector<64x8xf32> to vector<1x64x8xf32>
    %130 = tpu.concatenate %126, %127, %128, %129 in 0 : vector<1x64x8xf32>, vector<1x64x8xf32>, vector<1x64x8xf32>, vector<1x64x8xf32> -> vector<4x64x8xf32>
    %131 = vector.extract_strided_slice %112 {offsets = [0, 0], sizes = [64, 8], strides = [1, 1]} : vector<64x32xf32> to vector<64x8xf32>
    %132 = vector.extract_strided_slice %112 {offsets = [0, 8], sizes = [64, 8], strides = [1, 1]} : vector<64x32xf32> to vector<64x8xf32>
    %133 = vector.extract_strided_slice %112 {offsets = [0, 16], sizes = [64, 8], strides = [1, 1]} : vector<64x32xf32> to vector<64x8xf32>
    %134 = vector.extract_strided_slice %112 {offsets = [0, 24], sizes = [64, 8], strides = [1, 1]} : vector<64x32xf32> to vector<64x8xf32>
    %135 = vector.shape_cast %131 : vector<64x8xf32> to vector<1x64x8xf32>
    %136 = vector.shape_cast %132 : vector<64x8xf32> to vector<1x64x8xf32>
    %137 = vector.shape_cast %133 : vector<64x8xf32> to vector<1x64x8xf32>
    %138 = vector.shape_cast %134 : vector<64x8xf32> to vector<1x64x8xf32>
    %139 = tpu.concatenate %135, %136, %137, %138 in 0 : vector<1x64x8xf32>, vector<1x64x8xf32>, vector<1x64x8xf32>, vector<1x64x8xf32> -> vector<4x64x8xf32>
    "tpu.trace_start"() <{level = 10 : i32, message = "hqd,hkd->hqk"}> : () -> ()
    %cst_72 = arith.constant dense<0.000000e+00> : vector<4x64x64xf32>
    %140 = tpu.matmul %121, %130, %cst_72 {dimension_numbers = #tpu.dot_dimension_numbers<[2], [2], [1], [1], [0, 0, 0, 1, 1, 1], [0], [0]>} : vector<4x64x8xf32>, vector<4x64x8xf32>, vector<4x64x64xf32> -> vector<4x64x64xf32>
    "tpu.trace_stop"() : () -> ()
    %cst_73 = arith.constant dense<0xFF800000> : vector<4x64xf32>
    %141 = vector.multi_reduction <maximumf>, %140, %cst_73 [2] : vector<4x64x64xf32> to vector<4x64xf32>
    %142 = vector.shape_cast %141 : vector<4x64xf32> to vector<4x64x1xf32>
    %143 = vector.broadcast %142 : vector<4x64x1xf32> to vector<4x64x64xf32>
    %144 = arith.subf %140, %143 : vector<4x64x64xf32>
    %145 = math.exp %144 : vector<4x64x64xf32>
    "tpu.trace_start"() <{level = 10 : i32, message = "hqk,hkd->hqd"}> : () -> ()
    %cst_74 = arith.constant dense<0.000000e+00> : vector<4x64x8xf32>
    %146 = tpu.matmul %145, %139, %cst_74 {dimension_numbers = #tpu.dot_dimension_numbers<[2], [1], [1], [2], [0, 0, 0, 1, 1, 2], [0], [0]>} : vector<4x64x64xf32>, vector<4x64x8xf32>, vector<4x64x8xf32> -> vector<4x64x8xf32>
    "tpu.trace_stop"() : () -> ()
    %cst_75 = arith.constant dense<0.000000e+00> : vector<4x64xf32>
    %147 = vector.multi_reduction <add>, %145, %cst_75 [2] : vector<4x64x64xf32> to vector<4x64xf32>
    %148 = vector.shape_cast %147 : vector<4x64xf32> to vector<4x64x1xf32>
    %149 = tpu.reciprocal %148 : vector<4x64x1xf32> -> vector<4x64x1xf32>
    %150 = vector.broadcast %149 : vector<4x64x1xf32> to vector<4x64x8xf32>
    %151 = arith.mulf %146, %150 : vector<4x64x8xf32>
    %c1_76 = arith.constant 1 : index
    %c0_77 = arith.constant 0 : index
    %c0_78 = arith.constant 0 : index
    %c0_79 = arith.constant 0 : index
    %152 = vector.load %arg10[%c1_76, %c0_77, %c0_78, %c0_79] : memref<2x4x8x32xf32, #tpu.memory_space<vmem>>, vector<1x4x8x32xf32>
    %153 = vector.shape_cast %152 : vector<1x4x8x32xf32> to vector<4x8x32xf32>
    "tpu.trace_start"() <{level = 10 : i32, message = "hsd,hdc->hsc"}> : () -> ()
    %cst_80 = arith.constant dense<0.000000e+00> : vector<4x64x32xf32>
    %154 = tpu.matmul %151, %153, %cst_80 {dimension_numbers = #tpu.dot_dimension_numbers<[2], [1], [1], [2], [0, 0, 0, 1, 1, 2], [0], [0]>} : vector<4x64x8xf32>, vector<4x8x32xf32>, vector<4x64x32xf32> -> vector<4x64x32xf32>
    "tpu.trace_stop"() : () -> ()
    %cst_81 = arith.constant dense<0.000000e+00> : vector<64x32xf32>
    %155 = vector.multi_reduction <add>, %154, %cst_81 [0] : vector<4x64x32xf32> to vector<64x32xf32>
    %c1_82 = arith.constant 1 : index
    %c0_83 = arith.constant 0 : index
    %c0_84 = arith.constant 0 : index
    %156 = vector.load %arg11[%c1_82, %c0_83, %c0_84] : memref<2x1x32xf32, #tpu.memory_space<vmem>>, vector<1x1x32xf32>
    %157 = vector.shape_cast %156 : vector<1x1x32xf32> to vector<1x32xf32>
    %158 = vector.broadcast %157 : vector<1x32xf32> to vector<64x32xf32>
    %159 = arith.addf %155, %158 : vector<64x32xf32>
    %160 = arith.addf %159, %85 : vector<64x32xf32>
    %c1_85 = arith.constant 1 : index
    %c0_86 = arith.constant 0 : index
    %c0_87 = arith.constant 0 : index
    %161 = vector.load %arg12[%c1_85, %c0_86, %c0_87] : memref<2x32x32xf32, #tpu.memory_space<vmem>>, vector<1x32x32xf32>
    %162 = vector.shape_cast %161 : vector<1x32x32xf32> to vector<32x32xf32>
    %cst_88 = arith.constant dense<0.000000e+00> : vector<64x32xf32>
    %163 = tpu.matmul %160, %162, %cst_88 {dimension_numbers = #tpu.dot_dimension_numbers<[1], [0], [0], [1], [0, 0, 1, 1], [], []>} : vector<64x32xf32>, vector<32x32xf32>, vector<64x32xf32> -> vector<64x32xf32>
    %164 = arith.addf %163, %160 : vector<64x32xf32>
    %c0_89 = arith.constant 0 : index
    %c0_90 = arith.constant 0 : index
    %c0_91 = arith.constant 0 : index
    %165 = vector.load %arg13[%c0_89, %c0_90, %c0_91] : memref<1x64x32xf32, #tpu.memory_space<vmem>>, vector<1x64x32xf32>
    %166 = vector.shape_cast %165 : vector<1x64x32xf32> to vector<64x32xf32>
    %167 = vector.shape_cast %164 : vector<64x32xf32> to vector<1x64x32xf32>
    tpu.vector_store %arg13[%c0_89, %c0_90, %c0_91], %167 {strides = array<i32>} : memref<1x64x32xf32, #tpu.memory_space<vmem>>, vector<1x64x32xf32>,
    return
  }
  func.func @transform_0(%arg0: i32) -> (i32, i32, i32) {
    %c0_i32 = arith.constant 0 : i32
    %c0_i32_0 = arith.constant 0 : i32
    %c0_i32_1 = arith.constant 0 : i32
    return %arg0, %c0_i32, %c0_i32_0 : i32, i32, i32
  }
  func.func @transform_1(%arg0: i32) -> (i32, i32) {
    %c0_i32 = arith.constant 0 : i32
    %c0_i32_0 = arith.constant 0 : i32
    %c0_i32_1 = arith.constant 0 : i32
    return %c0_i32, %c0_i32_0 : i32, i32
  }
  func.func @transform_2(%arg0: i32) -> (i32, i32) {
    %c0_i32 = arith.constant 0 : i32
    %c0_i32_0 = arith.constant 0 : i32
    %c0_i32_1 = arith.constant 0 : i32
    return %c0_i32, %c0_i32_0 : i32, i32
  }
  func.func @transform_3(%arg0: i32) -> (i32, i32, i32) {
    %c0_i32 = arith.constant 0 : i32
    %c0_i32_0 = arith.constant 0 : i32
    %c0_i32_1 = arith.constant 0 : i32
    %c0_i32_2 = arith.constant 0 : i32
    return %c0_i32, %c0_i32_0, %c0_i32_1 : i32, i32, i32
  }
  func.func @transform_4(%arg0: i32) -> (i32, i32, i32) {
    %c0_i32 = arith.constant 0 : i32
    %c0_i32_0 = arith.constant 0 : i32
    %c0_i32_1 = arith.constant 0 : i32
    %c0_i32_2 = arith.constant 0 : i32
    return %c0_i32, %c0_i32_0, %c0_i32_1 : i32, i32, i32
  }
  func.func @transform_5(%arg0: i32) -> (i32, i32, i32) {
    %c0_i32 = arith.constant 0 : i32
    %c0_i32_0 = arith.constant 0 : i32
    %c0_i32_1 = arith.constant 0 : i32
    %c0_i32_2 = arith.constant 0 : i32
    return %c0_i32, %c0_i32_0, %c0_i32_1 : i32, i32, i32
  }
  func.func @transform_6(%arg0: i32) -> (i32, i32, i32) {
    %c0_i32 = arith.constant 0 : i32
    %c0_i32_0 = arith.constant 0 : i32
    %c0_i32_1 = arith.constant 0 : i32
    %c0_i32_2 = arith.constant 0 : i32
    return %c0_i32, %c0_i32_0, %c0_i32_1 : i32, i32, i32
  }
  func.func @transform_7(%arg0: i32) -> (i32, i32, i32) {
    %c0_i32 = arith.constant 0 : i32
    %c0_i32_0 = arith.constant 0 : i32
    %c0_i32_1 = arith.constant 0 : i32
    %c0_i32_2 = arith.constant 0 : i32
    return %c0_i32, %c0_i32_0, %c0_i32_1 : i32, i32, i32
  }
  func.func @transform_8(%arg0: i32) -> (i32, i32, i32) {
    %c0_i32 = arith.constant 0 : i32
    %c0_i32_0 = arith.constant 0 : i32
    %c0_i32_1 = arith.constant 0 : i32
    %c0_i32_2 = arith.constant 0 : i32
    return %c0_i32, %c0_i32_0, %c0_i32_1 : i32, i32, i32
  }
  func.func @transform_9(%arg0: i32) -> (i32, i32, i32, i32) {
    %c0_i32 = arith.constant 0 : i32
    %c0_i32_0 = arith.constant 0 : i32
    %c0_i32_1 = arith.constant 0 : i32
    %c0_i32_2 = arith.constant 0 : i32
    %c0_i32_3 = arith.constant 0 : i32
    return %c0_i32, %c0_i32_0, %c0_i32_1, %c0_i32_2 : i32, i32, i32, i32
  }
  func.func @transform_10(%arg0: i32) -> (i32, i32, i32) {
    %c0_i32 = arith.constant 0 : i32
    %c0_i32_0 = arith.constant 0 : i32
    %c0_i32_1 = arith.constant 0 : i32
    %c0_i32_2 = arith.constant 0 : i32
    return %c0_i32, %c0_i32_0, %c0_i32_1 : i32, i32, i32
  }
  func.func @transform_11(%arg0: i32) -> (i32, i32, i32) {
    %c0_i32 = arith.constant 0 : i32
    %c0_i32_0 = arith.constant 0 : i32
    %c0_i32_1 = arith.constant 0 : i32
    %c0_i32_2 = arith.constant 0 : i32
    return %c0_i32, %c0_i32_0, %c0_i32_1 : i32, i32, i32
  }
  func.func @transform_12(%arg0: i32) -> (i32, i32, i32) {
    %c0_i32 = arith.constant 0 : i32
    %c0_i32_0 = arith.constant 0 : i32
    %c0_i32_1 = arith.constant 0 : i32
    return %arg0, %c0_i32, %c0_i32_0 : i32, i32, i32
  }
}

</mosaic_0001>

<llo_original>
// kernel: tpu_custom_call.1
$region0: #{tpu_custom_call.1}
  #allocation0 [shape = 'u32[]', space=smem, size = 0x4, offset = 0x4, fixed_abs, tag = 'smem constant byte address 0x4 - core index']
  #allocation1 [shape = 'u32[144,128]{1,0:T(1,128)}', space=vmem, size = 0x12000, scoped, tag = 'internal scratch']
  %s0 = inlined_call_operand.vmem [shape: f32[2,64,32], index: 0, kind: input, shape index: {}]
  %s1 = inlined_call_operand.hbm [shape: f32[32,32], index: 1, kind: input, shape index: {}]
  %s2 = inlined_call_operand.vmem [shape: f32[1,32], index: 2, kind: input, shape index: {}]
  %s3 = inlined_call_operand.vmem [shape: f32[2,32,32], index: 3, kind: input, shape index: {}]
  %s4 = inlined_call_operand.vmem [shape: f32[2,32,32], index: 4, kind: input, shape index: {}]
  %s5 = inlined_call_operand.vmem [shape: f32[2,32,32], index: 5, kind: input, shape index: {}]
  %s6 = inlined_call_operand.vmem [shape: f32[2,1,32], index: 6, kind: input, shape index: {}]
  %s7 = inlined_call_operand.vmem [shape: f32[2,1,32], index: 7, kind: input, shape index: {}]
  %s8 = inlined_call_operand.vmem [shape: f32[2,1,32], index: 8, kind: input, shape index: {}]
  %s9 = inlined_call_operand.hbm [shape: f32[2,4,8,32], index: 9, kind: input, shape index: {}]
  %s10 = inlined_call_operand.vmem [shape: f32[2,1,32], index: 10, kind: input, shape index: {}]
  %s11 = inlined_call_operand.hbm [shape: f32[2,32,32], index: 11, kind: input, shape index: {}]
  %s12 = inlined_call_operand.vmem [shape: f32[2,64,32], index: 12, kind: output, shape index: {}]
  %s13 = sld [smem:[#allocation0]]
  $region93: #{tpu_custom_call.1} parent=0
    _
  %s15 = ssub.s32 1, %s13
  %s16 = scalar_select 0, %s15, %s13
  $region1: #{tpu_custom_call.1} parent=0
    #allocation2 [shape = 'u8[16384]{0}', space=vmem, size = 0x4000, scoped, tag = 'input window, operand 1, single buffered']
    #allocation3 [shape = 's32[2]{0}', space=sflag, size = 0x8, scoped, tag = 'scoped memory for tpu_custom_call.1']
    #allocation4 [shape = 'u8[32768]{0}', space=vmem, size = 0x8000, scoped, tag = 'input window, operand 9, single buffered']
    #allocation5 [shape = 's32[1]{0}', space=sflag, size = 0x4, scoped, tag = 'scoped memory for tpu_custom_call.1']
    #allocation6 [shape = 'u8[32768]{0}', space=vmem, size = 0x8000, scoped, tag = 'input window, operand 11, single buffered']
    %17 = vsyncpa [#allocation3], 0
    %18 = vsyncpa [#allocation5], 0
    loop: start=0, step=1, limit=4
    $region2: #{tpu_custom_call.1} parent=1 // loop_pre_header
      _
    $region3: #{tpu_custom_call.1} parent=1 // loop_header
      %s20 = sphi 0, %s24
      %p21 = scmp.ge.s32.totalorder %s20, 4
      %s30 = sphi 0, %s32
      %s33 = sphi 0, %s30
      %s34 = sphi 0, %s33
      %s50 = sphi 0, %s34
      %s54 = sphi 0, %s54
      %s56 = sphi 0, %s54
      %s57 = sphi 0, %s56
      %s71 = sphi 0, %s57
      %s75 = sphi 0, %s75
      %s77 = sphi 0, %s75
      %s78 = sphi 0, %s77
      %s92 = sphi 0, %s78
      %s96 = sphi 0, %s96
      %s98 = sphi 0, %s96
      %s99 = sphi 0, %s98
      %s113 = sphi 0, %s99
      %s117 = sphi 0, %s117
      %s119 = sphi 0, %s117
      %s120 = sphi 0, %s119
      %s134 = sphi 0, %s120
      %s138 = sphi 0, %s138
      %s140 = sphi 0, %s138
      %s141 = sphi 0, %s140
      %s155 = sphi 0, %s141
      %s159 = sphi 0, %s159
      %s161 = sphi 0, %s159
      %s162 = sphi 0, %s161
      %s176 = sphi 0, %s162
      %s180 = sphi 0, %s180
      %s182 = sphi 0, %s180
      %s183 = sphi 0, %s182
      %s197 = sphi 0, %s183
      %s201 = sphi 0, %s201
      %s203 = sphi 0, %s201
      %s204 = sphi 0, %s203
      %s218 = sphi 0, %s204
      %s222 = sphi 0, %s222
      %s224 = sphi 0, %s222
      %s225 = sphi 0, %s224
      %s239 = sphi 0, %s225
      %s243 = sphi 0, %s243
      %s245 = sphi 0, %s243
      %s246 = sphi 0, %s245
      %s260 = sphi 0, %s246
      %s264 = sphi 0, %s264
      %s266 = sphi 0, %s264
      %s267 = sphi 0, %s266
      %s281 = sphi 0, %s267
      %s287 = sphi 0, %s289
      %s290 = sphi 0, %s287
      %s291 = sphi 0, %s290
      %s307 = sphi 0, %s291
    $region4: #{tpu_custom_call.1} parent=1 // loop_header_branch
      %23 = sbr.rel (%p21) target = $region8
    $region5: #{tpu_custom_call.1} parent=1 // loop_body
      %s25 = ssub.s32 %s20, 1
      %s26 = ssub.s32 %s20, 2
      %s27 = sadd.s32 %s20, 1
      %s28 = ssub.s32 %s20, %s27
      %p29 = scmp.eq.s32.totalorder %s28, 0
      %s31 = sadd.s32 %s30, 1
      %s32 = scalar_select %p29, %s30, %s31
      %p35 = pneg %p29
      %p36 = scmp.eq.s32.totalorder %s20, 1
      %p37 = por %p35, %p36
      %p38 = scmp.ne.s32.totalorder %s30, %s33
      %p39 = scmp.eq.s32.totalorder %s20, 0
      %p40 = por %p38, %p39
      %p41 = scmp.ne.s32.totalorder %s30, %s33
      %p42 = scmp.eq.s32.totalorder %s25, 1
      %p43 = por %p41, %p42
      %p44 = scmp.ne.s32.totalorder %s33, %s34
      %p45 = scmp.eq.s32.totalorder %s25, 0
      %p46 = por %p44, %p45
      %p47 = scmp.ne.s32.totalorder %s33, %s34
      %p48 = scmp.eq.s32.totalorder %s26, 1
      %p49 = por %p47, %p48
      %p51 = scmp.ne.s32.totalorder %s34, %s50
      %p52 = scmp.eq.s32.totalorder %s26, 0
      %p53 = por %p51, %p52
      %s55 = sadd.s32 %s54, 1
      %p58 = scmp.eq.s32.totalorder %s20, 1
      %p59 = scmp.ne.s32.totalorder %s54, %s56
      %p60 = scmp.eq.s32.totalorder %s20, 0
      %p61 = por %p59, %p60
      %p62 = scmp.ne.s32.totalorder %s54, %s56
      %p63 = scmp.eq.s32.totalorder %s25, 1
      %p64 = por %p62, %p63
      %p65 = scmp.ne.s32.totalorder %s56, %s57
      %p66 = scmp.eq.s32.totalorder %s25, 0
      %p67 = por %p65, %p66
      %p68 = scmp.ne.s32.totalorder %s56, %s57
      %p69 = scmp.eq.s32.totalorder %s26, 1
      %p70 = por %p68, %p69
      %p72 = scmp.ne.s32.totalorder %s57, %s71
      %p73 = scmp.eq.s32.totalorder %s26, 0
      %p74 = por %p72, %p73
      %s76 = sadd.s32 %s75, 1
      %p79 = scmp.eq.s32.totalorder %s20, 1
      %p80 = scmp.ne.s32.totalorder %s75, %s77
      %p81 = scmp.eq.s32.totalorder %s20, 0
      %p82 = por %p80, %p81
      %p83 = scmp.ne.s32.totalorder %s75, %s77
      %p84 = scmp.eq.s32.totalorder %s25, 1
      %p85 = por %p83, %p84
      %p86 = scmp.ne.s32.totalorder %s77, %s78
      %p87 = scmp.eq.s32.totalorder %s25, 0
      %p88 = por %p86, %p87
      %p89 = scmp.ne.s32.totalorder %s77, %s78
      %p90 = scmp.eq.s32.totalorder %s26, 1
      %p91 = por %p89, %p90
      %p93 = scmp.ne.s32.totalorder %s78, %s92
      %p94 = scmp.eq.s32.totalorder %s26, 0
      %p95 = por %p93, %p94
      %s97 = sadd.s32 %s96, 1
      %p100 = scmp.eq.s32.totalorder %s20, 1
      %p101 = scmp.ne.s32.totalorder %s96, %s98
      %p102 = scmp.eq.s32.totalorder %s20, 0
      %p103 = por %p101, %p102
      %p104 = scmp.ne.s32.totalorder %s96, %s98
      %p105 = scmp.eq.s32.totalorder %s25, 1
      %p106 = por %p104, %p105
      %p107 = scmp.ne.s32.totalorder %s98, %s99
      %p108 = scmp.eq.s32.totalorder %s25, 0
      %p109 = por %p107, %p108
      %p110 = scmp.ne.s32.totalorder %s98, %s99
      %p111 = scmp.eq.s32.totalorder %s26, 1
      %p112 = por %p110, %p111
      %p114 = scmp.ne.s32.totalorder %s99, %s113
      %p115 = scmp.eq.s32.totalorder %s26, 0
      %p116 = por %p114, %p115
      %s118 = sadd.s32 %s117, 1
      %p121 = scmp.eq.s32.totalorder %s20, 1
      %p122 = scmp.ne.s32.totalorder %s117, %s119
      %p123 = scmp.eq.s32.totalorder %s20, 0
      %p124 = por %p122, %p123
      %p125 = scmp.ne.s32.totalorder %s117, %s119
      %p126 = scmp.eq.s32.totalorder %s25, 1
      %p127 = por %p125, %p126
      %p128 = scmp.ne.s32.totalorder %s119, %s120
      %p129 = scmp.eq.s32.totalorder %s25, 0
      %p130 = por %p128, %p129
      %p131 = scmp.ne.s32.totalorder %s119, %s120
      %p132 = scmp.eq.s32.totalorder %s26, 1
      %p133 = por %p131, %p132
      %p135 = scmp.ne.s32.totalorder %s120, %s134
      %p136 = scmp.eq.s32.totalorder %s26, 0
      %p137 = por %p135, %p136
      %s139 = sadd.s32 %s138, 1
      %p142 = scmp.eq.s32.totalorder %s20, 1
      %p143 = scmp.ne.s32.totalorder %s138, %s140
      %p144 = scmp.eq.s32.totalorder %s20, 0
      %p145 = por %p143, %p144
      %p146 = scmp.ne.s32.totalorder %s138, %s140
      %p147 = scmp.eq.s32.totalorder %s25, 1
      %p148 = por %p146, %p147
      %p149 = scmp.ne.s32.totalorder %s140, %s141
      %p150 = scmp.eq.s32.totalorder %s25, 0
      %p151 = por %p149, %p150
      %p152 = scmp.ne.s32.totalorder %s140, %s141
      %p153 = scmp.eq.s32.totalorder %s26, 1
      %p154 = por %p152, %p153
      %p156 = scmp.ne.s32.totalorder %s141, %s155
      %p157 = scmp.eq.s32.totalorder %s26, 0
      %p158 = por %p156, %p157
      %s160 = sadd.s32 %s159, 1
      %p163 = scmp.eq.s32.totalorder %s20, 1
      %p164 = scmp.ne.s32.totalorder %s159, %s161
      %p165 = scmp.eq.s32.totalorder %s20, 0
      %p166 = por %p164, %p165
      %p167 = scmp.ne.s32.totalorder %s159, %s161
      %p168 = scmp.eq.s32.totalorder %s25, 1
      %p169 = por %p167, %p168
      %p170 = scmp.ne.s32.totalorder %s161, %s162
      %p171 = scmp.eq.s32.totalorder %s25, 0
      %p172 = por %p170, %p171
      %p173 = scmp.ne.s32.totalorder %s161, %s162
      %p174 = scmp.eq.s32.totalorder %s26, 1
      %p175 = por %p173, %p174
      %p177 = scmp.ne.s32.totalorder %s162, %s176
      %p178 = scmp.eq.s32.totalorder %s26, 0
      %p179 = por %p177, %p178
      %s181 = sadd.s32 %s180, 1
      %p184 = scmp.eq.s32.totalorder %s20, 1
      %p185 = scmp.ne.s32.totalorder %s180, %s182
      %p186 = scmp.eq.s32.totalorder %s20, 0
      %p187 = por %p185, %p186
      %p188 = scmp.ne.s32.totalorder %s180, %s182
      %p189 = scmp.eq.s32.totalorder %s25, 1
      %p190 = por %p188, %p189
      %p191 = scmp.ne.s32.totalorder %s182, %s183
      %p192 = scmp.eq.s32.totalorder %s25, 0
      %p193 = por %p191, %p192
      %p194 = scmp.ne.s32.totalorder %s182, %s183
      %p195 = scmp.eq.s32.totalorder %s26, 1
      %p196 = por %p194, %p195
      %p198 = scmp.ne.s32.totalorder %s183, %s197
      %p199 = scmp.eq.s32.totalorder %s26, 0
      %p200 = por %p198, %p199
      %s202 = sadd.s32 %s201, 1
      %p205 = scmp.eq.s32.totalorder %s20, 1
      %p206 = scmp.ne.s32.totalorder %s201, %s203
      %p207 = scmp.eq.s32.totalorder %s20, 0
      %p208 = por %p206, %p207
      %p209 = scmp.ne.s32.totalorder %s201, %s203
      %p210 = scmp.eq.s32.totalorder %s25, 1
      %p211 = por %p209, %p210
      %p212 = scmp.ne.s32.totalorder %s203, %s204
      %p213 = scmp.eq.s32.totalorder %s25, 0
      %p214 = por %p212, %p213
      %p215 = scmp.ne.s32.totalorder %s203, %s204
      %p216 = scmp.eq.s32.totalorder %s26, 1
      %p217 = por %p215, %p216
      %p219 = scmp.ne.s32.totalorder %s204, %s218
      %p220 = scmp.eq.s32.totalorder %s26, 0
      %p221 = por %p219, %p220
      %s223 = sadd.s32 %s222, 1
      %p226 = scmp.eq.s32.totalorder %s20, 1
      %p227 = scmp.ne.s32.totalorder %s222, %s224
      %p228 = scmp.eq.s32.totalorder %s20, 0
      %p229 = por %p227, %p228
      %p230 = scmp.ne.s32.totalorder %s222, %s224
      %p231 = scmp.eq.s32.totalorder %s25, 1
      %p232 = por %p230, %p231
      %p233 = scmp.ne.s32.totalorder %s224, %s225
      %p234 = scmp.eq.s32.totalorder %s25, 0
      %p235 = por %p233, %p234
      %p236 = scmp.ne.s32.totalorder %s224, %s225
      %p237 = scmp.eq.s32.totalorder %s26, 1
      %p238 = por %p236, %p237
      %p240 = scmp.ne.s32.totalorder %s225, %s239
      %p241 = scmp.eq.s32.totalorder %s26, 0
      %p242 = por %p240, %p241
      %s244 = sadd.s32 %s243, 1
      %p247 = scmp.eq.s32.totalorder %s20, 1
      %p248 = scmp.ne.s32.totalorder %s243, %s245
      %p249 = scmp.eq.s32.totalorder %s20, 0
      %p250 = por %p248, %p249
      %p251 = scmp.ne.s32.totalorder %s243, %s245
      %p252 = scmp.eq.s32.totalorder %s25, 1
      %p253 = por %p251, %p252
      %p254 = scmp.ne.s32.totalorder %s245, %s246
      %p255 = scmp.eq.s32.totalorder %s25, 0
      %p256 = por %p254, %p255
      %p257 = scmp.ne.s32.totalorder %s245, %s246
      %p258 = scmp.eq.s32.totalorder %s26, 1
      %p259 = por %p257, %p258
      %p261 = scmp.ne.s32.totalorder %s246, %s260
      %p262 = scmp.eq.s32.totalorder %s26, 0
      %p263 = por %p261, %p262
      %s265 = sadd.s32 %s264, 1
      %p268 = scmp.eq.s32.totalorder %s20, 1
      %p269 = scmp.ne.s32.totalorder %s264, %s266
      %p270 = scmp.eq.s32.totalorder %s20, 0
      %p271 = por %p269, %p270
      %p272 = scmp.ne.s32.totalorder %s264, %s266
      %p273 = scmp.eq.s32.totalorder %s25, 1
      %p274 = por %p272, %p273
      %p275 = scmp.ne.s32.totalorder %s266, %s267
      %p276 = scmp.eq.s32.totalorder %s25, 0
      %p277 = por %p275, %p276
      %p278 = scmp.ne.s32.totalorder %s266, %s267
      %p279 = scmp.eq.s32.totalorder %s26, 1
      %p280 = por %p278, %p279
      %p282 = scmp.ne.s32.totalorder %s267, %s281
      %p283 = scmp.eq.s32.totalorder %s26, 0
      %p284 = por %p282, %p283
      %s285 = ssub.s32 %s20, %s27
      %p286 = scmp.eq.s32.totalorder %s285, 0
      %s288 = sadd.s32 %s287, 1
      %s289 = scalar_select %p286, %s287, %s288
      %p292 = pneg %p286
      %p293 = scmp.eq.s32.totalorder %s20, 1
      %p294 = por %p292, %p293
      %p295 = scmp.ne.s32.totalorder %s287, %s290
      %p296 = scmp.eq.s32.totalorder %s20, 0
      %p297 = por %p295, %p296
      %p298 = scmp.ne.s32.totalorder %s287, %s290
      %p299 = scmp.eq.s32.totalorder %s25, 1
      %p300 = por %p298, %p299
      %p301 = scmp.ne.s32.totalorder %s290, %s291
      %p302 = scmp.eq.s32.totalorder %s25, 0
      %p303 = por %p301, %p302
      %p304 = scmp.ne.s32.totalorder %s290, %s291
      %p305 = scmp.eq.s32.totalorder %s26, 1
      %p306 = por %p304, %p305
      %p308 = scmp.ne.s32.totalorder %s291, %s307
      %p309 = scmp.eq.s32.totalorder %s26, 0
      %p310 = por %p308, %p309
      %p311 = scmp.le.s32.totalorder 1, %s20
      %p312 = scmp.lt.s32.totalorder %s20, 3
      %p313 = pnand %p311, %p312
      %p314 = pneg %p313
      // Predicated region
      $region9: #{tpu_custom_call.1} parent=5 // pred_check
        _
      $region10: #{tpu_custom_call.1} parent=5 // pred_check_branch
        %316 = sbr.rel (%p313) target = $region12
      $region11: #{tpu_custom_call.1} parent=5 // pred_region
        %s317 = ssub.s32 %s20, 1
        // Predicated region
        $region13: #{tpu_custom_call.1} parent=11 // pred_check
          %p318 = pneg %p67
        $region14: #{tpu_custom_call.1} parent=11 // pred_check_branch
          %320 = sbr.rel (%p318) target = $region16
        $region15: #{tpu_custom_call.1} parent=11 // pred_region
          %s322 = ssub.s32 512, 512
          %323 = vsyncadd [#allocation3], %s322
          %s324 = sshll.u32 [#allocation2], 4
          %s325 = int_to_ptr.vmem [resolvable:$true] %s324
          %330 = dma.hbm_to_vmem [thread:$0]  %s1, 512, %s325, [#allocation3], 128, 128, 8
        $region16: #{tpu_custom_call.1} parent=11 // pred_fallthru
          _
        // Predicated region
        $region17: #{tpu_custom_call.1} parent=11 // pred_check
          %p331 = pneg %p88
        $region18: #{tpu_custom_call.1} parent=11 // pred_check_branch
          %333 = sbr.rel (%p331) target = $region20
        $region19: #{tpu_custom_call.1} parent=11 // pred_region
          _
        $region20: #{tpu_custom_call.1} parent=11 // pred_fallthru
          _
        // Predicated region
        $region21: #{tpu_custom_call.1} parent=11 // pred_check
          %p334 = pneg %p109
        $region22: #{tpu_custom_call.1} parent=11 // pred_check_branch
          %336 = sbr.rel (%p334) target = $region24
        $region23: #{tpu_custom_call.1} parent=11 // pred_region
          _
        $region24: #{tpu_custom_call.1} parent=11 // pred_fallthru
          _
        // Predicated region
        $region25: #{tpu_custom_call.1} parent=11 // pred_check
          %p337 = pneg %p130
        $region26: #{tpu_custom_call.1} parent=11 // pred_check_branch
          %339 = sbr.rel (%p337) target = $region28
        $region27: #{tpu_custom_call.1} parent=11 // pred_region
          _
        $region28: #{tpu_custom_call.1} parent=11 // pred_fallthru
          _
        // Predicated region
        $region29: #{tpu_custom_call.1} parent=11 // pred_check
          %p340 = pneg %p151
        $region30: #{tpu_custom_call.1} parent=11 // pred_check_branch
          %342 = sbr.rel (%p340) target = $region32
        $region31: #{tpu_custom_call.1} parent=11 // pred_region
          _
        $region32: #{tpu_custom_call.1} parent=11 // pred_fallthru
          _
        // Predicated region
        $region33: #{tpu_custom_call.1} parent=11 // pred_check
          %p343 = pneg %p172
        $region34: #{tpu_custom_call.1} parent=11 // pred_check_branch
          %345 = sbr.rel (%p343) target = $region36
        $region35: #{tpu_custom_call.1} parent=11 // pred_region
          _
        $region36: #{tpu_custom_call.1} parent=11 // pred_fallthru
          _
        // Predicated region
        $region37: #{tpu_custom_call.1} parent=11 // pred_check
          %p346 = pneg %p193
        $region38: #{tpu_custom_call.1} parent=11 // pred_check_branch
          %348 = sbr.rel (%p346) target = $region40
        $region39: #{tpu_custom_call.1} parent=11 // pred_region
          _
        $region40: #{tpu_custom_call.1} parent=11 // pred_fallthru
          _
        // Predicated region
        $region41: #{tpu_custom_call.1} parent=11 // pred_check
          %p349 = pneg %p214
        $region42: #{tpu_custom_call.1} parent=11 // pred_check_branch
          %351 = sbr.rel (%p349) target = $region44
        $region43: #{tpu_custom_call.1} parent=11 // pred_region
          _
        $region44: #{tpu_custom_call.1} parent=11 // pred_fallthru
          _
        // Predicated region
        $region45: #{tpu_custom_call.1} parent=11 // pred_check
          %p352 = pneg %p235
        $region46: #{tpu_custom_call.1} parent=11 // pred_check_branch
          %354 = sbr.rel (%p352) target = $region48
        $region47: #{tpu_custom_call.1} parent=11 // pred_region
          %s356 = ssub.s32 1024, 1024
          %357 = vsyncadd [#allocation5], %s356
          %s358 = sshll.u32 [#allocation4], 4
          %s359 = int_to_ptr.vmem [resolvable:$true] %s358
          %364 = dma.hbm_to_vmem [thread:$0]  %s9, 1024, %s359, [#allocation5], 128, 128, 8
        $region48: #{tpu_custom_call.1} parent=11 // pred_fallthru
          _
        // Predicated region
        $region49: #{tpu_custom_call.1} parent=11 // pred_check
          %p365 = pneg %p256
        $region50: #{tpu_custom_call.1} parent=11 // pred_check_branch
          %367 = sbr.rel (%p365) target = $region52
        $region51: #{tpu_custom_call.1} parent=11 // pred_region
          _
        $region52: #{tpu_custom_call.1} parent=11 // pred_fallthru
          _
        // Predicated region
        $region53: #{tpu_custom_call.1} parent=11 // pred_check
          %p368 = pneg %p277
        $region54: #{tpu_custom_call.1} parent=11 // pred_check_branch
          %370 = sbr.rel (%p368) target = $region56
        $region55: #{tpu_custom_call.1} parent=11 // pred_region
          %s372 = ssub.s32 1024, 1024
          %373 = vsyncadd [#allocation5], %s372
          %s374 = sshll.u32 [#allocation6], 4
          %s375 = int_to_ptr.vmem [resolvable:$true] %s374
          %380 = dma.hbm_to_vmem [thread:$0]  %s11, 1024, %s375, [#allocation5], 128, 128, 8
        $region56: #{tpu_custom_call.1} parent=11 // pred_fallthru
          _
      $region12: #{tpu_custom_call.1} parent=5 // pred_fallthru
        _
      %p381 = scmp.lt.s32.totalorder %s20, 2
      // Predicated region
      $region57: #{tpu_custom_call.1} parent=5 // pred_check
        %p382 = pneg %p381
      $region58: #{tpu_custom_call.1} parent=5 // pred_check_branch
        %384 = sbr.rel (%p382) target = $region60
      $region59: #{tpu_custom_call.1} parent=5 // pred_region
        // Predicated region
        $region61: #{tpu_custom_call.1} parent=59 // pred_check
          %p385 = pneg %p40
        $region62: #{tpu_custom_call.1} parent=59 // pred_check_branch
          %387 = sbr.rel (%p385) target = $region64
        $region63: #{tpu_custom_call.1} parent=59 // pred_region
          %p388 = scmp.lt.s32.totalorder %s20, 1
          %s389 = scalar_select %p388, %s20, 1
          %s390 = smul.addr %s389, 8
          %s391 = smul.addr %s390, 8
          %s392 = scalar_lea.vmem %s0, %s391
        $region64: #{tpu_custom_call.1} parent=59 // pred_fallthru
          _
      $region60: #{tpu_custom_call.1} parent=5 // pred_fallthru
        _
      %p393 = scmp.le.s32.totalorder 1, %s20
      %p394 = scmp.lt.s32.totalorder %s20, 3
      %p395 = pnand %p393, %p394
      %p396 = pneg %p395
      // Predicated region
      $region65: #{tpu_custom_call.1} parent=5 // pred_check
        _
      $region66: #{tpu_custom_call.1} parent=5 // pred_check_branch
        %398 = sbr.rel (%p395) target = $region68
      $region67: #{tpu_custom_call.1} parent=5 // pred_region
        %s399 = ssub.s32 %s20, 1
        // Predicated region
        $region69: #{tpu_custom_call.1} parent=67 // pred_check
          %p400 = pneg %p67
        $region70: #{tpu_custom_call.1} parent=67 // pred_check_branch
          %402 = sbr.rel (%p400) target = $region72
        $region71: #{tpu_custom_call.1} parent=67 // pred_region
          %403 = dma.done [#allocation3], 512
        $region72: #{tpu_custom_call.1} parent=67 // pred_fallthru
          _
        // Predicated region
        $region73: #{tpu_custom_call.1} parent=67 // pred_check
          %p404 = pneg %p235
        $region74: #{tpu_custom_call.1} parent=67 // pred_check_branch
          %406 = sbr.rel (%p404) target = $region76
        $region75: #{tpu_custom_call.1} parent=67 // pred_region
          %407 = dma.done [#allocation5], 1024
        $region76: #{tpu_custom_call.1} parent=67 // pred_fallthru
          _
        // Predicated region
        $region77: #{tpu_custom_call.1} parent=67 // pred_check
          %p408 = pneg %p277
        $region78: #{tpu_custom_call.1} parent=67 // pred_check_branch
          %410 = sbr.rel (%p408) target = $region80
        $region79: #{tpu_custom_call.1} parent=67 // pred_region
          %411 = dma.done [#allocation5], 1024
        $region80: #{tpu_custom_call.1} parent=67 // pred_fallthru
          _
        %p412 = scmp.lt.s32.totalorder %s25, 1
        %s413 = scalar_select %p412, %s25, 1
        %s414 = smul.addr %s413, 8
        %s415 = smul.addr %s414, 8
        %s416 = scalar_lea.vmem %s0, %s415
        %p417 = pneg %p46
        %p418 = pneg %p43
        %p419 = pneg %p67
        %p420 = pneg %p64
        %p421 = pneg %p88
        %p422 = pneg %p85
        %p423 = pneg %p109
        %p424 = pneg %p106
        %p425 = pneg %p130
        %p426 = pneg %p127
        %p427 = pneg %p151
        %p428 = pneg %p148
        %p429 = pneg %p172
        %p430 = pneg %p169
        %p431 = pneg %p193
        %p432 = pneg %p190
        %p433 = pneg %p214
        %p434 = pneg %p211
        %p435 = pneg %p235
        %p436 = pneg %p232
        %p437 = pneg %p256
        %p438 = pneg %p253
        %p439 = pneg %p277
        %p440 = pneg %p274
        %p441 = pneg %p303
        %p442 = pneg %p300
        %p443 = scmp.lt.s32.totalorder %s25, 1
        %s444 = scalar_select %p443, %s25, 1
        %s445 = smul.addr %s444, 8
        %s446 = smul.addr %s445, 8
        %s447 = scalar_lea.vmem %s12, %s446
        %p448 = scmp.lt.s32.totalorder %s25, 1
        %s449 = scalar_select %p448, %s25, 1
        %s450 = smul.addr %s449, 8
        %s451 = smul.addr %s450, 8
        %s452 = scalar_lea.vmem %s0, %s451
        %p453 = scmp.lt.s32.totalorder %s25, 1
        %s454 = scalar_select %p453, %s25, 1
        %s455 = smul.addr %s454, 8
        %s456 = smul.addr %s455, 8
        %s457 = scalar_lea.vmem %s12, %s456
        %v458 = vld [vmem:[%s452] sm:$0xff]
        %v459 = vld [vmem:[%s452 + $0x8] sm:$0xff]
        %v460 = vld [vmem:[%s452 + $0x10] sm:$0xff]
        %v461 = vld [vmem:[%s452 + $0x18] sm:$0xff]
        %v462 = vld [vmem:[%s452 + $0x20] sm:$0xff]
        %v463 = vld [vmem:[%s452 + $0x28] sm:$0xff]
        %v464 = vld [vmem:[%s452 + $0x30] sm:$0xff]
        %v465 = vld [vmem:[%s452 + $0x38] sm:$0xff]
        %v466 = vld [vmem:[#allocation2] sm:$0xff]
        %v467 = vld [vmem:[#allocation2 + $0x8] sm:$0xff]
        %v468 = vld [vmem:[#allocation2 + $0x10] sm:$0xff]
        %v469 = vld [vmem:[#allocation2 + $0x18] sm:$0xff]
        %v470 = vld [vmem:[%s2] sm:$0x1]
        %v472 = vlaneseq
        %v473 = vshrl.u32 %v472, 7
        %v474 = vsub.s32 0, %v473
        %v475 = vrot.slane %v470, %v474
        %vm477 = vcmask 261120
        %v479 = vsel %vm477, %v458, 0
        %v482 = vsel %vm477, %v459, 0
        %v485 = vsel %vm477, %v460, 0
        %v488 = vsel %vm477, %v461, 0
        %v491 = vsel %vm477, %v462, 0
        %v494 = vsel %vm477, %v463, 0
        %v497 = vsel %vm477, %v464, 0
        %v500 = vsel %vm477, %v465, 0
        %502 = vmatprep.subr.mxu0 0.0
        %503 = vmatpush1.msra.mxu0 0.0
        %504 = vmatprep.subr.mxu0 0.0
        %505 = vmatpush1.msra.mxu0 0.0
        %506 = vmatprep.subr.mxu0 0.0
        %507 = vmatpush1.msra.mxu0 0.0
        %508 = vmatprep.subr.mxu0 0.0
        %509 = vmatpush1.msra.mxu0 0.0
        %510 = vmatprep.subr.mxu0 0.0
        %511 = vmatpush1.msra.mxu0 0.0
        %512 = vmatprep.subr.mxu0 0.0
        %513 = vmatpush1.msra.mxu0 0.0
        %514 = vmatprep.subr.mxu0 0.0
        %515 = vmatpush1.msra.mxu0 0.0
        %516 = vmatprep.subr.mxu0 0.0
        %517 = vmatpush1.msra.mxu0 0.0
        %518 = vmatprep.subr.mxu0 0.0
        %519 = vmatpush1.msra.mxu0 0.0
        %520 = vmatprep.subr.mxu0 0.0
        %521 = vmatpush1.msra.mxu0 0.0
        %522 = vmatprep.subr.mxu0 0.0
        %523 = vmatpush1.msra.mxu0 0.0
        %524 = vmatprep.subr.mxu0 0.0
        %525 = vmatpush1.msra.mxu0 0.0
        %526 = vmatprep.subr.mxu0 0.0
        %527 = vmatpush1.msra.mxu0 %v469
        %528 = vmatprep.subr.mxu0 0.0
        %529 = vmatpush1.msra.mxu0 %v468
        %530 = vmatprep.subr.mxu0 0.0
        %531 = vmatpush1.msra.mxu0 %v467
        %532 = vmatprep.subr.mxu0 0.0
        %533 = vmatpush1.msra.mxu0 %v466
        %534 = vmatprep.subr.mxu0 0.0
        %535 = vmatpush2.msra.mxu0 0.0
        %536 = vmatprep.subr.mxu0 0.0
        %537 = vmatpush2.msra.mxu0 0.0
        %538 = vmatprep.subr.mxu0 0.0
        %539 = vmatpush2.msra.mxu0 0.0
        %540 = vmatprep.subr.mxu0 0.0
        %541 = vmatpush2.msra.mxu0 0.0
        %542 = vmatprep.subr.mxu0 0.0
        %543 = vmatpush2.msra.mxu0 0.0
        %544 = vmatprep.subr.mxu0 0.0
        %545 = vmatpush2.msra.mxu0 0.0
        %546 = vmatprep.subr.mxu0 0.0
        %547 = vmatpush2.msra.mxu0 0.0
        %548 = vmatprep.subr.mxu0 0.0
        %549 = vmatpush2.msra.mxu0 0.0
        %550 = vmatprep.subr.mxu0 0.0
        %551 = vmatpush2.msra.mxu0 0.0
        %552 = vmatprep.subr.mxu0 0.0
        %553 = vmatpush2.msra.mxu0 0.0
        %554 = vmatprep.subr.mxu0 0.0
        %555 = vmatpush2.msra.mxu0 0.0
        %556 = vmatprep.subr.mxu0 0.0
        %557 = vmatpush2.msra.mxu0 0.0
        %558 = vmatprep.subr.mxu0 0.0
        %559 = vmatpush2.msra.mxu0 0.0
        %560 = vmatprep.subr.mxu0 0.0
        %561 = vmatpush2.msra.mxu0 0.0
        %562 = vmatprep.subr.mxu0 0.0
        %563 = vmatpush2.msra.mxu0 0.0
        %564 = vmatprep.subr.mxu0 0.0
        %565 = vmatpush2.msra.mxu0 0.0
        %566 = vmatprep.mubr.f32.mxu0 0.0
        %567 = vmatmul.mubr.f32.gmra.mxu0 %v479
        %v568 = vpop.f32.mrf.mxu0
        %v569 = vadd.f32 %v475, %v568
        %v570 = vpop.f32.mrf.mxu0
        %571 = vmatprep.mubr.f32.mxu0 0.0
        %572 = vmatmul.mubr.f32.gmra.mxu0 %v482
        %v573 = vpop.f32.mrf.mxu0
        %v574 = vadd.f32 %v475, %v573
        %v575 = vpop.f32.mrf.mxu0
        %576 = vmatprep.mubr.f32.mxu0 0.0
        %577 = vmatmul.mubr.f32.gmra.mxu0 %v485
        %v578 = vpop.f32.mrf.mxu0
        %v579 = vadd.f32 %v475, %v578
        %v580 = vpop.f32.mrf.mxu0
        %581 = vmatprep.mubr.f32.mxu0 0.0
        %582 = vmatmul.mubr.f32.gmra.mxu0 %v488
        %v583 = vpop.f32.mrf.mxu0
        %v584 = vadd.f32 %v475, %v583
        %v585 = vpop.f32.mrf.mxu0
        %586 = vmatprep.mubr.f32.mxu0 0.0
        %587 = vmatmul.mubr.f32.gmra.mxu0 %v491
        %v588 = vpop.f32.mrf.mxu0
        %v589 = vadd.f32 %v475, %v588
        %v590 = vpop.f32.mrf.mxu0
        %591 = vmatprep.mubr.f32.mxu0 0.0
        %592 = vmatmul.mubr.f32.gmra.mxu0 %v494
        %v593 = vpop.f32.mrf.mxu0
        %v594 = vadd.f32 %v475, %v593
        %v595 = vpop.f32.mrf.mxu0
        %596 = vmatprep.mubr.f32.mxu0 0.0
        %597 = vmatmul.mubr.f32.gmra.mxu0 %v497
        %v598 = vpop.f32.mrf.mxu0
        %v599 = vadd.f32 %v475, %v598
        %v600 = vpop.f32.mrf.mxu0
        %601 = vmatprep.mubr.f32.mxu0 0.0
        %602 = vmatmul.mubr.f32.gmra.mxu0 %v500
        %v603 = vpop.f32.mrf.mxu0
        %v604 = vadd.f32 %v475, %v603
        %v605 = vpop.f32.mrf.mxu0
        %606 = vdwg.mxu0
        %v607 = vld [vmem:[%s3] sm:$0xff]
        %v608 = vld [vmem:[%s3 + $0x8] sm:$0xff]
        %v609 = vld [vmem:[%s3 + $0x10] sm:$0xff]
        %v610 = vld [vmem:[%s3 + $0x18] sm:$0xff]
        %v611 = vld [vmem:[%s6] sm:$0x1]
        %v613 = vlaneseq
        %v614 = vshrl.u32 %v613, 7
        %v615 = vsub.s32 0, %v614
        %v616 = vrot.slane %v611, %v615
        %v619 = vsel %vm477, %v569, 0
        %v622 = vsel %vm477, %v574, 0
        %v625 = vsel %vm477, %v579, 0
        %v628 = vsel %vm477, %v584, 0
        %v631 = vsel %vm477, %v589, 0
        %v634 = vsel %vm477, %v594, 0
        %v637 = vsel %vm477, %v599, 0
        %v640 = vsel %vm477, %v604, 0
        %642 = vmatprep.subr.mxu0 0.0
        %643 = vmatpush1.msra.mxu0 0.0
        %644 = vmatprep.subr.mxu0 0.0
        %645 = vmatpush1.msra.mxu0 0.0
        %646 = vmatprep.subr.mxu0 0.0
        %647 = vmatpush1.msra.mxu0 0.0
        %648 = vmatprep.subr.mxu0 0.0
        %649 = vmatpush1.msra.mxu0 0.0
        %650 = vmatprep.subr.mxu0 0.0
        %651 = vmatpush1.msra.mxu0 0.0
        %652 = vmatprep.subr.mxu0 0.0
        %653 = vmatpush1.msra.mxu0 0.0
        %654 = vmatprep.subr.mxu0 0.0
        %655 = vmatpush1.msra.mxu0 0.0
        %656 = vmatprep.subr.mxu0 0.0
        %657 = vmatpush1.msra.mxu0 0.0
        %658 = vmatprep.subr.mxu0 0.0
        %659 = vmatpush1.msra.mxu0 0.0
        %660 = vmatprep.subr.mxu0 0.0
        %661 = vmatpush1.msra.mxu0 0.0
        %662 = vmatprep.subr.mxu0 0.0
        %663 = vmatpush1.msra.mxu0 0.0
        %664 = vmatprep.subr.mxu0 0.0
        %665 = vmatpush1.msra.mxu0 0.0
        %666 = vmatprep.subr.mxu0 0.0
        %667 = vmatpush1.msra.mxu0 %v610
        %668 = vmatprep.subr.mxu0 0.0
        %669 = vmatpush1.msra.mxu0 %v609
        %670 = vmatprep.subr.mxu0 0.0
        %671 = vmatpush1.msra.mxu0 %v608
        %672 = vmatprep.subr.mxu0 0.0
        %673 = vmatpush1.msra.mxu0 %v607
        %674 = vmatprep.subr.mxu0 0.0
        %675 = vmatpush2.msra.mxu0 0.0
        %676 = vmatprep.subr.mxu0 0.0
        %677 = vmatpush2.msra.mxu0 0.0
        %678 = vmatprep.subr.mxu0 0.0
        %679 = vmatpush2.msra.mxu0 0.0
        %680 = vmatprep.subr.mxu0 0.0
        %681 = vmatpush2.msra.mxu0 0.0
        %682 = vmatprep.subr.mxu0 0.0
        %683 = vmatpush2.msra.mxu0 0.0
        %684 = vmatprep.subr.mxu0 0.0
        %685 = vmatpush2.msra.mxu0 0.0
        %686 = vmatprep.subr.mxu0 0.0
        %687 = vmatpush2.msra.mxu0 0.0
        %688 = vmatprep.subr.mxu0 0.0
        %689 = vmatpush2.msra.mxu0 0.0
        %690 = vmatprep.subr.mxu0 0.0
        %691 = vmatpush2.msra.mxu0 0.0
        %692 = vmatprep.subr.mxu0 0.0
        %693 = vmatpush2.msra.mxu0 0.0
        %694 = vmatprep.subr.mxu0 0.0
        %695 = vmatpush2.msra.mxu0 0.0
        %696 = vmatprep.subr.mxu0 0.0
        %697 = vmatpush2.msra.mxu0 0.0
        %698 = vmatprep.subr.mxu0 0.0
        %699 = vmatpush2.msra.mxu0 0.0
        %700 = vmatprep.subr.mxu0 0.0
        %701 = vmatpush2.msra.mxu0 0.0
        %702 = vmatprep.subr.mxu0 0.0
        %703 = vmatpush2.msra.mxu0 0.0
        %704 = vmatprep.subr.mxu0 0.0
        %705 = vmatpush2.msra.mxu0 0.0
        %706 = vmatprep.mubr.f32.mxu0 0.0
        %707 = vmatmul.mubr.f32.gmra.mxu0 %v619
        %v708 = vpop.f32.mrf.mxu0
        %v709 = vadd.f32 %v616, %v708
        %v710 = vpop.f32.mrf.mxu0
        %711 = vmatprep.mubr.f32.mxu0 0.0
        %712 = vmatmul.mubr.f32.gmra.mxu0 %v622
        %v713 = vpop.f32.mrf.mxu0
        %v714 = vadd.f32 %v616, %v713
        %v715 = vpop.f32.mrf.mxu0
        %716 = vmatprep.mubr.f32.mxu0 0.0
        %717 = vmatmul.mubr.f32.gmra.mxu0 %v625
        %v718 = vpop.f32.mrf.mxu0
        %v719 = vadd.f32 %v616, %v718
        %v720 = vpop.f32.mrf.mxu0
        %721 = vmatprep.mubr.f32.mxu0 0.0
        %722 = vmatmul.mubr.f32.gmra.mxu0 %v628
        %v723 = vpop.f32.mrf.mxu0
        %v724 = vadd.f32 %v616, %v723
        %v725 = vpop.f32.mrf.mxu0
        %726 = vmatprep.mubr.f32.mxu0 0.0
        %727 = vmatmul.mubr.f32.gmra.mxu0 %v631
        %v728 = vpop.f32.mrf.mxu0
        %v729 = vadd.f32 %v616, %v728
        %v730 = vpop.f32.mrf.mxu0
        %731 = vmatprep.mubr.f32.mxu0 0.0
        %732 = vmatmul.mubr.f32.gmra.mxu0 %v634
        %v733 = vpop.f32.mrf.mxu0
        %v734 = vadd.f32 %v616, %v733
        %v735 = vpop.f32.mrf.mxu0
        %736 = vmatprep.mubr.f32.mxu0 0.0
        %737 = vmatmul.mubr.f32.gmra.mxu0 %v637
        %v738 = vpop.f32.mrf.mxu0
        %v739 = vadd.f32 %v616, %v738
        %v740 = vpop.f32.mrf.mxu0
        %741 = vmatprep.mubr.f32.mxu0 0.0
        %742 = vmatmul.mubr.f32.gmra.mxu0 %v640
        %v743 = vpop.f32.mrf.mxu0
        %v744 = vadd.f32 %v616, %v743
        %v745 = vpop.f32.mrf.mxu0
        %746 = vdwg.mxu0
        %v747 = vld [vmem:[%s4] sm:$0xff]
        %v748 = vld [vmem:[%s4 + $0x8] sm:$0xff]
        %v749 = vld [vmem:[%s4 + $0x10] sm:$0xff]
        %v750 = vld [vmem:[%s4 + $0x18] sm:$0xff]
        %v751 = vld [vmem:[%s8] sm:$0x1]
        %v752 = vmul.f32 %v751, 0.0
        %v754 = vlaneseq
        %v755 = vshrl.u32 %v754, 7
        %v756 = vsub.s32 0, %v755
        %v757 = vrot.slane %v752, %v756
        %759 = vmatprep.subr.mxu0 0.0
        %760 = vmatpush1.msra.mxu0 0.0
        %761 = vmatprep.subr.mxu0 0.0
        %762 = vmatpush1.msra.mxu0 0.0
        %763 = vmatprep.subr.mxu0 0.0
        %764 = vmatpush1.msra.mxu0 0.0
        %765 = vmatprep.subr.mxu0 0.0
        %766 = vmatpush1.msra.mxu0 0.0
        %767 = vmatprep.subr.mxu0 0.0
        %768 = vmatpush1.msra.mxu0 0.0
        %769 = vmatprep.subr.mxu0 0.0
        %770 = vmatpush1.msra.mxu0 0.0
        %771 = vmatprep.subr.mxu0 0.0
        %772 = vmatpush1.msra.mxu0 0.0
        %773 = vmatprep.subr.mxu0 0.0
        %774 = vmatpush1.msra.mxu0 0.0
        %775 = vmatprep.subr.mxu0 0.0
        %776 = vmatpush1.msra.mxu0 0.0
        %777 = vmatprep.subr.mxu0 0.0
        %778 = vmatpush1.msra.mxu0 0.0
        %779 = vmatprep.subr.mxu0 0.0
        %780 = vmatpush1.msra.mxu0 0.0
        %781 = vmatprep.subr.mxu0 0.0
        %782 = vmatpush1.msra.mxu0 0.0
        %783 = vmatprep.subr.mxu0 0.0
        %784 = vmatpush1.msra.mxu0 %v750
        %785 = vmatprep.subr.mxu0 0.0
        %786 = vmatpush1.msra.mxu0 %v749
        %787 = vmatprep.subr.mxu0 0.0
        %788 = vmatpush1.msra.mxu0 %v748
        %789 = vmatprep.subr.mxu0 0.0
        %790 = vmatpush1.msra.mxu0 %v747
        %791 = vmatprep.subr.mxu0 0.0
        %792 = vmatpush2.msra.mxu0 0.0
        %793 = vmatprep.subr.mxu0 0.0
        %794 = vmatpush2.msra.mxu0 0.0
        %795 = vmatprep.subr.mxu0 0.0
        %796 = vmatpush2.msra.mxu0 0.0
        %797 = vmatprep.subr.mxu0 0.0
        %798 = vmatpush2.msra.mxu0 0.0
        %799 = vmatprep.subr.mxu0 0.0
        %800 = vmatpush2.msra.mxu0 0.0
        %801 = vmatprep.subr.mxu0 0.0
        %802 = vmatpush2.msra.mxu0 0.0
        %803 = vmatprep.subr.mxu0 0.0
        %804 = vmatpush2.msra.mxu0 0.0
        %805 = vmatprep.subr.mxu0 0.0
        %806 = vmatpush2.msra.mxu0 0.0
        %807 = vmatprep.subr.mxu0 0.0
        %808 = vmatpush2.msra.mxu0 0.0
        %809 = vmatprep.subr.mxu0 0.0
        %810 = vmatpush2.msra.mxu0 0.0
        %811 = vmatprep.subr.mxu0 0.0
        %812 = vmatpush2.msra.mxu0 0.0
        %813 = vmatprep.subr.mxu0 0.0
        %814 = vmatpush2.msra.mxu0 0.0
        %815 = vmatprep.subr.mxu0 0.0
        %816 = vmatpush2.msra.mxu0 0.0
        %817 = vmatprep.subr.mxu0 0.0
        %818 = vmatpush2.msra.mxu0 0.0
        %819 = vmatprep.subr.mxu0 0.0
        %820 = vmatpush2.msra.mxu0 0.0
        %821 = vmatprep.subr.mxu0 0.0
        %822 = vmatpush2.msra.mxu0 0.0
        %823 = vmatprep.mubr.f32.mxu0 0.0
        %824 = vmatmul.mubr.f32.gmra.mxu0 %v619
        %v825 = vpop.f32.mrf.mxu0
        %v826 = vadd.f32 %v757, %v825
        %v827 = vpop.f32.mrf.mxu0
        %828 = vmatprep.mubr.f32.mxu0 0.0
        %829 = vmatmul.mubr.f32.gmra.mxu0 %v622
        %v830 = vpop.f32.mrf.mxu0
        %v831 = vadd.f32 %v757, %v830
        %v832 = vpop.f32.mrf.mxu0
        %833 = vmatprep.mubr.f32.mxu0 0.0
        %834 = vmatmul.mubr.f32.gmra.mxu0 %v625
        %v835 = vpop.f32.mrf.mxu0
        %v836 = vadd.f32 %v757, %v835
        %v837 = vpop.f32.mrf.mxu0
        %838 = vmatprep.mubr.f32.mxu0 0.0
        %839 = vmatmul.mubr.f32.gmra.mxu0 %v628
        %v840 = vpop.f32.mrf.mxu0
        %v841 = vadd.f32 %v757, %v840
        %v842 = vpop.f32.mrf.mxu0
        %843 = vmatprep.mubr.f32.mxu0 0.0
        %844 = vmatmul.mubr.f32.gmra.mxu0 %v631
        %v845 = vpop.f32.mrf.mxu0
        %v846 = vadd.f32 %v757, %v845
        %v847 = vpop.f32.mrf.mxu0
        %848 = vmatprep.mubr.f32.mxu0 0.0
        %849 = vmatmul.mubr.f32.gmra.mxu0 %v634
        %v850 = vpop.f32.mrf.mxu0
        %v851 = vadd.f32 %v757, %v850
        %v852 = vpop.f32.mrf.mxu0
        %853 = vmatprep.mubr.f32.mxu0 0.0
        %854 = vmatmul.mubr.f32.gmra.mxu0 %v637
        %v855 = vpop.f32.mrf.mxu0
        %v856 = vadd.f32 %v757, %v855
        %v857 = vpop.f32.mrf.mxu0
        %858 = vmatprep.mubr.f32.mxu0 0.0
        %859 = vmatmul.mubr.f32.gmra.mxu0 %v640
        %v860 = vpop.f32.mrf.mxu0
        %v861 = vadd.f32 %v757, %v860
        %v862 = vpop.f32.mrf.mxu0
        %863 = vdwg.mxu0
        %v864 = vld [vmem:[%s7] sm:$0x1]
        %v866 = vlaneseq
        %v867 = vshrl.u32 %v866, 7
        %v868 = vsub.s32 0, %v867
        %v869 = vrot.slane %v864, %v868
        %v871 = vadd.f32 %v826, %v869
        %v872 = vadd.f32 %v831, %v869
        %v873 = vadd.f32 %v836, %v869
        %v874 = vadd.f32 %v841, %v869
        %v875 = vadd.f32 %v846, %v869
        %v876 = vadd.f32 %v851, %v869
        %v877 = vadd.f32 %v856, %v869
        %v878 = vadd.f32 %v861, %v869
        %v879 = vld [vmem:[%s5] sm:$0xff]
        %v880 = vld [vmem:[%s5 + $0x8] sm:$0xff]
        %v881 = vld [vmem:[%s5 + $0x10] sm:$0xff]
        %v882 = vld [vmem:[%s5 + $0x18] sm:$0xff]
        %v884 = vlaneseq
        %v885 = vshrl.u32 %v884, 7
        %v886 = vsub.s32 0, %v885
        %v887 = vrot.slane %v751, %v886
        %889 = vmatprep.subr.mxu0 0.0
        %890 = vmatpush1.msra.mxu0 0.0
        %891 = vmatprep.subr.mxu0 0.0
        %892 = vmatpush1.msra.mxu0 0.0
        %893 = vmatprep.subr.mxu0 0.0
        %894 = vmatpush1.msra.mxu0 0.0
        %895 = vmatprep.subr.mxu0 0.0
        %896 = vmatpush1.msra.mxu0 0.0
        %897 = vmatprep.subr.mxu0 0.0
        %898 = vmatpush1.msra.mxu0 0.0
        %899 = vmatprep.subr.mxu0 0.0
        %900 = vmatpush1.msra.mxu0 0.0
        %901 = vmatprep.subr.mxu0 0.0
        %902 = vmatpush1.msra.mxu0 0.0
        %903 = vmatprep.subr.mxu0 0.0
        %904 = vmatpush1.msra.mxu0 0.0
        %905 = vmatprep.subr.mxu0 0.0
        %906 = vmatpush1.msra.mxu0 0.0
        %907 = vmatprep.subr.mxu0 0.0
        %908 = vmatpush1.msra.mxu0 0.0
        %909 = vmatprep.subr.mxu0 0.0
        %910 = vmatpush1.msra.mxu0 0.0
        %911 = vmatprep.subr.mxu0 0.0
        %912 = vmatpush1.msra.mxu0 0.0
        %913 = vmatprep.subr.mxu0 0.0
        %914 = vmatpush1.msra.mxu0 %v882
        %915 = vmatprep.subr.mxu0 0.0
        %916 = vmatpush1.msra.mxu0 %v881
        %917 = vmatprep.subr.mxu0 0.0
        %918 = vmatpush1.msra.mxu0 %v880
        %919 = vmatprep.subr.mxu0 0.0
        %920 = vmatpush1.msra.mxu0 %v879
        %921 = vmatprep.subr.mxu0 0.0
        %922 = vmatpush2.msra.mxu0 0.0
        %923 = vmatprep.subr.mxu0 0.0
        %924 = vmatpush2.msra.mxu0 0.0
        %925 = vmatprep.subr.mxu0 0.0
        %926 = vmatpush2.msra.mxu0 0.0
        %927 = vmatprep.subr.mxu0 0.0
        %928 = vmatpush2.msra.mxu0 0.0
        %929 = vmatprep.subr.mxu0 0.0
        %930 = vmatpush2.msra.mxu0 0.0
        %931 = vmatprep.subr.mxu0 0.0
        %932 = vmatpush2.msra.mxu0 0.0
        %933 = vmatprep.subr.mxu0 0.0
        %934 = vmatpush2.msra.mxu0 0.0
        %935 = vmatprep.subr.mxu0 0.0
        %936 = vmatpush2.msra.mxu0 0.0
        %937 = vmatprep.subr.mxu0 0.0
        %938 = vmatpush2.msra.mxu0 0.0
        %939 = vmatprep.subr.mxu0 0.0
        %940 = vmatpush2.msra.mxu0 0.0
        %941 = vmatprep.subr.mxu0 0.0
        %942 = vmatpush2.msra.mxu0 0.0
        %943 = vmatprep.subr.mxu0 0.0
        %944 = vmatpush2.msra.mxu0 0.0
        %945 = vmatprep.subr.mxu0 0.0
        %946 = vmatpush2.msra.mxu0 0.0
        %947 = vmatprep.subr.mxu0 0.0
        %948 = vmatpush2.msra.mxu0 0.0
        %949 = vmatprep.subr.mxu0 0.0
        %950 = vmatpush2.msra.mxu0 0.0
        %951 = vmatprep.subr.mxu0 0.0
        %952 = vmatpush2.msra.mxu0 0.0
        %953 = vmatprep.mubr.f32.mxu0 0.0
        %954 = vmatmul.mubr.f32.gmra.mxu0 %v619
        %v955 = vpop.f32.mrf.mxu0
        %v956 = vadd.f32 %v887, %v955
        %v957 = vpop.f32.mrf.mxu0
        %958 = vmatprep.mubr.f32.mxu0 0.0
        %959 = vmatmul.mubr.f32.gmra.mxu0 %v622
        %v960 = vpop.f32.mrf.mxu0
        %v961 = vadd.f32 %v887, %v960
        %v962 = vpop.f32.mrf.mxu0
        %963 = vmatprep.mubr.f32.mxu0 0.0
        %964 = vmatmul.mubr.f32.gmra.mxu0 %v625
        %v965 = vpop.f32.mrf.mxu0
        %v966 = vadd.f32 %v887, %v965
        %v967 = vpop.f32.mrf.mxu0
        %968 = vmatprep.mubr.f32.mxu0 0.0
        %969 = vmatmul.mubr.f32.gmra.mxu0 %v628
        %v970 = vpop.f32.mrf.mxu0
        %v971 = vadd.f32 %v887, %v970
        %v972 = vpop.f32.mrf.mxu0
        %973 = vmatprep.mubr.f32.mxu0 0.0
        %974 = vmatmul.mubr.f32.gmra.mxu0 %v631
        %v975 = vpop.f32.mrf.mxu0
        %v976 = vadd.f32 %v887, %v975
        %v977 = vpop.f32.mrf.mxu0
        %978 = vmatprep.mubr.f32.mxu0 0.0
        %979 = vmatmul.mubr.f32.gmra.mxu0 %v634
        %v980 = vpop.f32.mrf.mxu0
        %v981 = vadd.f32 %v887, %v980
        %v982 = vpop.f32.mrf.mxu0
        %983 = vmatprep.mubr.f32.mxu0 0.0
        %984 = vmatmul.mubr.f32.gmra.mxu0 %v637
        %v985 = vpop.f32.mrf.mxu0
        %v986 = vadd.f32 %v887, %v985
        %v987 = vpop.f32.mrf.mxu0
        %988 = vmatprep.mubr.f32.mxu0 0.0
        %989 = vmatmul.mubr.f32.gmra.mxu0 %v640
        %v990 = vpop.f32.mrf.mxu0
        %v991 = vadd.f32 %v887, %v990
        %v992 = vpop.f32.mrf.mxu0
        %993 = vdwg.mxu0
        %1002 = vrot.lane.b32.xlu0 %v709, 120
        %v1003 = vpop.permute.xlu0 %1002
        %1004 = vrot.lane.b32.xlu0 %v714, 120
        %v1005 = vpop.permute.xlu0 %1004
        %1006 = vrot.lane.b32.xlu0 %v719, 120
        %v1007 = vpop.permute.xlu0 %1006
        %1008 = vrot.lane.b32.xlu0 %v724, 120
        %v1009 = vpop.permute.xlu0 %1008
        %1010 = vrot.lane.b32.xlu0 %v729, 120
        %v1011 = vpop.permute.xlu0 %1010
        %1012 = vrot.lane.b32.xlu0 %v734, 120
        %v1013 = vpop.permute.xlu0 %1012
        %1014 = vrot.lane.b32.xlu0 %v739, 120
        %v1015 = vpop.permute.xlu0 %1014
        %1016 = vrot.lane.b32.xlu0 %v744, 120
        %v1017 = vpop.permute.xlu0 %1016
        %1018 = vrot.lane.b32.xlu0 %v709, 112
        %v1019 = vpop.permute.xlu0 %1018
        %1020 = vrot.lane.b32.xlu0 %v714, 112
        %v1021 = vpop.permute.xlu0 %1020
        %1022 = vrot.lane.b32.xlu0 %v719, 112
        %v1023 = vpop.permute.xlu0 %1022
        %1024 = vrot.lane.b32.xlu0 %v724, 112
        %v1025 = vpop.permute.xlu0 %1024
        %1026 = vrot.lane.b32.xlu0 %v729, 112
        %v1027 = vpop.permute.xlu0 %1026
        %1028 = vrot.lane.b32.xlu0 %v734, 112
        %v1029 = vpop.permute.xlu0 %1028
        %1030 = vrot.lane.b32.xlu0 %v739, 112
        %v1031 = vpop.permute.xlu0 %1030
        %1032 = vrot.lane.b32.xlu0 %v744, 112
        %v1033 = vpop.permute.xlu0 %1032
        %1034 = vrot.lane.b32.xlu0 %v709, 104
        %v1035 = vpop.permute.xlu0 %1034
        %1036 = vrot.lane.b32.xlu0 %v714, 104
        %v1037 = vpop.permute.xlu0 %1036
        %1038 = vrot.lane.b32.xlu0 %v719, 104
        %v1039 = vpop.permute.xlu0 %1038
        %1040 = vrot.lane.b32.xlu0 %v724, 104
        %v1041 = vpop.permute.xlu0 %1040
        %1042 = vrot.lane.b32.xlu0 %v729, 104
        %v1043 = vpop.permute.xlu0 %1042
        %1044 = vrot.lane.b32.xlu0 %v734, 104
        %v1045 = vpop.permute.xlu0 %1044
        %1046 = vrot.lane.b32.xlu0 %v739, 104
        %v1047 = vpop.permute.xlu0 %1046
        %1048 = vrot.lane.b32.xlu0 %v744, 104
        %v1049 = vpop.permute.xlu0 %1048
        %1058 = vrot.lane.b32.xlu0 %v871, 120
        %v1059 = vpop.permute.xlu0 %1058
        %1060 = vrot.lane.b32.xlu0 %v872, 120
        %v1061 = vpop.permute.xlu0 %1060
        %1062 = vrot.lane.b32.xlu0 %v873, 120
        %v1063 = vpop.permute.xlu0 %1062
        %1064 = vrot.lane.b32.xlu0 %v874, 120
        %v1065 = vpop.permute.xlu0 %1064
        %1066 = vrot.lane.b32.xlu0 %v875, 120
        %v1067 = vpop.permute.xlu0 %1066
        %1068 = vrot.lane.b32.xlu0 %v876, 120
        %v1069 = vpop.permute.xlu0 %1068
        %1070 = vrot.lane.b32.xlu0 %v877, 120
        %v1071 = vpop.permute.xlu0 %1070
        %1072 = vrot.lane.b32.xlu0 %v878, 120
        %v1073 = vpop.permute.xlu0 %1072
        %1074 = vrot.lane.b32.xlu0 %v871, 112
        %v1075 = vpop.permute.xlu0 %1074
        %1076 = vrot.lane.b32.xlu0 %v872, 112
        %v1077 = vpop.permute.xlu0 %1076
        %1078 = vrot.lane.b32.xlu0 %v873, 112
        %v1079 = vpop.permute.xlu0 %1078
        %1080 = vrot.lane.b32.xlu0 %v874, 112
        %v1081 = vpop.permute.xlu0 %1080
        %1082 = vrot.lane.b32.xlu0 %v875, 112
        %v1083 = vpop.permute.xlu0 %1082
        %1084 = vrot.lane.b32.xlu0 %v876, 112
        %v1085 = vpop.permute.xlu0 %1084
        %1086 = vrot.lane.b32.xlu0 %v877, 112
        %v1087 = vpop.permute.xlu0 %1086
        %1088 = vrot.lane.b32.xlu0 %v878, 112
        %v1089 = vpop.permute.xlu0 %1088
        %1090 = vrot.lane.b32.xlu0 %v871, 104
        %v1091 = vpop.permute.xlu0 %1090
        %1092 = vrot.lane.b32.xlu0 %v872, 104
        %v1093 = vpop.permute.xlu0 %1092
        %1094 = vrot.lane.b32.xlu0 %v873, 104
        %v1095 = vpop.permute.xlu0 %1094
        %1096 = vrot.lane.b32.xlu0 %v874, 104
        %v1097 = vpop.permute.xlu0 %1096
        %1098 = vrot.lane.b32.xlu0 %v875, 104
        %v1099 = vpop.permute.xlu0 %1098
        %1100 = vrot.lane.b32.xlu0 %v876, 104
        %v1101 = vpop.permute.xlu0 %1100
        %1102 = vrot.lane.b32.xlu0 %v877, 104
        %v1103 = vpop.permute.xlu0 %1102
        %1104 = vrot.lane.b32.xlu0 %v878, 104
        %v1105 = vpop.permute.xlu0 %1104
        %1114 = vrot.lane.b32.xlu0 %v956, 120
        %v1115 = vpop.permute.xlu0 %1114
        %1116 = vrot.lane.b32.xlu0 %v961, 120
        %v1117 = vpop.permute.xlu0 %1116
        %1118 = vrot.lane.b32.xlu0 %v966, 120
        %v1119 = vpop.permute.xlu0 %1118
        %1120 = vrot.lane.b32.xlu0 %v971, 120
        %v1121 = vpop.permute.xlu0 %1120
        %1122 = vrot.lane.b32.xlu0 %v976, 120
        %v1123 = vpop.permute.xlu0 %1122
        %1124 = vrot.lane.b32.xlu0 %v981, 120
        %v1125 = vpop.permute.xlu0 %1124
        %1126 = vrot.lane.b32.xlu0 %v986, 120
        %v1127 = vpop.permute.xlu0 %1126
        %1128 = vrot.lane.b32.xlu0 %v991, 120
        %v1129 = vpop.permute.xlu0 %1128
        %1138 = vrot.lane.b32.xlu0 %v956, 112
        %v1139 = vpop.permute.xlu0 %1138
        %1140 = vrot.lane.b32.xlu0 %v961, 112
        %v1141 = vpop.permute.xlu0 %1140
        %1142 = vrot.lane.b32.xlu0 %v966, 112
        %v1143 = vpop.permute.xlu0 %1142
        %1144 = vrot.lane.b32.xlu0 %v971, 112
        %v1145 = vpop.permute.xlu0 %1144
        %1146 = vrot.lane.b32.xlu0 %v976, 112
        %v1147 = vpop.permute.xlu0 %1146
        %1148 = vrot.lane.b32.xlu0 %v981, 112
        %v1149 = vpop.permute.xlu0 %1148
        %1150 = vrot.lane.b32.xlu0 %v986, 112
        %v1151 = vpop.permute.xlu0 %1150
        %1152 = vrot.lane.b32.xlu0 %v991, 112
        %v1153 = vpop.permute.xlu0 %1152
        %1162 = vrot.lane.b32.xlu0 %v956, 104
        %v1163 = vpop.permute.xlu0 %1162
        %1164 = vrot.lane.b32.xlu0 %v961, 104
        %v1165 = vpop.permute.xlu0 %1164
        %1166 = vrot.lane.b32.xlu0 %v966, 104
        %v1167 = vpop.permute.xlu0 %1166
        %1168 = vrot.lane.b32.xlu0 %v971, 104
        %v1169 = vpop.permute.xlu0 %1168
        %1170 = vrot.lane.b32.xlu0 %v976, 104
        %v1171 = vpop.permute.xlu0 %1170
        %1172 = vrot.lane.b32.xlu0 %v981, 104
        %v1173 = vpop.permute.xlu0 %1172
        %1174 = vrot.lane.b32.xlu0 %v986, 104
        %v1175 = vpop.permute.xlu0 %1174
        %1176 = vrot.lane.b32.xlu0 %v991, 104
        %v1177 = vpop.permute.xlu0 %1176
        %vm1186 = vcmask 64512
        %v1187 = vsel %vm1186, %v709, 0
        %v1189 = vsel %vm1186, %v714, 0
        %v1191 = vsel %vm1186, %v719, 0
        %v1193 = vsel %vm1186, %v724, 0
        %v1195 = vsel %vm1186, %v729, 0
        %v1197 = vsel %vm1186, %v734, 0
        %v1199 = vsel %vm1186, %v739, 0
        %v1201 = vsel %vm1186, %v744, 0
        %v1203 = vsel %vm1186, %v871, 0
        %v1205 = vsel %vm1186, %v872, 0
        %v1207 = vsel %vm1186, %v873, 0
        %v1209 = vsel %vm1186, %v874, 0
        %v1211 = vsel %vm1186, %v875, 0
        %v1213 = vsel %vm1186, %v876, 0
        %v1215 = vsel %vm1186, %v877, 0
        %v1217 = vsel %vm1186, %v878, 0
        %1219 = vmatprep.subr.mxu0 0.0
        %1220 = vmatpush1.xpose.msra.mxu0 0.0
        %1221 = vmatprep.subr.mxu0 0.0
        %1222 = vmatpush1.xpose.msra.mxu0 0.0
        %1223 = vmatprep.subr.mxu0 0.0
        %1224 = vmatpush1.xpose.msra.mxu0 0.0
        %1225 = vmatprep.subr.mxu0 0.0
        %1226 = vmatpush1.xpose.msra.mxu0 0.0
        %1227 = vmatprep.subr.mxu0 0.0
        %1228 = vmatpush1.xpose.msra.mxu0 0.0
        %1229 = vmatprep.subr.mxu0 0.0
        %1230 = vmatpush1.xpose.msra.mxu0 0.0
        %1231 = vmatprep.subr.mxu0 0.0
        %1232 = vmatpush1.xpose.msra.mxu0 0.0
        %1233 = vmatprep.subr.mxu0 0.0
        %1234 = vmatpush1.xpose.msra.mxu0 0.0
        %1235 = vmatprep.subr.mxu0 0.0
        %1236 = vmatpush1.xpose.msra.mxu0 %v1217
        %1237 = vmatprep.subr.mxu0 0.0
        %1238 = vmatpush1.xpose.msra.mxu0 %v1215
        %1239 = vmatprep.subr.mxu0 0.0
        %1240 = vmatpush1.xpose.msra.mxu0 %v1213
        %1241 = vmatprep.subr.mxu0 0.0
        %1242 = vmatpush1.xpose.msra.mxu0 %v1211
        %1243 = vmatprep.subr.mxu0 0.0
        %1244 = vmatpush1.xpose.msra.mxu0 %v1209
        %1245 = vmatprep.subr.mxu0 0.0
        %1246 = vmatpush1.xpose.msra.mxu0 %v1207
        %1247 = vmatprep.subr.mxu0 0.0
        %1248 = vmatpush1.xpose.msra.mxu0 %v1205
        %1249 = vmatprep.subr.mxu0 0.0
        %1250 = vmatpush1.xpose.msra.mxu0 %v1203
        %1251 = vmatprep.subr.mxu0 0.0
        %1252 = vmatpush2.xpose.msra.mxu0 0.0
        %1253 = vmatprep.subr.mxu0 0.0
        %1254 = vmatpush2.xpose.msra.mxu0 0.0
        %1255 = vmatprep.subr.mxu0 0.0
        %1256 = vmatpush2.xpose.msra.mxu0 0.0
        %1257 = vmatprep.subr.mxu0 0.0
        %1258 = vmatpush2.xpose.msra.mxu0 0.0
        %1259 = vmatprep.subr.mxu0 0.0
        %1260 = vmatpush2.xpose.msra.mxu0 0.0
        %1261 = vmatprep.subr.mxu0 0.0
        %1262 = vmatpush2.xpose.msra.mxu0 0.0
        %1263 = vmatprep.subr.mxu0 0.0
        %1264 = vmatpush2.xpose.msra.mxu0 0.0
        %1265 = vmatprep.subr.mxu0 0.0
        %1266 = vmatpush2.xpose.msra.mxu0 0.0
        %1267 = vmatprep.subr.mxu0 0.0
        %1268 = vmatpush2.xpose.msra.mxu0 0.0
        %1269 = vmatprep.subr.mxu0 0.0
        %1270 = vmatpush2.xpose.msra.mxu0 0.0
        %1271 = vmatprep.subr.mxu0 0.0
        %1272 = vmatpush2.xpose.msra.mxu0 0.0
        %1273 = vmatprep.subr.mxu0 0.0
        %1274 = vmatpush2.xpose.msra.mxu0 0.0
        %1275 = vmatprep.subr.mxu0 0.0
        %1276 = vmatpush2.xpose.msra.mxu0 0.0
        %1277 = vmatprep.subr.mxu0 0.0
        %1278 = vmatpush2.xpose.msra.mxu0 0.0
        %1279 = vmatprep.subr.mxu0 0.0
        %1280 = vmatpush2.xpose.msra.mxu0 0.0
        %1281 = vmatprep.subr.mxu0 0.0
        %1282 = vmatpush2.xpose.msra.mxu0 0.0
        %1283 = vmatprep.mubr.f32.mxu0 0.0
        %1284 = vmatmul.mubr.f32.gmra.mxu0 %v1187
        %v1285 = vpop.f32.mrf.mxu0
        %v1286 = vadd.f32 0.0, %v1285
        %v1287 = vpop.f32.mrf.mxu0
        %1288 = vmatprep.mubr.f32.mxu0 0.0
        %1289 = vmatmul.mubr.f32.gmra.mxu0 %v1189
        %v1290 = vpop.f32.mrf.mxu0
        %v1291 = vadd.f32 0.0, %v1290
        %v1292 = vpop.f32.mrf.mxu0
        %1293 = vmatprep.mubr.f32.mxu0 0.0
        %1294 = vmatmul.mubr.f32.gmra.mxu0 %v1191
        %v1295 = vpop.f32.mrf.mxu0
        %v1296 = vadd.f32 0.0, %v1295
        %v1297 = vpop.f32.mrf.mxu0
        %1298 = vmatprep.mubr.f32.mxu0 0.0
        %1299 = vmatmul.mubr.f32.gmra.mxu0 %v1193
        %v1300 = vpop.f32.mrf.mxu0
        %v1301 = vadd.f32 0.0, %v1300
        %v1302 = vpop.f32.mrf.mxu0
        %1303 = vmatprep.mubr.f32.mxu0 0.0
        %1304 = vmatmul.mubr.f32.gmra.mxu0 %v1195
        %v1305 = vpop.f32.mrf.mxu0
        %v1306 = vadd.f32 0.0, %v1305
        %v1307 = vpop.f32.mrf.mxu0
        %1308 = vmatprep.mubr.f32.mxu0 0.0
        %1309 = vmatmul.mubr.f32.gmra.mxu0 %v1197
        %v1310 = vpop.f32.mrf.mxu0
        %v1311 = vadd.f32 0.0, %v1310
        %v1312 = vpop.f32.mrf.mxu0
        %1313 = vmatprep.mubr.f32.mxu0 0.0
        %1314 = vmatmul.mubr.f32.gmra.mxu0 %v1199
        %v1315 = vpop.f32.mrf.mxu0
        %v1316 = vadd.f32 0.0, %v1315
        %v1317 = vpop.f32.mrf.mxu0
        %1318 = vmatprep.mubr.f32.mxu0 0.0
        %1319 = vmatmul.mubr.f32.gmra.mxu0 %v1201
        %v1320 = vpop.f32.mrf.mxu0
        %v1321 = vadd.f32 0.0, %v1320
        %v1322 = vpop.f32.mrf.mxu0
        %1323 = vdwg.mxu0
        %v1324 = vsel %vm1186, %v1003, 0
        %v1326 = vsel %vm1186, %v1005, 0
        %v1328 = vsel %vm1186, %v1007, 0
        %v1330 = vsel %vm1186, %v1009, 0
        %v1332 = vsel %vm1186, %v1011, 0
        %v1334 = vsel %vm1186, %v1013, 0
        %v1336 = vsel %vm1186, %v1015, 0
        %v1338 = vsel %vm1186, %v1017, 0
        %v1340 = vsel %vm1186, %v1059, 0
        %v1342 = vsel %vm1186, %v1061, 0
        %v1344 = vsel %vm1186, %v1063, 0
        %v1346 = vsel %vm1186, %v1065, 0
        %v1348 = vsel %vm1186, %v1067, 0
        %v1350 = vsel %vm1186, %v1069, 0
        %v1352 = vsel %vm1186, %v1071, 0
        %v1354 = vsel %vm1186, %v1073, 0
        %1356 = vmatprep.subr.mxu0 0.0
        %1357 = vmatpush1.xpose.msra.mxu0 0.0
        %1358 = vmatprep.subr.mxu0 0.0
        %1359 = vmatpush1.xpose.msra.mxu0 0.0
        %1360 = vmatprep.subr.mxu0 0.0
        %1361 = vmatpush1.xpose.msra.mxu0 0.0
        %1362 = vmatprep.subr.mxu0 0.0
        %1363 = vmatpush1.xpose.msra.mxu0 0.0
        %1364 = vmatprep.subr.mxu0 0.0
        %1365 = vmatpush1.xpose.msra.mxu0 0.0
        %1366 = vmatprep.subr.mxu0 0.0
        %1367 = vmatpush1.xpose.msra.mxu0 0.0
        %1368 = vmatprep.subr.mxu0 0.0
        %1369 = vmatpush1.xpose.msra.mxu0 0.0
        %1370 = vmatprep.subr.mxu0 0.0
        %1371 = vmatpush1.xpose.msra.mxu0 0.0
        %1372 = vmatprep.subr.mxu0 0.0
        %1373 = vmatpush1.xpose.msra.mxu0 %v1354
        %1374 = vmatprep.subr.mxu0 0.0
        %1375 = vmatpush1.xpose.msra.mxu0 %v1352
        %1376 = vmatprep.subr.mxu0 0.0
        %1377 = vmatpush1.xpose.msra.mxu0 %v1350
        %1378 = vmatprep.subr.mxu0 0.0
        %1379 = vmatpush1.xpose.msra.mxu0 %v1348
        %1380 = vmatprep.subr.mxu0 0.0
        %1381 = vmatpush1.xpose.msra.mxu0 %v1346
        %1382 = vmatprep.subr.mxu0 0.0
        %1383 = vmatpush1.xpose.msra.mxu0 %v1344
        %1384 = vmatprep.subr.mxu0 0.0
        %1385 = vmatpush1.xpose.msra.mxu0 %v1342
        %1386 = vmatprep.subr.mxu0 0.0
        %1387 = vmatpush1.xpose.msra.mxu0 %v1340
        %1388 = vmatprep.subr.mxu0 0.0
        %1389 = vmatpush2.xpose.msra.mxu0 0.0
        %1390 = vmatprep.subr.mxu0 0.0
        %1391 = vmatpush2.xpose.msra.mxu0 0.0
        %1392 = vmatprep.subr.mxu0 0.0
        %1393 = vmatpush2.xpose.msra.mxu0 0.0
        %1394 = vmatprep.subr.mxu0 0.0
        %1395 = vmatpush2.xpose.msra.mxu0 0.0
        %1396 = vmatprep.subr.mxu0 0.0
        %1397 = vmatpush2.xpose.msra.mxu0 0.0
        %1398 = vmatprep.subr.mxu0 0.0
        %1399 = vmatpush2.xpose.msra.mxu0 0.0
        %1400 = vmatprep.subr.mxu0 0.0
        %1401 = vmatpush2.xpose.msra.mxu0 0.0
        %1402 = vmatprep.subr.mxu0 0.0
        %1403 = vmatpush2.xpose.msra.mxu0 0.0
        %1404 = vmatprep.subr.mxu0 0.0
        %1405 = vmatpush2.xpose.msra.mxu0 0.0
        %1406 = vmatprep.subr.mxu0 0.0
        %1407 = vmatpush2.xpose.msra.mxu0 0.0
        %1408 = vmatprep.subr.mxu0 0.0
        %1409 = vmatpush2.xpose.msra.mxu0 0.0
        %1410 = vmatprep.subr.mxu0 0.0
        %1411 = vmatpush2.xpose.msra.mxu0 0.0
        %1412 = vmatprep.subr.mxu0 0.0
        %1413 = vmatpush2.xpose.msra.mxu0 0.0
        %1414 = vmatprep.subr.mxu0 0.0
        %1415 = vmatpush2.xpose.msra.mxu0 0.0
        %1416 = vmatprep.subr.mxu0 0.0
        %1417 = vmatpush2.xpose.msra.mxu0 0.0
        %1418 = vmatprep.subr.mxu0 0.0
        %1419 = vmatpush2.xpose.msra.mxu0 0.0
        %1420 = vmatprep.mubr.f32.mxu0 0.0
        %1421 = vmatmul.mubr.f32.gmra.mxu0 %v1324
        %v1422 = vpop.f32.mrf.mxu0
        %v1423 = vadd.f32 0.0, %v1422
        %v1424 = vpop.f32.mrf.mxu0
        %1425 = vmatprep.mubr.f32.mxu0 0.0
        %1426 = vmatmul.mubr.f32.gmra.mxu0 %v1326
        %v1427 = vpop.f32.mrf.mxu0
        %v1428 = vadd.f32 0.0, %v1427
        %v1429 = vpop.f32.mrf.mxu0
        %1430 = vmatprep.mubr.f32.mxu0 0.0
        %1431 = vmatmul.mubr.f32.gmra.mxu0 %v1328
        %v1432 = vpop.f32.mrf.mxu0
        %v1433 = vadd.f32 0.0, %v1432
        %v1434 = vpop.f32.mrf.mxu0
        %1435 = vmatprep.mubr.f32.mxu0 0.0
        %1436 = vmatmul.mubr.f32.gmra.mxu0 %v1330
        %v1437 = vpop.f32.mrf.mxu0
        %v1438 = vadd.f32 0.0, %v1437
        %v1439 = vpop.f32.mrf.mxu0
        %1440 = vmatprep.mubr.f32.mxu0 0.0
        %1441 = vmatmul.mubr.f32.gmra.mxu0 %v1332
        %v1442 = vpop.f32.mrf.mxu0
        %v1443 = vadd.f32 0.0, %v1442
        %v1444 = vpop.f32.mrf.mxu0
        %1445 = vmatprep.mubr.f32.mxu0 0.0
        %1446 = vmatmul.mubr.f32.gmra.mxu0 %v1334
        %v1447 = vpop.f32.mrf.mxu0
        %v1448 = vadd.f32 0.0, %v1447
        %v1449 = vpop.f32.mrf.mxu0
        %1450 = vmatprep.mubr.f32.mxu0 0.0
        %1451 = vmatmul.mubr.f32.gmra.mxu0 %v1336
        %v1452 = vpop.f32.mrf.mxu0
        %v1453 = vadd.f32 0.0, %v1452
        %v1454 = vpop.f32.mrf.mxu0
        %1455 = vmatprep.mubr.f32.mxu0 0.0
        %1456 = vmatmul.mubr.f32.gmra.mxu0 %v1338
        %v1457 = vpop.f32.mrf.mxu0
        %v1458 = vadd.f32 0.0, %v1457
        %v1459 = vpop.f32.mrf.mxu0
        %1460 = vdwg.mxu0
        %v1461 = vsel %vm1186, %v1019, 0
        %v1463 = vsel %vm1186, %v1021, 0
        %v1465 = vsel %vm1186, %v1023, 0
        %v1467 = vsel %vm1186, %v1025, 0
        %v1469 = vsel %vm1186, %v1027, 0
        %v1471 = vsel %vm1186, %v1029, 0
        %v1473 = vsel %vm1186, %v1031, 0
        %v1475 = vsel %vm1186, %v1033, 0
        %v1477 = vsel %vm1186, %v1075, 0
        %v1479 = vsel %vm1186, %v1077, 0
        %v1481 = vsel %vm1186, %v1079, 0
        %v1483 = vsel %vm1186, %v1081, 0
        %v1485 = vsel %vm1186, %v1083, 0
        %v1487 = vsel %vm1186, %v1085, 0
        %v1489 = vsel %vm1186, %v1087, 0
        %v1491 = vsel %vm1186, %v1089, 0
        %1493 = vmatprep.subr.mxu0 0.0
        %1494 = vmatpush1.xpose.msra.mxu0 0.0
        %1495 = vmatprep.subr.mxu0 0.0
        %1496 = vmatpush1.xpose.msra.mxu0 0.0
        %1497 = vmatprep.subr.mxu0 0.0
        %1498 = vmatpush1.xpose.msra.mxu0 0.0
        %1499 = vmatprep.subr.mxu0 0.0
        %1500 = vmatpush1.xpose.msra.mxu0 0.0
        %1501 = vmatprep.subr.mxu0 0.0
        %1502 = vmatpush1.xpose.msra.mxu0 0.0
        %1503 = vmatprep.subr.mxu0 0.0
        %1504 = vmatpush1.xpose.msra.mxu0 0.0
        %1505 = vmatprep.subr.mxu0 0.0
        %1506 = vmatpush1.xpose.msra.mxu0 0.0
        %1507 = vmatprep.subr.mxu0 0.0
        %1508 = vmatpush1.xpose.msra.mxu0 0.0
        %1509 = vmatprep.subr.mxu0 0.0
        %1510 = vmatpush1.xpose.msra.mxu0 %v1491
        %1511 = vmatprep.subr.mxu0 0.0
        %1512 = vmatpush1.xpose.msra.mxu0 %v1489
        %1513 = vmatprep.subr.mxu0 0.0
        %1514 = vmatpush1.xpose.msra.mxu0 %v1487
        %1515 = vmatprep.subr.mxu0 0.0
        %1516 = vmatpush1.xpose.msra.mxu0 %v1485
        %1517 = vmatprep.subr.mxu0 0.0
        %1518 = vmatpush1.xpose.msra.mxu0 %v1483
        %1519 = vmatprep.subr.mxu0 0.0
        %1520 = vmatpush1.xpose.msra.mxu0 %v1481
        %1521 = vmatprep.subr.mxu0 0.0
        %1522 = vmatpush1.xpose.msra.mxu0 %v1479
        %1523 = vmatprep.subr.mxu0 0.0
        %1524 = vmatpush1.xpose.msra.mxu0 %v1477
        %1525 = vmatprep.subr.mxu0 0.0
        %1526 = vmatpush2.xpose.msra.mxu0 0.0
        %1527 = vmatprep.subr.mxu0 0.0
        %1528 = vmatpush2.xpose.msra.mxu0 0.0
        %1529 = vmatprep.subr.mxu0 0.0
        %1530 = vmatpush2.xpose.msra.mxu0 0.0
        %1531 = vmatprep.subr.mxu0 0.0
        %1532 = vmatpush2.xpose.msra.mxu0 0.0
        %1533 = vmatprep.subr.mxu0 0.0
        %1534 = vmatpush2.xpose.msra.mxu0 0.0
        %1535 = vmatprep.subr.mxu0 0.0
        %1536 = vmatpush2.xpose.msra.mxu0 0.0
        %1537 = vmatprep.subr.mxu0 0.0
        %1538 = vmatpush2.xpose.msra.mxu0 0.0
        %1539 = vmatprep.subr.mxu0 0.0
        %1540 = vmatpush2.xpose.msra.mxu0 0.0
        %1541 = vmatprep.subr.mxu0 0.0
        %1542 = vmatpush2.xpose.msra.mxu0 0.0
        %1543 = vmatprep.subr.mxu0 0.0
        %1544 = vmatpush2.xpose.msra.mxu0 0.0
        %1545 = vmatprep.subr.mxu0 0.0
        %1546 = vmatpush2.xpose.msra.mxu0 0.0
        %1547 = vmatprep.subr.mxu0 0.0
        %1548 = vmatpush2.xpose.msra.mxu0 0.0
        %1549 = vmatprep.subr.mxu0 0.0
        %1550 = vmatpush2.xpose.msra.mxu0 0.0
        %1551 = vmatprep.subr.mxu0 0.0
        %1552 = vmatpush2.xpose.msra.mxu0 0.0
        %1553 = vmatprep.subr.mxu0 0.0
        %1554 = vmatpush2.xpose.msra.mxu0 0.0
        %1555 = vmatprep.subr.mxu0 0.0
        %1556 = vmatpush2.xpose.msra.mxu0 0.0
        %1557 = vmatprep.mubr.f32.mxu0 0.0
        %1558 = vmatmul.mubr.f32.gmra.mxu0 %v1461
        %v1559 = vpop.f32.mrf.mxu0
        %v1560 = vadd.f32 0.0, %v1559
        %v1561 = vpop.f32.mrf.mxu0
        %1562 = vmatprep.mubr.f32.mxu0 0.0
        %1563 = vmatmul.mubr.f32.gmra.mxu0 %v1463
        %v1564 = vpop.f32.mrf.mxu0
        %v1565 = vadd.f32 0.0, %v1564
        %v1566 = vpop.f32.mrf.mxu0
        %1567 = vmatprep.mubr.f32.mxu0 0.0
        %1568 = vmatmul.mubr.f32.gmra.mxu0 %v1465
        %v1569 = vpop.f32.mrf.mxu0
        %v1570 = vadd.f32 0.0, %v1569
        %v1571 = vpop.f32.mrf.mxu0
        %1572 = vmatprep.mubr.f32.mxu0 0.0
        %1573 = vmatmul.mubr.f32.gmra.mxu0 %v1467
        %v1574 = vpop.f32.mrf.mxu0
        %v1575 = vadd.f32 0.0, %v1574
        %v1576 = vpop.f32.mrf.mxu0
        %1577 = vmatprep.mubr.f32.mxu0 0.0
        %1578 = vmatmul.mubr.f32.gmra.mxu0 %v1469
        %v1579 = vpop.f32.mrf.mxu0
        %v1580 = vadd.f32 0.0, %v1579
        %v1581 = vpop.f32.mrf.mxu0
        %1582 = vmatprep.mubr.f32.mxu0 0.0
        %1583 = vmatmul.mubr.f32.gmra.mxu0 %v1471
        %v1584 = vpop.f32.mrf.mxu0
        %v1585 = vadd.f32 0.0, %v1584
        %v1586 = vpop.f32.mrf.mxu0
        %1587 = vmatprep.mubr.f32.mxu0 0.0
        %1588 = vmatmul.mubr.f32.gmra.mxu0 %v1473
        %v1589 = vpop.f32.mrf.mxu0
        %v1590 = vadd.f32 0.0, %v1589
        %v1591 = vpop.f32.mrf.mxu0
        %1592 = vmatprep.mubr.f32.mxu0 0.0
        %1593 = vmatmul.mubr.f32.gmra.mxu0 %v1475
        %v1594 = vpop.f32.mrf.mxu0
        %v1595 = vadd.f32 0.0, %v1594
        %v1596 = vpop.f32.mrf.mxu0
        %1597 = vdwg.mxu0
        %v1598 = vsel %vm1186, %v1035, 0
        %v1600 = vsel %vm1186, %v1037, 0
        %v1602 = vsel %vm1186, %v1039, 0
        %v1604 = vsel %vm1186, %v1041, 0
        %v1606 = vsel %vm1186, %v1043, 0
        %v1608 = vsel %vm1186, %v1045, 0
        %v1610 = vsel %vm1186, %v1047, 0
        %v1612 = vsel %vm1186, %v1049, 0
        %v1614 = vsel %vm1186, %v1091, 0
        %v1616 = vsel %vm1186, %v1093, 0
        %v1618 = vsel %vm1186, %v1095, 0
        %v1620 = vsel %vm1186, %v1097, 0
        %v1622 = vsel %vm1186, %v1099, 0
        %v1624 = vsel %vm1186, %v1101, 0
        %v1626 = vsel %vm1186, %v1103, 0
        %v1628 = vsel %vm1186, %v1105, 0
        %1630 = vmatprep.subr.mxu0 0.0
        %1631 = vmatpush1.xpose.msra.mxu0 0.0
        %1632 = vmatprep.subr.mxu0 0.0
        %1633 = vmatpush1.xpose.msra.mxu0 0.0
        %1634 = vmatprep.subr.mxu0 0.0
        %1635 = vmatpush1.xpose.msra.mxu0 0.0
        %1636 = vmatprep.subr.mxu0 0.0
        %1637 = vmatpush1.xpose.msra.mxu0 0.0
        %1638 = vmatprep.subr.mxu0 0.0
        %1639 = vmatpush1.xpose.msra.mxu0 0.0
        %1640 = vmatprep.subr.mxu0 0.0
        %1641 = vmatpush1.xpose.msra.mxu0 0.0
        %1642 = vmatprep.subr.mxu0 0.0
        %1643 = vmatpush1.xpose.msra.mxu0 0.0
        %1644 = vmatprep.subr.mxu0 0.0
        %1645 = vmatpush1.xpose.msra.mxu0 0.0
        %1646 = vmatprep.subr.mxu0 0.0
        %1647 = vmatpush1.xpose.msra.mxu0 %v1628
        %1648 = vmatprep.subr.mxu0 0.0
        %1649 = vmatpush1.xpose.msra.mxu0 %v1626
        %1650 = vmatprep.subr.mxu0 0.0
        %1651 = vmatpush1.xpose.msra.mxu0 %v1624
        %1652 = vmatprep.subr.mxu0 0.0
        %1653 = vmatpush1.xpose.msra.mxu0 %v1622
        %1654 = vmatprep.subr.mxu0 0.0
        %1655 = vmatpush1.xpose.msra.mxu0 %v1620
        %1656 = vmatprep.subr.mxu0 0.0
        %1657 = vmatpush1.xpose.msra.mxu0 %v1618
        %1658 = vmatprep.subr.mxu0 0.0
        %1659 = vmatpush1.xpose.msra.mxu0 %v1616
        %1660 = vmatprep.subr.mxu0 0.0
        %1661 = vmatpush1.xpose.msra.mxu0 %v1614
        %1662 = vmatprep.subr.mxu0 0.0
        %1663 = vmatpush2.xpose.msra.mxu0 0.0
        %1664 = vmatprep.subr.mxu0 0.0
        %1665 = vmatpush2.xpose.msra.mxu0 0.0
        %1666 = vmatprep.subr.mxu0 0.0
        %1667 = vmatpush2.xpose.msra.mxu0 0.0
        %1668 = vmatprep.subr.mxu0 0.0
        %1669 = vmatpush2.xpose.msra.mxu0 0.0
        %1670 = vmatprep.subr.mxu0 0.0
        %1671 = vmatpush2.xpose.msra.mxu0 0.0
        %1672 = vmatprep.subr.mxu0 0.0
        %1673 = vmatpush2.xpose.msra.mxu0 0.0
        %1674 = vmatprep.subr.mxu0 0.0
        %1675 = vmatpush2.xpose.msra.mxu0 0.0
        %1676 = vmatprep.subr.mxu0 0.0
        %1677 = vmatpush2.xpose.msra.mxu0 0.0
        %1678 = vmatprep.subr.mxu0 0.0
        %1679 = vmatpush2.xpose.msra.mxu0 0.0
        %1680 = vmatprep.subr.mxu0 0.0
        %1681 = vmatpush2.xpose.msra.mxu0 0.0
        %1682 = vmatprep.subr.mxu0 0.0
        %1683 = vmatpush2.xpose.msra.mxu0 0.0
        %1684 = vmatprep.subr.mxu0 0.0
        %1685 = vmatpush2.xpose.msra.mxu0 0.0
        %1686 = vmatprep.subr.mxu0 0.0
        %1687 = vmatpush2.xpose.msra.mxu0 0.0
        %1688 = vmatprep.subr.mxu0 0.0
        %1689 = vmatpush2.xpose.msra.mxu0 0.0
        %1690 = vmatprep.subr.mxu0 0.0
        %1691 = vmatpush2.xpose.msra.mxu0 0.0
        %1692 = vmatprep.subr.mxu0 0.0
        %1693 = vmatpush2.xpose.msra.mxu0 0.0
        %1694 = vmatprep.mubr.f32.mxu0 0.0
        %1695 = vmatmul.mubr.f32.gmra.mxu0 %v1598
        %v1696 = vpop.f32.mrf.mxu0
        %v1697 = vadd.f32 0.0, %v1696
        %v1698 = vpop.f32.mrf.mxu0
        %1699 = vmatprep.mubr.f32.mxu0 0.0
        %1700 = vmatmul.mubr.f32.gmra.mxu0 %v1600
        %v1701 = vpop.f32.mrf.mxu0
        %v1702 = vadd.f32 0.0, %v1701
        %v1703 = vpop.f32.mrf.mxu0
        %1704 = vmatprep.mubr.f32.mxu0 0.0
        %1705 = vmatmul.mubr.f32.gmra.mxu0 %v1602
        %v1706 = vpop.f32.mrf.mxu0
        %v1707 = vadd.f32 0.0, %v1706
        %v1708 = vpop.f32.mrf.mxu0
        %1709 = vmatprep.mubr.f32.mxu0 0.0
        %1710 = vmatmul.mubr.f32.gmra.mxu0 %v1604
        %v1711 = vpop.f32.mrf.mxu0
        %v1712 = vadd.f32 0.0, %v1711
        %v1713 = vpop.f32.mrf.mxu0
        %1714 = vmatprep.mubr.f32.mxu0 0.0
        %1715 = vmatmul.mubr.f32.gmra.mxu0 %v1606
        %v1716 = vpop.f32.mrf.mxu0
        %v1717 = vadd.f32 0.0, %v1716
        %v1718 = vpop.f32.mrf.mxu0
        %1719 = vmatprep.mubr.f32.mxu0 0.0
        %1720 = vmatmul.mubr.f32.gmra.mxu0 %v1608
        %v1721 = vpop.f32.mrf.mxu0
        %v1722 = vadd.f32 0.0, %v1721
        %v1723 = vpop.f32.mrf.mxu0
        %1724 = vmatprep.mubr.f32.mxu0 0.0
        %1725 = vmatmul.mubr.f32.gmra.mxu0 %v1610
        %v1726 = vpop.f32.mrf.mxu0
        %v1727 = vadd.f32 0.0, %v1726
        %v1728 = vpop.f32.mrf.mxu0
        %1729 = vmatprep.mubr.f32.mxu0 0.0
        %1730 = vmatmul.mubr.f32.gmra.mxu0 %v1612
        %v1731 = vpop.f32.mrf.mxu0
        %v1732 = vadd.f32 0.0, %v1731
        %v1733 = vpop.f32.mrf.mxu0
        %1734 = vdwg.mxu0
        %vm1735 = vcmask 523264
        %v1736 = vsel %vm1735, %v1286, -inf
        %1737 = vmax.xlane.f32.xlu0 %v1736
        %v1738 = vpop.xlane.xlu0 %1737
        %v1739 = vsel %vm1735, %v1291, -inf
        %1740 = vmax.xlane.f32.xlu0 %v1739
        %v1741 = vpop.xlane.xlu0 %1740
        %v1742 = vsel %vm1735, %v1296, -inf
        %1743 = vmax.xlane.f32.xlu0 %v1742
        %v1744 = vpop.xlane.xlu0 %1743
        %v1745 = vsel %vm1735, %v1301, -inf
        %1746 = vmax.xlane.f32.xlu0 %v1745
        %v1747 = vpop.xlane.xlu0 %1746
        %v1748 = vsel %vm1735, %v1306, -inf
        %1749 = vmax.xlane.f32.xlu0 %v1748
        %v1750 = vpop.xlane.xlu0 %1749
        %v1751 = vsel %vm1735, %v1311, -inf
        %1752 = vmax.xlane.f32.xlu0 %v1751
        %v1753 = vpop.xlane.xlu0 %1752
        %v1754 = vsel %vm1735, %v1316, -inf
        %1755 = vmax.xlane.f32.xlu0 %v1754
        %v1756 = vpop.xlane.xlu0 %1755
        %v1757 = vsel %vm1735, %v1321, -inf
        %1758 = vmax.xlane.f32.xlu0 %v1757
        %v1759 = vpop.xlane.xlu0 %1758
        %v1760 = vsel %vm1735, %v1423, -inf
        %1761 = vmax.xlane.f32.xlu0 %v1760
        %v1762 = vpop.xlane.xlu0 %1761
        %v1763 = vsel %vm1735, %v1428, -inf
        %1764 = vmax.xlane.f32.xlu0 %v1763
        %v1765 = vpop.xlane.xlu0 %1764
        %v1766 = vsel %vm1735, %v1433, -inf
        %1767 = vmax.xlane.f32.xlu0 %v1766
        %v1768 = vpop.xlane.xlu0 %1767
        %v1769 = vsel %vm1735, %v1438, -inf
        %1770 = vmax.xlane.f32.xlu0 %v1769
        %v1771 = vpop.xlane.xlu0 %1770
        %v1772 = vsel %vm1735, %v1443, -inf
        %1773 = vmax.xlane.f32.xlu0 %v1772
        %v1774 = vpop.xlane.xlu0 %1773
        %v1775 = vsel %vm1735, %v1448, -inf
        %1776 = vmax.xlane.f32.xlu0 %v1775
        %v1777 = vpop.xlane.xlu0 %1776
        %v1778 = vsel %vm1735, %v1453, -inf
        %1779 = vmax.xlane.f32.xlu0 %v1778
        %v1780 = vpop.xlane.xlu0 %1779
        %v1781 = vsel %vm1735, %v1458, -inf
        %1782 = vmax.xlane.f32.xlu0 %v1781
        %v1783 = vpop.xlane.xlu0 %1782
        %v1784 = vsel %vm1735, %v1560, -inf
        %1785 = vmax.xlane.f32.xlu0 %v1784
        %v1786 = vpop.xlane.xlu0 %1785
        %v1787 = vsel %vm1735, %v1565, -inf
        %1788 = vmax.xlane.f32.xlu0 %v1787
        %v1789 = vpop.xlane.xlu0 %1788
        %v1790 = vsel %vm1735, %v1570, -inf
        %1791 = vmax.xlane.f32.xlu0 %v1790
        %v1792 = vpop.xlane.xlu0 %1791
        %v1793 = vsel %vm1735, %v1575, -inf
        %1794 = vmax.xlane.f32.xlu0 %v1793
        %v1795 = vpop.xlane.xlu0 %1794
        %v1796 = vsel %vm1735, %v1580, -inf
        %1797 = vmax.xlane.f32.xlu0 %v1796
        %v1798 = vpop.xlane.xlu0 %1797
        %v1799 = vsel %vm1735, %v1585, -inf
        %1800 = vmax.xlane.f32.xlu0 %v1799
        %v1801 = vpop.xlane.xlu0 %1800
        %v1802 = vsel %vm1735, %v1590, -inf
        %1803 = vmax.xlane.f32.xlu0 %v1802
        %v1804 = vpop.xlane.xlu0 %1803
        %v1805 = vsel %vm1735, %v1595, -inf
        %1806 = vmax.xlane.f32.xlu0 %v1805
        %v1807 = vpop.xlane.xlu0 %1806
        %v1808 = vsel %vm1735, %v1697, -inf
        %1809 = vmax.xlane.f32.xlu0 %v1808
        %v1810 = vpop.xlane.xlu0 %1809
        %v1811 = vsel %vm1735, %v1702, -inf
        %1812 = vmax.xlane.f32.xlu0 %v1811
        %v1813 = vpop.xlane.xlu0 %1812
        %v1814 = vsel %vm1735, %v1707, -inf
        %1815 = vmax.xlane.f32.xlu0 %v1814
        %v1816 = vpop.xlane.xlu0 %1815
        %v1817 = vsel %vm1735, %v1712, -inf
        %1818 = vmax.xlane.f32.xlu0 %v1817
        %v1819 = vpop.xlane.xlu0 %1818
        %v1820 = vsel %vm1735, %v1717, -inf
        %1821 = vmax.xlane.f32.xlu0 %v1820
        %v1822 = vpop.xlane.xlu0 %1821
        %v1823 = vsel %vm1735, %v1722, -inf
        %1824 = vmax.xlane.f32.xlu0 %v1823
        %v1825 = vpop.xlane.xlu0 %1824
        %v1826 = vsel %vm1735, %v1727, -inf
        %1827 = vmax.xlane.f32.xlu0 %v1826
        %v1828 = vpop.xlane.xlu0 %1827
        %v1829 = vsel %vm1735, %v1732, -inf
        %1830 = vmax.xlane.f32.xlu0 %v1829
        %v1831 = vpop.xlane.xlu0 %1830
        %v1832 = vsub.f32 %v1286, %v1738
        %v1833 = vsub.f32 %v1291, %v1741
        %v1834 = vsub.f32 %v1296, %v1744
        %v1835 = vsub.f32 %v1301, %v1747
        %v1836 = vsub.f32 %v1306, %v1750
        %v1837 = vsub.f32 %v1311, %v1753
        %v1838 = vsub.f32 %v1316, %v1756
        %v1839 = vsub.f32 %v1321, %v1759
        %v1840 = vsub.f32 %v1423, %v1762
        %v1841 = vsub.f32 %v1428, %v1765
        %v1842 = vsub.f32 %v1433, %v1768
        %v1843 = vsub.f32 %v1438, %v1771
        %v1844 = vsub.f32 %v1443, %v1774
        %v1845 = vsub.f32 %v1448, %v1777
        %v1846 = vsub.f32 %v1453, %v1780
        %v1847 = vsub.f32 %v1458, %v1783
        %v1848 = vsub.f32 %v1560, %v1786
        %v1849 = vsub.f32 %v1565, %v1789
        %v1850 = vsub.f32 %v1570, %v1792
        %v1851 = vsub.f32 %v1575, %v1795
        %v1852 = vsub.f32 %v1580, %v1798
        %v1853 = vsub.f32 %v1585, %v1801
        %v1854 = vsub.f32 %v1590, %v1804
        %v1855 = vsub.f32 %v1595, %v1807
        %v1856 = vsub.f32 %v1697, %v1810
        %v1857 = vsub.f32 %v1702, %v1813
        %v1858 = vsub.f32 %v1707, %v1816
        %v1859 = vsub.f32 %v1712, %v1819
        %v1860 = vsub.f32 %v1717, %v1822
        %v1861 = vsub.f32 %v1722, %v1825
        %v1862 = vsub.f32 %v1727, %v1828
        %v1863 = vsub.f32 %v1732, %v1831
        %v1864 = vmul.f32 %v1832, 1.442695
        %v1865 = vpow.pop %v1864
        %v1866 = vmul.f32 %v1833, 1.442695
        %v1867 = vpow.pop %v1866
        %v1868 = vmul.f32 %v1834, 1.442695
        %v1869 = vpow.pop %v1868
        %v1870 = vmul.f32 %v1835, 1.442695
        %v1871 = vpow.pop %v1870
        %v1872 = vmul.f32 %v1836, 1.442695
        %v1873 = vpow.pop %v1872
        %v1874 = vmul.f32 %v1837, 1.442695
        %v1875 = vpow.pop %v1874
        %v1876 = vmul.f32 %v1838, 1.442695
        %v1877 = vpow.pop %v1876
        %v1878 = vmul.f32 %v1839, 1.442695
        %v1879 = vpow.pop %v1878
        %v1880 = vmul.f32 %v1840, 1.442695
        %v1881 = vpow.pop %v1880
        %v1882 = vmul.f32 %v1841, 1.442695
        %v1883 = vpow.pop %v1882
        %v1884 = vmul.f32 %v1842, 1.442695
        %v1885 = vpow.pop %v1884
        %v1886 = vmul.f32 %v1843, 1.442695
        %v1887 = vpow.pop %v1886
        %v1888 = vmul.f32 %v1844, 1.442695
        %v1889 = vpow.pop %v1888
        %v1890 = vmul.f32 %v1845, 1.442695
        %v1891 = vpow.pop %v1890
        %v1892 = vmul.f32 %v1846, 1.442695
        %v1893 = vpow.pop %v1892
        %v1894 = vmul.f32 %v1847, 1.442695
        %v1895 = vpow.pop %v1894
        %v1896 = vmul.f32 %v1848, 1.442695
        %v1897 = vpow.pop %v1896
        %v1898 = vmul.f32 %v1849, 1.442695
        %v1899 = vpow.pop %v1898
        %v1900 = vmul.f32 %v1850, 1.442695
        %v1901 = vpow.pop %v1900
        %v1902 = vmul.f32 %v1851, 1.442695
        %v1903 = vpow.pop %v1902
        %v1904 = vmul.f32 %v1852, 1.442695
        %v1905 = vpow.pop %v1904
        %v1906 = vmul.f32 %v1853, 1.442695
        %v1907 = vpow.pop %v1906
        %v1908 = vmul.f32 %v1854, 1.442695
        %v1909 = vpow.pop %v1908
        %v1910 = vmul.f32 %v1855, 1.442695
        %v1911 = vpow.pop %v1910
        %v1912 = vmul.f32 %v1856, 1.442695
        %v1913 = vpow.pop %v1912
        %v1914 = vmul.f32 %v1857, 1.442695
        %v1915 = vpow.pop %v1914
        %v1916 = vmul.f32 %v1858, 1.442695
        %v1917 = vpow.pop %v1916
        %v1918 = vmul.f32 %v1859, 1.442695
        %v1919 = vpow.pop %v1918
        %v1920 = vmul.f32 %v1860, 1.442695
        %v1921 = vpow.pop %v1920
        %v1922 = vmul.f32 %v1861, 1.442695
        %v1923 = vpow.pop %v1922
        %v1924 = vmul.f32 %v1862, 1.442695
        %v1925 = vpow.pop %v1924
        %v1926 = vmul.f32 %v1863, 1.442695
        %v1927 = vpow.pop %v1926
        %v1929 = vsel %vm1735, %v1865, 0
        %v1932 = vsel %vm1735, %v1867, 0
        %v1935 = vsel %vm1735, %v1869, 0
        %v1938 = vsel %vm1735, %v1871, 0
        %v1941 = vsel %vm1735, %v1873, 0
        %v1944 = vsel %vm1735, %v1875, 0
        %v1947 = vsel %vm1735, %v1877, 0
        %v1950 = vsel %vm1735, %v1879, 0
        %1952 = vmatprep.subr.mxu0 0.0
        %1953 = vmatpush1.msra.mxu0 0.0
        %1954 = vmatprep.subr.mxu0 0.0
        %1955 = vmatpush1.msra.mxu0 0.0
        %1956 = vmatprep.subr.mxu0 0.0
        %1957 = vmatpush1.msra.mxu0 0.0
        %1958 = vmatprep.subr.mxu0 0.0
        %1959 = vmatpush1.msra.mxu0 0.0
        %1960 = vmatprep.subr.mxu0 0.0
        %1961 = vmatpush1.msra.mxu0 0.0
        %1962 = vmatprep.subr.mxu0 0.0
        %1963 = vmatpush1.msra.mxu0 0.0
        %1964 = vmatprep.subr.mxu0 0.0
        %1965 = vmatpush1.msra.mxu0 0.0
        %1966 = vmatprep.subr.mxu0 0.0
        %1967 = vmatpush1.msra.mxu0 0.0
        %1968 = vmatprep.subr.mxu0 0.0
        %1969 = vmatpush1.msra.mxu0 %v991
        %1970 = vmatprep.subr.mxu0 0.0
        %1971 = vmatpush1.msra.mxu0 %v986
        %1972 = vmatprep.subr.mxu0 0.0
        %1973 = vmatpush1.msra.mxu0 %v981
        %1974 = vmatprep.subr.mxu0 0.0
        %1975 = vmatpush1.msra.mxu0 %v976
        %1976 = vmatprep.subr.mxu0 0.0
        %1977 = vmatpush1.msra.mxu0 %v971
        %1978 = vmatprep.subr.mxu0 0.0
        %1979 = vmatpush1.msra.mxu0 %v966
        %1980 = vmatprep.subr.mxu0 0.0
        %1981 = vmatpush1.msra.mxu0 %v961
        %1982 = vmatprep.subr.mxu0 0.0
        %1983 = vmatpush1.msra.mxu0 %v956
        %1984 = vmatprep.subr.mxu0 0.0
        %1985 = vmatpush2.msra.mxu0 0.0
        %1986 = vmatprep.subr.mxu0 0.0
        %1987 = vmatpush2.msra.mxu0 0.0
        %1988 = vmatprep.subr.mxu0 0.0
        %1989 = vmatpush2.msra.mxu0 0.0
        %1990 = vmatprep.subr.mxu0 0.0
        %1991 = vmatpush2.msra.mxu0 0.0
        %1992 = vmatprep.subr.mxu0 0.0
        %1993 = vmatpush2.msra.mxu0 0.0
        %1994 = vmatprep.subr.mxu0 0.0
        %1995 = vmatpush2.msra.mxu0 0.0
        %1996 = vmatprep.subr.mxu0 0.0
        %1997 = vmatpush2.msra.mxu0 0.0
        %1998 = vmatprep.subr.mxu0 0.0
        %1999 = vmatpush2.msra.mxu0 0.0
        %2000 = vmatprep.subr.mxu0 0.0
        %2001 = vmatpush2.msra.mxu0 0.0
        %2002 = vmatprep.subr.mxu0 0.0
        %2003 = vmatpush2.msra.mxu0 0.0
        %2004 = vmatprep.subr.mxu0 0.0
        %2005 = vmatpush2.msra.mxu0 0.0
        %2006 = vmatprep.subr.mxu0 0.0
        %2007 = vmatpush2.msra.mxu0 0.0
        %2008 = vmatprep.subr.mxu0 0.0
        %2009 = vmatpush2.msra.mxu0 0.0
        %2010 = vmatprep.subr.mxu0 0.0
        %2011 = vmatpush2.msra.mxu0 0.0
        %2012 = vmatprep.subr.mxu0 0.0
        %2013 = vmatpush2.msra.mxu0 0.0
        %2014 = vmatprep.subr.mxu0 0.0
        %2015 = vmatpush2.msra.mxu0 0.0
        %2016 = vmatprep.mubr.f32.mxu0 0.0
        %2017 = vmatmul.mubr.f32.gmra.mxu0 %v1929
        %v2018 = vpop.f32.mrf.mxu0
        %v2019 = vadd.f32 0.0, %v2018
        %v2020 = vpop.f32.mrf.mxu0
        %2021 = vmatprep.mubr.f32.mxu0 0.0
        %2022 = vmatmul.mubr.f32.gmra.mxu0 %v1932
        %v2023 = vpop.f32.mrf.mxu0
        %v2024 = vadd.f32 0.0, %v2023
        %v2025 = vpop.f32.mrf.mxu0
        %2026 = vmatprep.mubr.f32.mxu0 0.0
        %2027 = vmatmul.mubr.f32.gmra.mxu0 %v1935
        %v2028 = vpop.f32.mrf.mxu0
        %v2029 = vadd.f32 0.0, %v2028
        %v2030 = vpop.f32.mrf.mxu0
        %2031 = vmatprep.mubr.f32.mxu0 0.0
        %2032 = vmatmul.mubr.f32.gmra.mxu0 %v1938
        %v2033 = vpop.f32.mrf.mxu0
        %v2034 = vadd.f32 0.0, %v2033
        %v2035 = vpop.f32.mrf.mxu0
        %2036 = vmatprep.mubr.f32.mxu0 0.0
        %2037 = vmatmul.mubr.f32.gmra.mxu0 %v1941
        %v2038 = vpop.f32.mrf.mxu0
        %v2039 = vadd.f32 0.0, %v2038
        %v2040 = vpop.f32.mrf.mxu0
        %2041 = vmatprep.mubr.f32.mxu0 0.0
        %2042 = vmatmul.mubr.f32.gmra.mxu0 %v1944
        %v2043 = vpop.f32.mrf.mxu0
        %v2044 = vadd.f32 0.0, %v2043
        %v2045 = vpop.f32.mrf.mxu0
        %2046 = vmatprep.mubr.f32.mxu0 0.0
        %2047 = vmatmul.mubr.f32.gmra.mxu0 %v1947
        %v2048 = vpop.f32.mrf.mxu0
        %v2049 = vadd.f32 0.0, %v2048
        %v2050 = vpop.f32.mrf.mxu0
        %2051 = vmatprep.mubr.f32.mxu0 0.0
        %2052 = vmatmul.mubr.f32.gmra.mxu0 %v1950
        %v2053 = vpop.f32.mrf.mxu0
        %v2054 = vadd.f32 0.0, %v2053
        %v2055 = vpop.f32.mrf.mxu0
        %2056 = vdwg.mxu0
        %v2058 = vsel %vm1735, %v1881, 0
        %v2061 = vsel %vm1735, %v1883, 0
        %v2064 = vsel %vm1735, %v1885, 0
        %v2067 = vsel %vm1735, %v1887, 0
        %v2070 = vsel %vm1735, %v1889, 0
        %v2073 = vsel %vm1735, %v1891, 0
        %v2076 = vsel %vm1735, %v1893, 0
        %v2079 = vsel %vm1735, %v1895, 0
        %2081 = vmatprep.subr.mxu0 0.0
        %2082 = vmatpush1.msra.mxu0 0.0
        %2083 = vmatprep.subr.mxu0 0.0
        %2084 = vmatpush1.msra.mxu0 0.0
        %2085 = vmatprep.subr.mxu0 0.0
        %2086 = vmatpush1.msra.mxu0 0.0
        %2087 = vmatprep.subr.mxu0 0.0
        %2088 = vmatpush1.msra.mxu0 0.0
        %2089 = vmatprep.subr.mxu0 0.0
        %2090 = vmatpush1.msra.mxu0 0.0
        %2091 = vmatprep.subr.mxu0 0.0
        %2092 = vmatpush1.msra.mxu0 0.0
        %2093 = vmatprep.subr.mxu0 0.0
        %2094 = vmatpush1.msra.mxu0 0.0
        %2095 = vmatprep.subr.mxu0 0.0
        %2096 = vmatpush1.msra.mxu0 0.0
        %2097 = vmatprep.subr.mxu0 0.0
        %2098 = vmatpush1.msra.mxu0 %v1129
        %2099 = vmatprep.subr.mxu0 0.0
        %2100 = vmatpush1.msra.mxu0 %v1127
        %2101 = vmatprep.subr.mxu0 0.0
        %2102 = vmatpush1.msra.mxu0 %v1125
        %2103 = vmatprep.subr.mxu0 0.0
        %2104 = vmatpush1.msra.mxu0 %v1123
        %2105 = vmatprep.subr.mxu0 0.0
        %2106 = vmatpush1.msra.mxu0 %v1121
        %2107 = vmatprep.subr.mxu0 0.0
        %2108 = vmatpush1.msra.mxu0 %v1119
        %2109 = vmatprep.subr.mxu0 0.0
        %2110 = vmatpush1.msra.mxu0 %v1117
        %2111 = vmatprep.subr.mxu0 0.0
        %2112 = vmatpush1.msra.mxu0 %v1115
        %2113 = vmatprep.subr.mxu0 0.0
        %2114 = vmatpush2.msra.mxu0 0.0
        %2115 = vmatprep.subr.mxu0 0.0
        %2116 = vmatpush2.msra.mxu0 0.0
        %2117 = vmatprep.subr.mxu0 0.0
        %2118 = vmatpush2.msra.mxu0 0.0
        %2119 = vmatprep.subr.mxu0 0.0
        %2120 = vmatpush2.msra.mxu0 0.0
        %2121 = vmatprep.subr.mxu0 0.0
        %2122 = vmatpush2.msra.mxu0 0.0
        %2123 = vmatprep.subr.mxu0 0.0
        %2124 = vmatpush2.msra.mxu0 0.0
        %2125 = vmatprep.subr.mxu0 0.0
        %2126 = vmatpush2.msra.mxu0 0.0
        %2127 = vmatprep.subr.mxu0 0.0
        %2128 = vmatpush2.msra.mxu0 0.0
        %2129 = vmatprep.subr.mxu0 0.0
        %2130 = vmatpush2.msra.mxu0 0.0
        %2131 = vmatprep.subr.mxu0 0.0
        %2132 = vmatpush2.msra.mxu0 0.0
        %2133 = vmatprep.subr.mxu0 0.0
        %2134 = vmatpush2.msra.mxu0 0.0
        %2135 = vmatprep.subr.mxu0 0.0
        %2136 = vmatpush2.msra.mxu0 0.0
        %2137 = vmatprep.subr.mxu0 0.0
        %2138 = vmatpush2.msra.mxu0 0.0
        %2139 = vmatprep.subr.mxu0 0.0
        %2140 = vmatpush2.msra.mxu0 0.0
        %2141 = vmatprep.subr.mxu0 0.0
        %2142 = vmatpush2.msra.mxu0 0.0
        %2143 = vmatprep.subr.mxu0 0.0
        %2144 = vmatpush2.msra.mxu0 0.0
        %2145 = vmatprep.mubr.f32.mxu0 0.0
        %2146 = vmatmul.mubr.f32.gmra.mxu0 %v2058
        %v2147 = vpop.f32.mrf.mxu0
        %v2148 = vadd.f32 0.0, %v2147
        %v2149 = vpop.f32.mrf.mxu0
        %2150 = vmatprep.mubr.f32.mxu0 0.0
        %2151 = vmatmul.mubr.f32.gmra.mxu0 %v2061
        %v2152 = vpop.f32.mrf.mxu0
        %v2153 = vadd.f32 0.0, %v2152
        %v2154 = vpop.f32.mrf.mxu0
        %2155 = vmatprep.mubr.f32.mxu0 0.0
        %2156 = vmatmul.mubr.f32.gmra.mxu0 %v2064
        %v2157 = vpop.f32.mrf.mxu0
        %v2158 = vadd.f32 0.0, %v2157
        %v2159 = vpop.f32.mrf.mxu0
        %2160 = vmatprep.mubr.f32.mxu0 0.0
        %2161 = vmatmul.mubr.f32.gmra.mxu0 %v2067
        %v2162 = vpop.f32.mrf.mxu0
        %v2163 = vadd.f32 0.0, %v2162
        %v2164 = vpop.f32.mrf.mxu0
        %2165 = vmatprep.mubr.f32.mxu0 0.0
        %2166 = vmatmul.mubr.f32.gmra.mxu0 %v2070
        %v2167 = vpop.f32.mrf.mxu0
        %v2168 = vadd.f32 0.0, %v2167
        %v2169 = vpop.f32.mrf.mxu0
        %2170 = vmatprep.mubr.f32.mxu0 0.0
        %2171 = vmatmul.mubr.f32.gmra.mxu0 %v2073
        %v2172 = vpop.f32.mrf.mxu0
        %v2173 = vadd.f32 0.0, %v2172
        %v2174 = vpop.f32.mrf.mxu0
        %2175 = vmatprep.mubr.f32.mxu0 0.0
        %2176 = vmatmul.mubr.f32.gmra.mxu0 %v2076
        %v2177 = vpop.f32.mrf.mxu0
        %v2178 = vadd.f32 0.0, %v2177
        %v2179 = vpop.f32.mrf.mxu0
        %2180 = vmatprep.mubr.f32.mxu0 0.0
        %2181 = vmatmul.mubr.f32.gmra.mxu0 %v2079
        %v2182 = vpop.f32.mrf.mxu0
        %v2183 = vadd.f32 0.0, %v2182
        %v2184 = vpop.f32.mrf.mxu0
        %2185 = vdwg.mxu0
        %v2187 = vsel %vm1735, %v1897, 0
        %v2190 = vsel %vm1735, %v1899, 0
        %v2193 = vsel %vm1735, %v1901, 0
        %v2196 = vsel %vm1735, %v1903, 0
        %v2199 = vsel %vm1735, %v1905, 0
        %v2202 = vsel %vm1735, %v1907, 0
        %v2205 = vsel %vm1735, %v1909, 0
        %v2208 = vsel %vm1735, %v1911, 0
        %2210 = vmatprep.subr.mxu0 0.0
        %2211 = vmatpush1.msra.mxu0 0.0
        %2212 = vmatprep.subr.mxu0 0.0
        %2213 = vmatpush1.msra.mxu0 0.0
        %2214 = vmatprep.subr.mxu0 0.0
        %2215 = vmatpush1.msra.mxu0 0.0
        %2216 = vmatprep.subr.mxu0 0.0
        %2217 = vmatpush1.msra.mxu0 0.0
        %2218 = vmatprep.subr.mxu0 0.0
        %2219 = vmatpush1.msra.mxu0 0.0
        %2220 = vmatprep.subr.mxu0 0.0
        %2221 = vmatpush1.msra.mxu0 0.0
        %2222 = vmatprep.subr.mxu0 0.0
        %2223 = vmatpush1.msra.mxu0 0.0
        %2224 = vmatprep.subr.mxu0 0.0
        %2225 = vmatpush1.msra.mxu0 0.0
        %2226 = vmatprep.subr.mxu0 0.0
        %2227 = vmatpush1.msra.mxu0 %v1153
        %2228 = vmatprep.subr.mxu0 0.0
        %2229 = vmatpush1.msra.mxu0 %v1151
        %2230 = vmatprep.subr.mxu0 0.0
        %2231 = vmatpush1.msra.mxu0 %v1149
        %2232 = vmatprep.subr.mxu0 0.0
        %2233 = vmatpush1.msra.mxu0 %v1147
        %2234 = vmatprep.subr.mxu0 0.0
        %2235 = vmatpush1.msra.mxu0 %v1145
        %2236 = vmatprep.subr.mxu0 0.0
        %2237 = vmatpush1.msra.mxu0 %v1143
        %2238 = vmatprep.subr.mxu0 0.0
        %2239 = vmatpush1.msra.mxu0 %v1141
        %2240 = vmatprep.subr.mxu0 0.0
        %2241 = vmatpush1.msra.mxu0 %v1139
        %2242 = vmatprep.subr.mxu0 0.0
        %2243 = vmatpush2.msra.mxu0 0.0
        %2244 = vmatprep.subr.mxu0 0.0
        %2245 = vmatpush2.msra.mxu0 0.0
        %2246 = vmatprep.subr.mxu0 0.0
        %2247 = vmatpush2.msra.mxu0 0.0
        %2248 = vmatprep.subr.mxu0 0.0
        %2249 = vmatpush2.msra.mxu0 0.0
        %2250 = vmatprep.subr.mxu0 0.0
        %2251 = vmatpush2.msra.mxu0 0.0
        %2252 = vmatprep.subr.mxu0 0.0
        %2253 = vmatpush2.msra.mxu0 0.0
        %2254 = vmatprep.subr.mxu0 0.0
        %2255 = vmatpush2.msra.mxu0 0.0
        %2256 = vmatprep.subr.mxu0 0.0
        %2257 = vmatpush2.msra.mxu0 0.0
        %2258 = vmatprep.subr.mxu0 0.0
        %2259 = vmatpush2.msra.mxu0 0.0
        %2260 = vmatprep.subr.mxu0 0.0
        %2261 = vmatpush2.msra.mxu0 0.0
        %2262 = vmatprep.subr.mxu0 0.0
        %2263 = vmatpush2.msra.mxu0 0.0
        %2264 = vmatprep.subr.mxu0 0.0
        %2265 = vmatpush2.msra.mxu0 0.0
        %2266 = vmatprep.subr.mxu0 0.0
        %2267 = vmatpush2.msra.mxu0 0.0
        %2268 = vmatprep.subr.mxu0 0.0
        %2269 = vmatpush2.msra.mxu0 0.0
        %2270 = vmatprep.subr.mxu0 0.0
        %2271 = vmatpush2.msra.mxu0 0.0
        %2272 = vmatprep.subr.mxu0 0.0
        %2273 = vmatpush2.msra.mxu0 0.0
        %2274 = vmatprep.mubr.f32.mxu0 0.0
        %2275 = vmatmul.mubr.f32.gmra.mxu0 %v2187
        %v2276 = vpop.f32.mrf.mxu0
        %v2277 = vadd.f32 0.0, %v2276
        %v2278 = vpop.f32.mrf.mxu0
        %2279 = vmatprep.mubr.f32.mxu0 0.0
        %2280 = vmatmul.mubr.f32.gmra.mxu0 %v2190
        %v2281 = vpop.f32.mrf.mxu0
        %v2282 = vadd.f32 0.0, %v2281
        %v2283 = vpop.f32.mrf.mxu0
        %2284 = vmatprep.mubr.f32.mxu0 0.0
        %2285 = vmatmul.mubr.f32.gmra.mxu0 %v2193
        %v2286 = vpop.f32.mrf.mxu0
        %v2287 = vadd.f32 0.0, %v2286
        %v2288 = vpop.f32.mrf.mxu0
        %2289 = vmatprep.mubr.f32.mxu0 0.0
        %2290 = vmatmul.mubr.f32.gmra.mxu0 %v2196
        %v2291 = vpop.f32.mrf.mxu0
        %v2292 = vadd.f32 0.0, %v2291
        %v2293 = vpop.f32.mrf.mxu0
        %2294 = vmatprep.mubr.f32.mxu0 0.0
        %2295 = vmatmul.mubr.f32.gmra.mxu0 %v2199
        %v2296 = vpop.f32.mrf.mxu0
        %v2297 = vadd.f32 0.0, %v2296
        %v2298 = vpop.f32.mrf.mxu0
        %2299 = vmatprep.mubr.f32.mxu0 0.0
        %2300 = vmatmul.mubr.f32.gmra.mxu0 %v2202
        %v2301 = vpop.f32.mrf.mxu0
        %v2302 = vadd.f32 0.0, %v2301
        %v2303 = vpop.f32.mrf.mxu0
        %2304 = vmatprep.mubr.f32.mxu0 0.0
        %2305 = vmatmul.mubr.f32.gmra.mxu0 %v2205
        %v2306 = vpop.f32.mrf.mxu0
        %v2307 = vadd.f32 0.0, %v2306
        %v2308 = vpop.f32.mrf.mxu0
        %2309 = vmatprep.mubr.f32.mxu0 0.0
        %2310 = vmatmul.mubr.f32.gmra.mxu0 %v2208
        %v2311 = vpop.f32.mrf.mxu0
        %v2312 = vadd.f32 0.0, %v2311
        %v2313 = vpop.f32.mrf.mxu0
        %2314 = vdwg.mxu0
        %v2316 = vsel %vm1735, %v1913, 0
        %v2319 = vsel %vm1735, %v1915, 0
        %v2322 = vsel %vm1735, %v1917, 0
        %v2325 = vsel %vm1735, %v1919, 0
        %v2328 = vsel %vm1735, %v1921, 0
        %v2331 = vsel %vm1735, %v1923, 0
        %v2334 = vsel %vm1735, %v1925, 0
        %v2337 = vsel %vm1735, %v1927, 0
        %2339 = vmatprep.subr.mxu0 0.0
        %2340 = vmatpush1.msra.mxu0 0.0
        %2341 = vmatprep.subr.mxu0 0.0
        %2342 = vmatpush1.msra.mxu0 0.0
        %2343 = vmatprep.subr.mxu0 0.0
        %2344 = vmatpush1.msra.mxu0 0.0
        %2345 = vmatprep.subr.mxu0 0.0
        %2346 = vmatpush1.msra.mxu0 0.0
        %2347 = vmatprep.subr.mxu0 0.0
        %2348 = vmatpush1.msra.mxu0 0.0
        %2349 = vmatprep.subr.mxu0 0.0
        %2350 = vmatpush1.msra.mxu0 0.0
        %2351 = vmatprep.subr.mxu0 0.0
        %2352 = vmatpush1.msra.mxu0 0.0
        %2353 = vmatprep.subr.mxu0 0.0
        %2354 = vmatpush1.msra.mxu0 0.0
        %2355 = vmatprep.subr.mxu0 0.0
        %2356 = vmatpush1.msra.mxu0 %v1177
        %2357 = vmatprep.subr.mxu0 0.0
        %2358 = vmatpush1.msra.mxu0 %v1175
        %2359 = vmatprep.subr.mxu0 0.0
        %2360 = vmatpush1.msra.mxu0 %v1173
        %2361 = vmatprep.subr.mxu0 0.0
        %2362 = vmatpush1.msra.mxu0 %v1171
        %2363 = vmatprep.subr.mxu0 0.0
        %2364 = vmatpush1.msra.mxu0 %v1169
        %2365 = vmatprep.subr.mxu0 0.0
        %2366 = vmatpush1.msra.mxu0 %v1167
        %2367 = vmatprep.subr.mxu0 0.0
        %2368 = vmatpush1.msra.mxu0 %v1165
        %2369 = vmatprep.subr.mxu0 0.0
        %2370 = vmatpush1.msra.mxu0 %v1163
        %2371 = vmatprep.subr.mxu0 0.0
        %2372 = vmatpush2.msra.mxu0 0.0
        %2373 = vmatprep.subr.mxu0 0.0
        %2374 = vmatpush2.msra.mxu0 0.0
        %2375 = vmatprep.subr.mxu0 0.0
        %2376 = vmatpush2.msra.mxu0 0.0
        %2377 = vmatprep.subr.mxu0 0.0
        %2378 = vmatpush2.msra.mxu0 0.0
        %2379 = vmatprep.subr.mxu0 0.0
        %2380 = vmatpush2.msra.mxu0 0.0
        %2381 = vmatprep.subr.mxu0 0.0
        %2382 = vmatpush2.msra.mxu0 0.0
        %2383 = vmatprep.subr.mxu0 0.0
        %2384 = vmatpush2.msra.mxu0 0.0
        %2385 = vmatprep.subr.mxu0 0.0
        %2386 = vmatpush2.msra.mxu0 0.0
        %2387 = vmatprep.subr.mxu0 0.0
        %2388 = vmatpush2.msra.mxu0 0.0
        %2389 = vmatprep.subr.mxu0 0.0
        %2390 = vmatpush2.msra.mxu0 0.0
        %2391 = vmatprep.subr.mxu0 0.0
        %2392 = vmatpush2.msra.mxu0 0.0
        %2393 = vmatprep.subr.mxu0 0.0
        %2394 = vmatpush2.msra.mxu0 0.0
        %2395 = vmatprep.subr.mxu0 0.0
        %2396 = vmatpush2.msra.mxu0 0.0
        %2397 = vmatprep.subr.mxu0 0.0
        %2398 = vmatpush2.msra.mxu0 0.0
        %2399 = vmatprep.subr.mxu0 0.0
        %2400 = vmatpush2.msra.mxu0 0.0
        %2401 = vmatprep.subr.mxu0 0.0
        %2402 = vmatpush2.msra.mxu0 0.0
        %2403 = vmatprep.mubr.f32.mxu0 0.0
        %2404 = vmatmul.mubr.f32.gmra.mxu0 %v2316
        %v2405 = vpop.f32.mrf.mxu0
        %v2406 = vadd.f32 0.0, %v2405
        %v2407 = vpop.f32.mrf.mxu0
        %2408 = vmatprep.mubr.f32.mxu0 0.0
        %2409 = vmatmul.mubr.f32.gmra.mxu0 %v2319
        %v2410 = vpop.f32.mrf.mxu0
        %v2411 = vadd.f32 0.0, %v2410
        %v2412 = vpop.f32.mrf.mxu0
        %2413 = vmatprep.mubr.f32.mxu0 0.0
        %2414 = vmatmul.mubr.f32.gmra.mxu0 %v2322
        %v2415 = vpop.f32.mrf.mxu0
        %v2416 = vadd.f32 0.0, %v2415
        %v2417 = vpop.f32.mrf.mxu0
        %2418 = vmatprep.mubr.f32.mxu0 0.0
        %2419 = vmatmul.mubr.f32.gmra.mxu0 %v2325
        %v2420 = vpop.f32.mrf.mxu0
        %v2421 = vadd.f32 0.0, %v2420
        %v2422 = vpop.f32.mrf.mxu0
        %2423 = vmatprep.mubr.f32.mxu0 0.0
        %2424 = vmatmul.mubr.f32.gmra.mxu0 %v2328
        %v2425 = vpop.f32.mrf.mxu0
        %v2426 = vadd.f32 0.0, %v2425
        %v2427 = vpop.f32.mrf.mxu0
        %2428 = vmatprep.mubr.f32.mxu0 0.0
        %2429 = vmatmul.mubr.f32.gmra.mxu0 %v2331
        %v2430 = vpop.f32.mrf.mxu0
        %v2431 = vadd.f32 0.0, %v2430
        %v2432 = vpop.f32.mrf.mxu0
        %2433 = vmatprep.mubr.f32.mxu0 0.0
        %2434 = vmatmul.mubr.f32.gmra.mxu0 %v2334
        %v2435 = vpop.f32.mrf.mxu0
        %v2436 = vadd.f32 0.0, %v2435
        %v2437 = vpop.f32.mrf.mxu0
        %2438 = vmatprep.mubr.f32.mxu0 0.0
        %2439 = vmatmul.mubr.f32.gmra.mxu0 %v2337
        %v2440 = vpop.f32.mrf.mxu0
        %v2441 = vadd.f32 0.0, %v2440
        %v2442 = vpop.f32.mrf.mxu0
        %2443 = vdwg.mxu0
        %v2444 = vsel %vm1735, %v1865, 0.0
        %2445 = vadd.xlane.f32.xlu0 %v2444
        %v2446 = vpop.xlane.xlu0 %2445
        %v2447 = vsel %vm1735, %v1867, 0.0
        %2448 = vadd.xlane.f32.xlu0 %v2447
        %v2449 = vpop.xlane.xlu0 %2448
        %v2450 = vsel %vm1735, %v1869, 0.0
        %2451 = vadd.xlane.f32.xlu0 %v2450
        %v2452 = vpop.xlane.xlu0 %2451
        %v2453 = vsel %vm1735, %v1871, 0.0
        %2454 = vadd.xlane.f32.xlu0 %v2453
        %v2455 = vpop.xlane.xlu0 %2454
        %v2456 = vsel %vm1735, %v1873, 0.0
        %2457 = vadd.xlane.f32.xlu0 %v2456
        %v2458 = vpop.xlane.xlu0 %2457
        %v2459 = vsel %vm1735, %v1875, 0.0
        %2460 = vadd.xlane.f32.xlu0 %v2459
        %v2461 = vpop.xlane.xlu0 %2460
        %v2462 = vsel %vm1735, %v1877, 0.0
        %2463 = vadd.xlane.f32.xlu0 %v2462
        %v2464 = vpop.xlane.xlu0 %2463
        %v2465 = vsel %vm1735, %v1879, 0.0
        %2466 = vadd.xlane.f32.xlu0 %v2465
        %v2467 = vpop.xlane.xlu0 %2466
        %v2468 = vsel %vm1735, %v1881, 0.0
        %2469 = vadd.xlane.f32.xlu0 %v2468
        %v2470 = vpop.xlane.xlu0 %2469
        %v2471 = vsel %vm1735, %v1883, 0.0
        %2472 = vadd.xlane.f32.xlu0 %v2471
        %v2473 = vpop.xlane.xlu0 %2472
        %v2474 = vsel %vm1735, %v1885, 0.0
        %2475 = vadd.xlane.f32.xlu0 %v2474
        %v2476 = vpop.xlane.xlu0 %2475
        %v2477 = vsel %vm1735, %v1887, 0.0
        %2478 = vadd.xlane.f32.xlu0 %v2477
        %v2479 = vpop.xlane.xlu0 %2478
        %v2480 = vsel %vm1735, %v1889, 0.0
        %2481 = vadd.xlane.f32.xlu0 %v2480
        %v2482 = vpop.xlane.xlu0 %2481
        %v2483 = vsel %vm1735, %v1891, 0.0
        %2484 = vadd.xlane.f32.xlu0 %v2483
        %v2485 = vpop.xlane.xlu0 %2484
        %v2486 = vsel %vm1735, %v1893, 0.0
        %2487 = vadd.xlane.f32.xlu0 %v2486
        %v2488 = vpop.xlane.xlu0 %2487
        %v2489 = vsel %vm1735, %v1895, 0.0
        %2490 = vadd.xlane.f32.xlu0 %v2489
        %v2491 = vpop.xlane.xlu0 %2490
        %v2492 = vsel %vm1735, %v1897, 0.0
        %2493 = vadd.xlane.f32.xlu0 %v2492
        %v2494 = vpop.xlane.xlu0 %2493
        %v2495 = vsel %vm1735, %v1899, 0.0
        %2496 = vadd.xlane.f32.xlu0 %v2495
        %v2497 = vpop.xlane.xlu0 %2496
        %v2498 = vsel %vm1735, %v1901, 0.0
        %2499 = vadd.xlane.f32.xlu0 %v2498
        %v2500 = vpop.xlane.xlu0 %2499
        %v2501 = vsel %vm1735, %v1903, 0.0
        %2502 = vadd.xlane.f32.xlu0 %v2501
        %v2503 = vpop.xlane.xlu0 %2502
        %v2504 = vsel %vm1735, %v1905, 0.0
        %2505 = vadd.xlane.f32.xlu0 %v2504
        %v2506 = vpop.xlane.xlu0 %2505
        %v2507 = vsel %vm1735, %v1907, 0.0
        %2508 = vadd.xlane.f32.xlu0 %v2507
        %v2509 = vpop.xlane.xlu0 %2508
        %v2510 = vsel %vm1735, %v1909, 0.0
        %2511 = vadd.xlane.f32.xlu0 %v2510
        %v2512 = vpop.xlane.xlu0 %2511
        %v2513 = vsel %vm1735, %v1911, 0.0
        %2514 = vadd.xlane.f32.xlu0 %v2513
        %v2515 = vpop.xlane.xlu0 %2514
        %v2516 = vsel %vm1735, %v1913, 0.0
        %2517 = vadd.xlane.f32.xlu0 %v2516
        %v2518 = vpop.xlane.xlu0 %2517
        %v2519 = vsel %vm1735, %v1915, 0.0
        %2520 = vadd.xlane.f32.xlu0 %v2519
        %v2521 = vpop.xlane.xlu0 %2520
        %v2522 = vsel %vm1735, %v1917, 0.0
        %2523 = vadd.xlane.f32.xlu0 %v2522
        %v2524 = vpop.xlane.xlu0 %2523
        %v2525 = vsel %vm1735, %v1919, 0.0
        %2526 = vadd.xlane.f32.xlu0 %v2525
        %v2527 = vpop.xlane.xlu0 %2526
        %v2528 = vsel %vm1735, %v1921, 0.0
        %2529 = vadd.xlane.f32.xlu0 %v2528
        %v2530 = vpop.xlane.xlu0 %2529
        %v2531 = vsel %vm1735, %v1923, 0.0
        %2532 = vadd.xlane.f32.xlu0 %v2531
        %v2533 = vpop.xlane.xlu0 %2532
        %v2534 = vsel %vm1735, %v1925, 0.0
        %2535 = vadd.xlane.f32.xlu0 %v2534
        %v2536 = vpop.xlane.xlu0 %2535
        %v2537 = vsel %vm1735, %v1927, 0.0
        %2538 = vadd.xlane.f32.xlu0 %v2537
        %v2539 = vpop.xlane.xlu0 %2538
        %v2540 = vrcp.pop %v2446
        %v2541 = vrcp.pop %v2449
        %v2542 = vrcp.pop %v2452
        %v2543 = vrcp.pop %v2455
        %v2544 = vrcp.pop %v2458
        %v2545 = vrcp.pop %v2461
        %v2546 = vrcp.pop %v2464
        %v2547 = vrcp.pop %v2467
        %v2548 = vrcp.pop %v2470
        %v2549 = vrcp.pop %v2473
        %v2550 = vrcp.pop %v2476
        %v2551 = vrcp.pop %v2479
        %v2552 = vrcp.pop %v2482
        %v2553 = vrcp.pop %v2485
        %v2554 = vrcp.pop %v2488
        %v2555 = vrcp.pop %v2491
        %v2556 = vrcp.pop %v2494
        %v2557 = vrcp.pop %v2497
        %v2558 = vrcp.pop %v2500
        %v2559 = vrcp.pop %v2503
        %v2560 = vrcp.pop %v2506
        %v2561 = vrcp.pop %v2509
        %v2562 = vrcp.pop %v2512
        %v2563 = vrcp.pop %v2515
        %v2564 = vrcp.pop %v2518
        %v2565 = vrcp.pop %v2521
        %v2566 = vrcp.pop %v2524
        %v2567 = vrcp.pop %v2527
        %v2568 = vrcp.pop %v2530
        %v2569 = vrcp.pop %v2533
        %v2570 = vrcp.pop %v2536
        %v2571 = vrcp.pop %v2539
        %v2572 = vmul.f32 %v2019, %v2540
        %v2573 = vmul.f32 %v2024, %v2541
        %v2574 = vmul.f32 %v2029, %v2542
        %v2575 = vmul.f32 %v2034, %v2543
        %v2576 = vmul.f32 %v2039, %v2544
        %v2577 = vmul.f32 %v2044, %v2545
        %v2578 = vmul.f32 %v2049, %v2546
        %v2579 = vmul.f32 %v2054, %v2547
        %v2580 = vmul.f32 %v2148, %v2548
        %v2581 = vmul.f32 %v2153, %v2549
        %v2582 = vmul.f32 %v2158, %v2550
        %v2583 = vmul.f32 %v2163, %v2551
        %v2584 = vmul.f32 %v2168, %v2552
        %v2585 = vmul.f32 %v2173, %v2553
        %v2586 = vmul.f32 %v2178, %v2554
        %v2587 = vmul.f32 %v2183, %v2555
        %v2588 = vmul.f32 %v2277, %v2556
        %v2589 = vmul.f32 %v2282, %v2557
        %v2590 = vmul.f32 %v2287, %v2558
        %v2591 = vmul.f32 %v2292, %v2559
        %v2592 = vmul.f32 %v2297, %v2560
        %v2593 = vmul.f32 %v2302, %v2561
        %v2594 = vmul.f32 %v2307, %v2562
        %v2595 = vmul.f32 %v2312, %v2563
        %v2596 = vmul.f32 %v2406, %v2564
        %v2597 = vmul.f32 %v2411, %v2565
        %v2598 = vmul.f32 %v2416, %v2566
        %v2599 = vmul.f32 %v2421, %v2567
        %v2600 = vmul.f32 %v2426, %v2568
        %v2601 = vmul.f32 %v2431, %v2569
        %v2602 = vmul.f32 %v2436, %v2570
        %v2603 = vmul.f32 %v2441, %v2571
        %v2604 = vld [vmem:[#allocation4] sm:$0xff]
        %v2605 = vld [vmem:[#allocation4 + $0x8] sm:$0xff]
        %v2606 = vld [vmem:[#allocation4 + $0x10] sm:$0xff]
        %v2607 = vld [vmem:[#allocation4 + $0x18] sm:$0xff]
        %v2609 = vsel %vm1186, %v2572, 0
        %v2612 = vsel %vm1186, %v2573, 0
        %v2615 = vsel %vm1186, %v2574, 0
        %v2618 = vsel %vm1186, %v2575, 0
        %v2621 = vsel %vm1186, %v2576, 0
        %v2624 = vsel %vm1186, %v2577, 0
        %v2627 = vsel %vm1186, %v2578, 0
        %v2630 = vsel %vm1186, %v2579, 0
        %2632 = vmatprep.subr.mxu0 0.0
        %2633 = vmatpush1.msra.mxu0 0.0
        %2634 = vmatprep.subr.mxu0 0.0
        %2635 = vmatpush1.msra.mxu0 0.0
        %2636 = vmatprep.subr.mxu0 0.0
        %2637 = vmatpush1.msra.mxu0 0.0
        %2638 = vmatprep.subr.mxu0 0.0
        %2639 = vmatpush1.msra.mxu0 0.0
        %2640 = vmatprep.subr.mxu0 0.0
        %2641 = vmatpush1.msra.mxu0 0.0
        %2642 = vmatprep.subr.mxu0 0.0
        %2643 = vmatpush1.msra.mxu0 0.0
        %2644 = vmatprep.subr.mxu0 0.0
        %2645 = vmatpush1.msra.mxu0 0.0
        %2646 = vmatprep.subr.mxu0 0.0
        %2647 = vmatpush1.msra.mxu0 0.0
        %2648 = vmatprep.subr.mxu0 0.0
        %2649 = vmatpush1.msra.mxu0 0.0
        %2650 = vmatprep.subr.mxu0 0.0
        %2651 = vmatpush1.msra.mxu0 0.0
        %2652 = vmatprep.subr.mxu0 0.0
        %2653 = vmatpush1.msra.mxu0 0.0
        %2654 = vmatprep.subr.mxu0 0.0
        %2655 = vmatpush1.msra.mxu0 0.0
        %2656 = vmatprep.subr.mxu0 0.0
        %2657 = vmatpush1.msra.mxu0 0.0
        %2658 = vmatprep.subr.mxu0 0.0
        %2659 = vmatpush1.msra.mxu0 0.0
        %2660 = vmatprep.subr.mxu0 0.0
        %2661 = vmatpush1.msra.mxu0 0.0
        %2662 = vmatprep.subr.mxu0 0.0
        %2663 = vmatpush1.msra.mxu0 %v2604
        %2664 = vmatprep.subr.mxu0 0.0
        %2665 = vmatpush2.msra.mxu0 0.0
        %2666 = vmatprep.subr.mxu0 0.0
        %2667 = vmatpush2.msra.mxu0 0.0
        %2668 = vmatprep.subr.mxu0 0.0
        %2669 = vmatpush2.msra.mxu0 0.0
        %2670 = vmatprep.subr.mxu0 0.0
        %2671 = vmatpush2.msra.mxu0 0.0
        %2672 = vmatprep.subr.mxu0 0.0
        %2673 = vmatpush2.msra.mxu0 0.0
        %2674 = vmatprep.subr.mxu0 0.0
        %2675 = vmatpush2.msra.mxu0 0.0
        %2676 = vmatprep.subr.mxu0 0.0
        %2677 = vmatpush2.msra.mxu0 0.0
        %2678 = vmatprep.subr.mxu0 0.0
        %2679 = vmatpush2.msra.mxu0 0.0
        %2680 = vmatprep.subr.mxu0 0.0
        %2681 = vmatpush2.msra.mxu0 0.0
        %2682 = vmatprep.subr.mxu0 0.0
        %2683 = vmatpush2.msra.mxu0 0.0
        %2684 = vmatprep.subr.mxu0 0.0
        %2685 = vmatpush2.msra.mxu0 0.0
        %2686 = vmatprep.subr.mxu0 0.0
        %2687 = vmatpush2.msra.mxu0 0.0
        %2688 = vmatprep.subr.mxu0 0.0
        %2689 = vmatpush2.msra.mxu0 0.0
        %2690 = vmatprep.subr.mxu0 0.0
        %2691 = vmatpush2.msra.mxu0 0.0
        %2692 = vmatprep.subr.mxu0 0.0
        %2693 = vmatpush2.msra.mxu0 0.0
        %2694 = vmatprep.subr.mxu0 0.0
        %2695 = vmatpush2.msra.mxu0 0.0
        %2696 = vmatprep.mubr.f32.mxu0 0.0
        %2697 = vmatmul.mubr.f32.gmra.mxu0 %v2609
        %v2698 = vpop.f32.mrf.mxu0
        %v2699 = vadd.f32 0.0, %v2698
        %v2700 = vpop.f32.mrf.mxu0
        %2701 = vmatprep.mubr.f32.mxu0 0.0
        %2702 = vmatmul.mubr.f32.gmra.mxu0 %v2612
        %v2703 = vpop.f32.mrf.mxu0
        %v2704 = vadd.f32 0.0, %v2703
        %v2705 = vpop.f32.mrf.mxu0
        %2706 = vmatprep.mubr.f32.mxu0 0.0
        %2707 = vmatmul.mubr.f32.gmra.mxu0 %v2615
        %v2708 = vpop.f32.mrf.mxu0
        %v2709 = vadd.f32 0.0, %v2708
        %v2710 = vpop.f32.mrf.mxu0
        %2711 = vmatprep.mubr.f32.mxu0 0.0
        %2712 = vmatmul.mubr.f32.gmra.mxu0 %v2618
        %v2713 = vpop.f32.mrf.mxu0
        %v2714 = vadd.f32 0.0, %v2713
        %v2715 = vpop.f32.mrf.mxu0
        %2716 = vmatprep.mubr.f32.mxu0 0.0
        %2717 = vmatmul.mubr.f32.gmra.mxu0 %v2621
        %v2718 = vpop.f32.mrf.mxu0
        %v2719 = vadd.f32 0.0, %v2718
        %v2720 = vpop.f32.mrf.mxu0
        %2721 = vmatprep.mubr.f32.mxu0 0.0
        %2722 = vmatmul.mubr.f32.gmra.mxu0 %v2624
        %v2723 = vpop.f32.mrf.mxu0
        %v2724 = vadd.f32 0.0, %v2723
        %v2725 = vpop.f32.mrf.mxu0
        %2726 = vmatprep.mubr.f32.mxu0 0.0
        %2727 = vmatmul.mubr.f32.gmra.mxu0 %v2627
        %v2728 = vpop.f32.mrf.mxu0
        %v2729 = vadd.f32 0.0, %v2728
        %v2730 = vpop.f32.mrf.mxu0
        %2731 = vmatprep.mubr.f32.mxu0 0.0
        %2732 = vmatmul.mubr.f32.gmra.mxu0 %v2630
        %v2733 = vpop.f32.mrf.mxu0
        %v2734 = vadd.f32 0.0, %v2733
        %v2735 = vpop.f32.mrf.mxu0
        %2736 = vdwg.mxu0
        %v2738 = vsel %vm1186, %v2580, 0
        %v2741 = vsel %vm1186, %v2581, 0
        %v2744 = vsel %vm1186, %v2582, 0
        %v2747 = vsel %vm1186, %v2583, 0
        %v2750 = vsel %vm1186, %v2584, 0
        %v2753 = vsel %vm1186, %v2585, 0
        %v2756 = vsel %vm1186, %v2586, 0
        %v2759 = vsel %vm1186, %v2587, 0
        %2761 = vmatprep.subr.mxu0 0.0
        %2762 = vmatpush1.msra.mxu0 0.0
        %2763 = vmatprep.subr.mxu0 0.0
        %2764 = vmatpush1.msra.mxu0 0.0
        %2765 = vmatprep.subr.mxu0 0.0
        %2766 = vmatpush1.msra.mxu0 0.0
        %2767 = vmatprep.subr.mxu0 0.0
        %2768 = vmatpush1.msra.mxu0 0.0
        %2769 = vmatprep.subr.mxu0 0.0
        %2770 = vmatpush1.msra.mxu0 0.0
        %2771 = vmatprep.subr.mxu0 0.0
        %2772 = vmatpush1.msra.mxu0 0.0
        %2773 = vmatprep.subr.mxu0 0.0
        %2774 = vmatpush1.msra.mxu0 0.0
        %2775 = vmatprep.subr.mxu0 0.0
        %2776 = vmatpush1.msra.mxu0 0.0
        %2777 = vmatprep.subr.mxu0 0.0
        %2778 = vmatpush1.msra.mxu0 0.0
        %2779 = vmatprep.subr.mxu0 0.0
        %2780 = vmatpush1.msra.mxu0 0.0
        %2781 = vmatprep.subr.mxu0 0.0
        %2782 = vmatpush1.msra.mxu0 0.0
        %2783 = vmatprep.subr.mxu0 0.0
        %2784 = vmatpush1.msra.mxu0 0.0
        %2785 = vmatprep.subr.mxu0 0.0
        %2786 = vmatpush1.msra.mxu0 0.0
        %2787 = vmatprep.subr.mxu0 0.0
        %2788 = vmatpush1.msra.mxu0 0.0
        %2789 = vmatprep.subr.mxu0 0.0
        %2790 = vmatpush1.msra.mxu0 0.0
        %2791 = vmatprep.subr.mxu0 0.0
        %2792 = vmatpush1.msra.mxu0 %v2605
        %2793 = vmatprep.subr.mxu0 0.0
        %2794 = vmatpush2.msra.mxu0 0.0
        %2795 = vmatprep.subr.mxu0 0.0
        %2796 = vmatpush2.msra.mxu0 0.0
        %2797 = vmatprep.subr.mxu0 0.0
        %2798 = vmatpush2.msra.mxu0 0.0
        %2799 = vmatprep.subr.mxu0 0.0
        %2800 = vmatpush2.msra.mxu0 0.0
        %2801 = vmatprep.subr.mxu0 0.0
        %2802 = vmatpush2.msra.mxu0 0.0
        %2803 = vmatprep.subr.mxu0 0.0
        %2804 = vmatpush2.msra.mxu0 0.0
        %2805 = vmatprep.subr.mxu0 0.0
        %2806 = vmatpush2.msra.mxu0 0.0
        %2807 = vmatprep.subr.mxu0 0.0
        %2808 = vmatpush2.msra.mxu0 0.0
        %2809 = vmatprep.subr.mxu0 0.0
        %2810 = vmatpush2.msra.mxu0 0.0
        %2811 = vmatprep.subr.mxu0 0.0
        %2812 = vmatpush2.msra.mxu0 0.0
        %2813 = vmatprep.subr.mxu0 0.0
        %2814 = vmatpush2.msra.mxu0 0.0
        %2815 = vmatprep.subr.mxu0 0.0
        %2816 = vmatpush2.msra.mxu0 0.0
        %2817 = vmatprep.subr.mxu0 0.0
        %2818 = vmatpush2.msra.mxu0 0.0
        %2819 = vmatprep.subr.mxu0 0.0
        %2820 = vmatpush2.msra.mxu0 0.0
        %2821 = vmatprep.subr.mxu0 0.0
        %2822 = vmatpush2.msra.mxu0 0.0
        %2823 = vmatprep.subr.mxu0 0.0
        %2824 = vmatpush2.msra.mxu0 0.0
        %2825 = vmatprep.mubr.f32.mxu0 0.0
        %2826 = vmatmul.mubr.f32.gmra.mxu0 %v2738
        %v2827 = vpop.f32.mrf.mxu0
        %v2828 = vadd.f32 0.0, %v2827
        %v2829 = vpop.f32.mrf.mxu0
        %2830 = vmatprep.mubr.f32.mxu0 0.0
        %2831 = vmatmul.mubr.f32.gmra.mxu0 %v2741
        %v2832 = vpop.f32.mrf.mxu0
        %v2833 = vadd.f32 0.0, %v2832
        %v2834 = vpop.f32.mrf.mxu0
        %2835 = vmatprep.mubr.f32.mxu0 0.0
        %2836 = vmatmul.mubr.f32.gmra.mxu0 %v2744
        %v2837 = vpop.f32.mrf.mxu0
        %v2838 = vadd.f32 0.0, %v2837
        %v2839 = vpop.f32.mrf.mxu0
        %2840 = vmatprep.mubr.f32.mxu0 0.0
        %2841 = vmatmul.mubr.f32.gmra.mxu0 %v2747
        %v2842 = vpop.f32.mrf.mxu0
        %v2843 = vadd.f32 0.0, %v2842
        %v2844 = vpop.f32.mrf.mxu0
        %2845 = vmatprep.mubr.f32.mxu0 0.0
        %2846 = vmatmul.mubr.f32.gmra.mxu0 %v2750
        %v2847 = vpop.f32.mrf.mxu0
        %v2848 = vadd.f32 0.0, %v2847
        %v2849 = vpop.f32.mrf.mxu0
        %2850 = vmatprep.mubr.f32.mxu0 0.0
        %2851 = vmatmul.mubr.f32.gmra.mxu0 %v2753
        %v2852 = vpop.f32.mrf.mxu0
        %v2853 = vadd.f32 0.0, %v2852
        %v2854 = vpop.f32.mrf.mxu0
        %2855 = vmatprep.mubr.f32.mxu0 0.0
        %2856 = vmatmul.mubr.f32.gmra.mxu0 %v2756
        %v2857 = vpop.f32.mrf.mxu0
        %v2858 = vadd.f32 0.0, %v2857
        %v2859 = vpop.f32.mrf.mxu0
        %2860 = vmatprep.mubr.f32.mxu0 0.0
        %2861 = vmatmul.mubr.f32.gmra.mxu0 %v2759
        %v2862 = vpop.f32.mrf.mxu0
        %v2863 = vadd.f32 0.0, %v2862
        %v2864 = vpop.f32.mrf.mxu0
        %2865 = vdwg.mxu0
        %v2867 = vsel %vm1186, %v2588, 0
        %v2870 = vsel %vm1186, %v2589, 0
        %v2873 = vsel %vm1186, %v2590, 0
        %v2876 = vsel %vm1186, %v2591, 0
        %v2879 = vsel %vm1186, %v2592, 0
        %v2882 = vsel %vm1186, %v2593, 0
        %v2885 = vsel %vm1186, %v2594, 0
        %v2888 = vsel %vm1186, %v2595, 0
        %2890 = vmatprep.subr.mxu0 0.0
        %2891 = vmatpush1.msra.mxu0 0.0
        %2892 = vmatprep.subr.mxu0 0.0
        %2893 = vmatpush1.msra.mxu0 0.0
        %2894 = vmatprep.subr.mxu0 0.0
        %2895 = vmatpush1.msra.mxu0 0.0
        %2896 = vmatprep.subr.mxu0 0.0
        %2897 = vmatpush1.msra.mxu0 0.0
        %2898 = vmatprep.subr.mxu0 0.0
        %2899 = vmatpush1.msra.mxu0 0.0
        %2900 = vmatprep.subr.mxu0 0.0
        %2901 = vmatpush1.msra.mxu0 0.0
        %2902 = vmatprep.subr.mxu0 0.0
        %2903 = vmatpush1.msra.mxu0 0.0
        %2904 = vmatprep.subr.mxu0 0.0
        %2905 = vmatpush1.msra.mxu0 0.0
        %2906 = vmatprep.subr.mxu0 0.0
        %2907 = vmatpush1.msra.mxu0 0.0
        %2908 = vmatprep.subr.mxu0 0.0
        %2909 = vmatpush1.msra.mxu0 0.0
        %2910 = vmatprep.subr.mxu0 0.0
        %2911 = vmatpush1.msra.mxu0 0.0
        %2912 = vmatprep.subr.mxu0 0.0
        %2913 = vmatpush1.msra.mxu0 0.0
        %2914 = vmatprep.subr.mxu0 0.0
        %2915 = vmatpush1.msra.mxu0 0.0
        %2916 = vmatprep.subr.mxu0 0.0
        %2917 = vmatpush1.msra.mxu0 0.0
        %2918 = vmatprep.subr.mxu0 0.0
        %2919 = vmatpush1.msra.mxu0 0.0
        %2920 = vmatprep.subr.mxu0 0.0
        %2921 = vmatpush1.msra.mxu0 %v2606
        %2922 = vmatprep.subr.mxu0 0.0
        %2923 = vmatpush2.msra.mxu0 0.0
        %2924 = vmatprep.subr.mxu0 0.0
        %2925 = vmatpush2.msra.mxu0 0.0
        %2926 = vmatprep.subr.mxu0 0.0
        %2927 = vmatpush2.msra.mxu0 0.0
        %2928 = vmatprep.subr.mxu0 0.0
        %2929 = vmatpush2.msra.mxu0 0.0
        %2930 = vmatprep.subr.mxu0 0.0
        %2931 = vmatpush2.msra.mxu0 0.0
        %2932 = vmatprep.subr.mxu0 0.0
        %2933 = vmatpush2.msra.mxu0 0.0
        %2934 = vmatprep.subr.mxu0 0.0
        %2935 = vmatpush2.msra.mxu0 0.0
        %2936 = vmatprep.subr.mxu0 0.0
        %2937 = vmatpush2.msra.mxu0 0.0
        %2938 = vmatprep.subr.mxu0 0.0
        %2939 = vmatpush2.msra.mxu0 0.0
        %2940 = vmatprep.subr.mxu0 0.0
        %2941 = vmatpush2.msra.mxu0 0.0
        %2942 = vmatprep.subr.mxu0 0.0
        %2943 = vmatpush2.msra.mxu0 0.0
        %2944 = vmatprep.subr.mxu0 0.0
        %2945 = vmatpush2.msra.mxu0 0.0
        %2946 = vmatprep.subr.mxu0 0.0
        %2947 = vmatpush2.msra.mxu0 0.0
        %2948 = vmatprep.subr.mxu0 0.0
        %2949 = vmatpush2.msra.mxu0 0.0
        %2950 = vmatprep.subr.mxu0 0.0
        %2951 = vmatpush2.msra.mxu0 0.0
        %2952 = vmatprep.subr.mxu0 0.0
        %2953 = vmatpush2.msra.mxu0 0.0
        %2954 = vmatprep.mubr.f32.mxu0 0.0
        %2955 = vmatmul.mubr.f32.gmra.mxu0 %v2867
        %v2956 = vpop.f32.mrf.mxu0
        %v2957 = vadd.f32 0.0, %v2956
        %v2958 = vpop.f32.mrf.mxu0
        %2959 = vmatprep.mubr.f32.mxu0 0.0
        %2960 = vmatmul.mubr.f32.gmra.mxu0 %v2870
        %v2961 = vpop.f32.mrf.mxu0
        %v2962 = vadd.f32 0.0, %v2961
        %v2963 = vpop.f32.mrf.mxu0
        %2964 = vmatprep.mubr.f32.mxu0 0.0
        %2965 = vmatmul.mubr.f32.gmra.mxu0 %v2873
        %v2966 = vpop.f32.mrf.mxu0
        %v2967 = vadd.f32 0.0, %v2966
        %v2968 = vpop.f32.mrf.mxu0
        %2969 = vmatprep.mubr.f32.mxu0 0.0
        %2970 = vmatmul.mubr.f32.gmra.mxu0 %v2876
        %v2971 = vpop.f32.mrf.mxu0
        %v2972 = vadd.f32 0.0, %v2971
        %v2973 = vpop.f32.mrf.mxu0
        %2974 = vmatprep.mubr.f32.mxu0 0.0
        %2975 = vmatmul.mubr.f32.gmra.mxu0 %v2879
        %v2976 = vpop.f32.mrf.mxu0
        %v2977 = vadd.f32 0.0, %v2976
        %v2978 = vpop.f32.mrf.mxu0
        %2979 = vmatprep.mubr.f32.mxu0 0.0
        %2980 = vmatmul.mubr.f32.gmra.mxu0 %v2882
        %v2981 = vpop.f32.mrf.mxu0
        %v2982 = vadd.f32 0.0, %v2981
        %v2983 = vpop.f32.mrf.mxu0
        %2984 = vmatprep.mubr.f32.mxu0 0.0
        %2985 = vmatmul.mubr.f32.gmra.mxu0 %v2885
        %v2986 = vpop.f32.mrf.mxu0
        %v2987 = vadd.f32 0.0, %v2986
        %v2988 = vpop.f32.mrf.mxu0
        %2989 = vmatprep.mubr.f32.mxu0 0.0
        %2990 = vmatmul.mubr.f32.gmra.mxu0 %v2888
        %v2991 = vpop.f32.mrf.mxu0
        %v2992 = vadd.f32 0.0, %v2991
        %v2993 = vpop.f32.mrf.mxu0
        %2994 = vdwg.mxu0
        %v2996 = vsel %vm1186, %v2596, 0
        %v2999 = vsel %vm1186, %v2597, 0
        %v3002 = vsel %vm1186, %v2598, 0
        %v3005 = vsel %vm1186, %v2599, 0
        %v3008 = vsel %vm1186, %v2600, 0
        %v3011 = vsel %vm1186, %v2601, 0
        %v3014 = vsel %vm1186, %v2602, 0
        %v3017 = vsel %vm1186, %v2603, 0
        %3019 = vmatprep.subr.mxu0 0.0
        %3020 = vmatpush1.msra.mxu0 0.0
        %3021 = vmatprep.subr.mxu0 0.0
        %3022 = vmatpush1.msra.mxu0 0.0
        %3023 = vmatprep.subr.mxu0 0.0
        %3024 = vmatpush1.msra.mxu0 0.0
        %3025 = vmatprep.subr.mxu0 0.0
        %3026 = vmatpush1.msra.mxu0 0.0
        %3027 = vmatprep.subr.mxu0 0.0
        %3028 = vmatpush1.msra.mxu0 0.0
        %3029 = vmatprep.subr.mxu0 0.0
        %3030 = vmatpush1.msra.mxu0 0.0
        %3031 = vmatprep.subr.mxu0 0.0
        %3032 = vmatpush1.msra.mxu0 0.0
        %3033 = vmatprep.subr.mxu0 0.0
        %3034 = vmatpush1.msra.mxu0 0.0
        %3035 = vmatprep.subr.mxu0 0.0
        %3036 = vmatpush1.msra.mxu0 0.0
        %3037 = vmatprep.subr.mxu0 0.0
        %3038 = vmatpush1.msra.mxu0 0.0
        %3039 = vmatprep.subr.mxu0 0.0
        %3040 = vmatpush1.msra.mxu0 0.0
        %3041 = vmatprep.subr.mxu0 0.0
        %3042 = vmatpush1.msra.mxu0 0.0
        %3043 = vmatprep.subr.mxu0 0.0
        %3044 = vmatpush1.msra.mxu0 0.0
        %3045 = vmatprep.subr.mxu0 0.0
        %3046 = vmatpush1.msra.mxu0 0.0
        %3047 = vmatprep.subr.mxu0 0.0
        %3048 = vmatpush1.msra.mxu0 0.0
        %3049 = vmatprep.subr.mxu0 0.0
        %3050 = vmatpush1.msra.mxu0 %v2607
        %3051 = vmatprep.subr.mxu0 0.0
        %3052 = vmatpush2.msra.mxu0 0.0
        %3053 = vmatprep.subr.mxu0 0.0
        %3054 = vmatpush2.msra.mxu0 0.0
        %3055 = vmatprep.subr.mxu0 0.0
        %3056 = vmatpush2.msra.mxu0 0.0
        %3057 = vmatprep.subr.mxu0 0.0
        %3058 = vmatpush2.msra.mxu0 0.0
        %3059 = vmatprep.subr.mxu0 0.0
        %3060 = vmatpush2.msra.mxu0 0.0
        %3061 = vmatprep.subr.mxu0 0.0
        %3062 = vmatpush2.msra.mxu0 0.0
        %3063 = vmatprep.subr.mxu0 0.0
        %3064 = vmatpush2.msra.mxu0 0.0
        %3065 = vmatprep.subr.mxu0 0.0
        %3066 = vmatpush2.msra.mxu0 0.0
        %3067 = vmatprep.subr.mxu0 0.0
        %3068 = vmatpush2.msra.mxu0 0.0
        %3069 = vmatprep.subr.mxu0 0.0
        %3070 = vmatpush2.msra.mxu0 0.0
        %3071 = vmatprep.subr.mxu0 0.0
        %3072 = vmatpush2.msra.mxu0 0.0
        %3073 = vmatprep.subr.mxu0 0.0
        %3074 = vmatpush2.msra.mxu0 0.0
        %3075 = vmatprep.subr.mxu0 0.0
        %3076 = vmatpush2.msra.mxu0 0.0
        %3077 = vmatprep.subr.mxu0 0.0
        %3078 = vmatpush2.msra.mxu0 0.0
        %3079 = vmatprep.subr.mxu0 0.0
        %3080 = vmatpush2.msra.mxu0 0.0
        %3081 = vmatprep.subr.mxu0 0.0
        %3082 = vmatpush2.msra.mxu0 0.0
        %3083 = vmatprep.mubr.f32.mxu0 0.0
        %3084 = vmatmul.mubr.f32.gmra.mxu0 %v2996
        %v3085 = vpop.f32.mrf.mxu0
        %v3086 = vadd.f32 0.0, %v3085
        %v3087 = vpop.f32.mrf.mxu0
        %3088 = vmatprep.mubr.f32.mxu0 0.0
        %3089 = vmatmul.mubr.f32.gmra.mxu0 %v2999
        %v3090 = vpop.f32.mrf.mxu0
        %v3091 = vadd.f32 0.0, %v3090
        %v3092 = vpop.f32.mrf.mxu0
        %3093 = vmatprep.mubr.f32.mxu0 0.0
        %3094 = vmatmul.mubr.f32.gmra.mxu0 %v3002
        %v3095 = vpop.f32.mrf.mxu0
        %v3096 = vadd.f32 0.0, %v3095
        %v3097 = vpop.f32.mrf.mxu0
        %3098 = vmatprep.mubr.f32.mxu0 0.0
        %3099 = vmatmul.mubr.f32.gmra.mxu0 %v3005
        %v3100 = vpop.f32.mrf.mxu0
        %v3101 = vadd.f32 0.0, %v3100
        %v3102 = vpop.f32.mrf.mxu0
        %3103 = vmatprep.mubr.f32.mxu0 0.0
        %3104 = vmatmul.mubr.f32.gmra.mxu0 %v3008
        %v3105 = vpop.f32.mrf.mxu0
        %v3106 = vadd.f32 0.0, %v3105
        %v3107 = vpop.f32.mrf.mxu0
        %3108 = vmatprep.mubr.f32.mxu0 0.0
        %3109 = vmatmul.mubr.f32.gmra.mxu0 %v3011
        %v3110 = vpop.f32.mrf.mxu0
        %v3111 = vadd.f32 0.0, %v3110
        %v3112 = vpop.f32.mrf.mxu0
        %3113 = vmatprep.mubr.f32.mxu0 0.0
        %3114 = vmatmul.mubr.f32.gmra.mxu0 %v3014
        %v3115 = vpop.f32.mrf.mxu0
        %v3116 = vadd.f32 0.0, %v3115
        %v3117 = vpop.f32.mrf.mxu0
        %3118 = vmatprep.mubr.f32.mxu0 0.0
        %3119 = vmatmul.mubr.f32.gmra.mxu0 %v3017
        %v3120 = vpop.f32.mrf.mxu0
        %v3121 = vadd.f32 0.0, %v3120
        %v3122 = vpop.f32.mrf.mxu0
        %3123 = vdwg.mxu0
        %v3124 = vsel %vm477, %v2699, 0.0
        %v3125 = vsel %vm477, %v2828, 0.0
        %v3126 = vadd.f32 %v3124, %v3125
        %v3127 = vsel %vm477, %v2957, 0.0
        %v3128 = vadd.f32 %v3126, %v3127
        %v3129 = vsel %vm477, %v3086, 0.0
        %v3130 = vadd.f32 %v3128, %v3129
        %v3131 = vsel %vm477, %v2704, 0.0
        %v3132 = vsel %vm477, %v2833, 0.0
        %v3133 = vadd.f32 %v3131, %v3132
        %v3134 = vsel %vm477, %v2962, 0.0
        %v3135 = vadd.f32 %v3133, %v3134
        %v3136 = vsel %vm477, %v3091, 0.0
        %v3137 = vadd.f32 %v3135, %v3136
        %v3138 = vsel %vm477, %v2709, 0.0
        %v3139 = vsel %vm477, %v2838, 0.0
        %v3140 = vadd.f32 %v3138, %v3139
        %v3141 = vsel %vm477, %v2967, 0.0
        %v3142 = vadd.f32 %v3140, %v3141
        %v3143 = vsel %vm477, %v3096, 0.0
        %v3144 = vadd.f32 %v3142, %v3143
        %v3145 = vsel %vm477, %v2714, 0.0
        %v3146 = vsel %vm477, %v2843, 0.0
        %v3147 = vadd.f32 %v3145, %v3146
        %v3148 = vsel %vm477, %v2972, 0.0
        %v3149 = vadd.f32 %v3147, %v3148
        %v3150 = vsel %vm477, %v3101, 0.0
        %v3151 = vadd.f32 %v3149, %v3150
        %v3152 = vsel %vm477, %v2719, 0.0
        %v3153 = vsel %vm477, %v2848, 0.0
        %v3154 = vadd.f32 %v3152, %v3153
        %v3155 = vsel %vm477, %v2977, 0.0
        %v3156 = vadd.f32 %v3154, %v3155
        %v3157 = vsel %vm477, %v3106, 0.0
        %v3158 = vadd.f32 %v3156, %v3157
        %v3159 = vsel %vm477, %v2724, 0.0
        %v3160 = vsel %vm477, %v2853, 0.0
        %v3161 = vadd.f32 %v3159, %v3160
        %v3162 = vsel %vm477, %v2982, 0.0
        %v3163 = vadd.f32 %v3161, %v3162
        %v3164 = vsel %vm477, %v3111, 0.0
        %v3165 = vadd.f32 %v3163, %v3164
        %v3166 = vsel %vm477, %v2729, 0.0
        %v3167 = vsel %vm477, %v2858, 0.0
        %v3168 = vadd.f32 %v3166, %v3167
        %v3169 = vsel %vm477, %v2987, 0.0
        %v3170 = vadd.f32 %v3168, %v3169
        %v3171 = vsel %vm477, %v3116, 0.0
        %v3172 = vadd.f32 %v3170, %v3171
        %v3173 = vsel %vm477, %v2734, 0.0
        %v3174 = vsel %vm477, %v2863, 0.0
        %v3175 = vadd.f32 %v3173, %v3174
        %v3176 = vsel %vm477, %v2992, 0.0
        %v3177 = vadd.f32 %v3175, %v3176
        %v3178 = vsel %vm477, %v3121, 0.0
        %v3179 = vadd.f32 %v3177, %v3178
        %v3180 = vld [vmem:[%s10] sm:$0x1]
        %v3182 = vlaneseq
        %v3183 = vshrl.u32 %v3182, 7
        %v3184 = vsub.s32 0, %v3183
        %v3185 = vrot.slane %v3180, %v3184
        %v3187 = vadd.f32 %v3130, %v3185
        %v3188 = vadd.f32 %v3137, %v3185
        %v3189 = vadd.f32 %v3144, %v3185
        %v3190 = vadd.f32 %v3151, %v3185
        %v3191 = vadd.f32 %v3158, %v3185
        %v3192 = vadd.f32 %v3165, %v3185
        %v3193 = vadd.f32 %v3172, %v3185
        %v3194 = vadd.f32 %v3179, %v3185
        %v3195 = vadd.f32 %v3187, %v569
        %v3196 = vadd.f32 %v3188, %v574
        %v3197 = vadd.f32 %v3189, %v579
        %v3198 = vadd.f32 %v3190, %v584
        %v3199 = vadd.f32 %v3191, %v589
        %v3200 = vadd.f32 %v3192, %v594
        %v3201 = vadd.f32 %v3193, %v599
        %v3202 = vadd.f32 %v3194, %v604
        %v3203 = vld [vmem:[#allocation6] sm:$0xff]
        %v3204 = vld [vmem:[#allocation6 + $0x8] sm:$0xff]
        %v3205 = vld [vmem:[#allocation6 + $0x10] sm:$0xff]
        %v3206 = vld [vmem:[#allocation6 + $0x18] sm:$0xff]
        %v3208 = vsel %vm477, %v3195, 0
        %v3211 = vsel %vm477, %v3196, 0
        %v3214 = vsel %vm477, %v3197, 0
        %v3217 = vsel %vm477, %v3198, 0
        %v3220 = vsel %vm477, %v3199, 0
        %v3223 = vsel %vm477, %v3200, 0
        %v3226 = vsel %vm477, %v3201, 0
        %v3229 = vsel %vm477, %v3202, 0
        %3231 = vmatprep.subr.mxu0 0.0
        %3232 = vmatpush1.msra.mxu0 0.0
        %3233 = vmatprep.subr.mxu0 0.0
        %3234 = vmatpush1.msra.mxu0 0.0
        %3235 = vmatprep.subr.mxu0 0.0
        %3236 = vmatpush1.msra.mxu0 0.0
        %3237 = vmatprep.subr.mxu0 0.0
        %3238 = vmatpush1.msra.mxu0 0.0
        %3239 = vmatprep.subr.mxu0 0.0
        %3240 = vmatpush1.msra.mxu0 0.0
        %3241 = vmatprep.subr.mxu0 0.0
        %3242 = vmatpush1.msra.mxu0 0.0
        %3243 = vmatprep.subr.mxu0 0.0
        %3244 = vmatpush1.msra.mxu0 0.0
        %3245 = vmatprep.subr.mxu0 0.0
        %3246 = vmatpush1.msra.mxu0 0.0
        %3247 = vmatprep.subr.mxu0 0.0
        %3248 = vmatpush1.msra.mxu0 0.0
        %3249 = vmatprep.subr.mxu0 0.0
        %3250 = vmatpush1.msra.mxu0 0.0
        %3251 = vmatprep.subr.mxu0 0.0
        %3252 = vmatpush1.msra.mxu0 0.0
        %3253 = vmatprep.subr.mxu0 0.0
        %3254 = vmatpush1.msra.mxu0 0.0
        %3255 = vmatprep.subr.mxu0 0.0
        %3256 = vmatpush1.msra.mxu0 %v3206
        %3257 = vmatprep.subr.mxu0 0.0
        %3258 = vmatpush1.msra.mxu0 %v3205
        %3259 = vmatprep.subr.mxu0 0.0
        %3260 = vmatpush1.msra.mxu0 %v3204
        %3261 = vmatprep.subr.mxu0 0.0
        %3262 = vmatpush1.msra.mxu0 %v3203
        %3263 = vmatprep.subr.mxu0 0.0
        %3264 = vmatpush2.msra.mxu0 0.0
        %3265 = vmatprep.subr.mxu0 0.0
        %3266 = vmatpush2.msra.mxu0 0.0
        %3267 = vmatprep.subr.mxu0 0.0
        %3268 = vmatpush2.msra.mxu0 0.0
        %3269 = vmatprep.subr.mxu0 0.0
        %3270 = vmatpush2.msra.mxu0 0.0
        %3271 = vmatprep.subr.mxu0 0.0
        %3272 = vmatpush2.msra.mxu0 0.0
        %3273 = vmatprep.subr.mxu0 0.0
        %3274 = vmatpush2.msra.mxu0 0.0
        %3275 = vmatprep.subr.mxu0 0.0
        %3276 = vmatpush2.msra.mxu0 0.0
        %3277 = vmatprep.subr.mxu0 0.0
        %3278 = vmatpush2.msra.mxu0 0.0
        %3279 = vmatprep.subr.mxu0 0.0
        %3280 = vmatpush2.msra.mxu0 0.0
        %3281 = vmatprep.subr.mxu0 0.0
        %3282 = vmatpush2.msra.mxu0 0.0
        %3283 = vmatprep.subr.mxu0 0.0
        %3284 = vmatpush2.msra.mxu0 0.0
        %3285 = vmatprep.subr.mxu0 0.0
        %3286 = vmatpush2.msra.mxu0 0.0
        %3287 = vmatprep.subr.mxu0 0.0
        %3288 = vmatpush2.msra.mxu0 0.0
        %3289 = vmatprep.subr.mxu0 0.0
        %3290 = vmatpush2.msra.mxu0 0.0
        %3291 = vmatprep.subr.mxu0 0.0
        %3292 = vmatpush2.msra.mxu0 0.0
        %3293 = vmatprep.subr.mxu0 0.0
        %3294 = vmatpush2.msra.mxu0 0.0
        %3295 = vmatprep.mubr.f32.mxu0 0.0
        %3296 = vmatmul.mubr.f32.gmra.mxu0 %v3208
        %v3297 = vpop.f32.mrf.mxu0
        %v3298 = vadd.f32 %v3195, %v3297
        %v3299 = vpop.f32.mrf.mxu0
        %3300 = vmatprep.mubr.f32.mxu0 0.0
        %3301 = vmatmul.mubr.f32.gmra.mxu0 %v3211
        %v3302 = vpop.f32.mrf.mxu0
        %v3303 = vadd.f32 %v3196, %v3302
        %v3304 = vpop.f32.mrf.mxu0
        %3305 = vmatprep.mubr.f32.mxu0 0.0
        %3306 = vmatmul.mubr.f32.gmra.mxu0 %v3214
        %v3307 = vpop.f32.mrf.mxu0
        %v3308 = vadd.f32 %v3197, %v3307
        %v3309 = vpop.f32.mrf.mxu0
        %3310 = vmatprep.mubr.f32.mxu0 0.0
        %3311 = vmatmul.mubr.f32.gmra.mxu0 %v3217
        %v3312 = vpop.f32.mrf.mxu0
        %v3313 = vadd.f32 %v3198, %v3312
        %v3314 = vpop.f32.mrf.mxu0
        %3315 = vmatprep.mubr.f32.mxu0 0.0
        %3316 = vmatmul.mubr.f32.gmra.mxu0 %v3220
        %v3317 = vpop.f32.mrf.mxu0
        %v3318 = vadd.f32 %v3199, %v3317
        %v3319 = vpop.f32.mrf.mxu0
        %3320 = vmatprep.mubr.f32.mxu0 0.0
        %3321 = vmatmul.mubr.f32.gmra.mxu0 %v3223
        %v3322 = vpop.f32.mrf.mxu0
        %v3323 = vadd.f32 %v3200, %v3322
        %v3324 = vpop.f32.mrf.mxu0
        %3325 = vmatprep.mubr.f32.mxu0 0.0
        %3326 = vmatmul.mubr.f32.gmra.mxu0 %v3226
        %v3327 = vpop.f32.mrf.mxu0
        %v3328 = vadd.f32 %v3201, %v3327
        %v3329 = vpop.f32.mrf.mxu0
        %3330 = vmatprep.mubr.f32.mxu0 0.0
        %3331 = vmatmul.mubr.f32.gmra.mxu0 %v3229
        %v3332 = vpop.f32.mrf.mxu0
        %v3333 = vadd.f32 %v3202, %v3332
        %v3334 = vpop.f32.mrf.mxu0
        %3335 = vdwg.mxu0
        %s3336 = scalar_lea.vmem %s3, 32
        %v3337 = vld [vmem:[%s3336] sm:$0xff]
        %v3338 = vld [vmem:[%s3336 + $0x8] sm:$0xff]
        %v3339 = vld [vmem:[%s3336 + $0x10] sm:$0xff]
        %v3340 = vld [vmem:[%s3336 + $0x18] sm:$0xff]
        %s3341 = scalar_lea.vmem %s6, 1
        %v3342 = vld [vmem:[%s3341] sm:$0x1]
        %v3344 = vlaneseq
        %v3345 = vshrl.u32 %v3344, 7
        %v3346 = vsub.s32 0, %v3345
        %v3347 = vrot.slane %v3342, %v3346
        %v3350 = vsel %vm477, %v3298, 0
        %v3353 = vsel %vm477, %v3303, 0
        %v3356 = vsel %vm477, %v3308, 0
        %v3359 = vsel %vm477, %v3313, 0
        %v3362 = vsel %vm477, %v3318, 0
        %v3365 = vsel %vm477, %v3323, 0
        %v3368 = vsel %vm477, %v3328, 0
        %v3371 = vsel %vm477, %v3333, 0
        %3373 = vmatprep.subr.mxu0 0.0
        %3374 = vmatpush1.msra.mxu0 0.0
        %3375 = vmatprep.subr.mxu0 0.0
        %3376 = vmatpush1.msra.mxu0 0.0
        %3377 = vmatprep.subr.mxu0 0.0
        %3378 = vmatpush1.msra.mxu0 0.0
        %3379 = vmatprep.subr.mxu0 0.0
        %3380 = vmatpush1.msra.mxu0 0.0
        %3381 = vmatprep.subr.mxu0 0.0
        %3382 = vmatpush1.msra.mxu0 0.0
        %3383 = vmatprep.subr.mxu0 0.0
        %3384 = vmatpush1.msra.mxu0 0.0
        %3385 = vmatprep.subr.mxu0 0.0
        %3386 = vmatpush1.msra.mxu0 0.0
        %3387 = vmatprep.subr.mxu0 0.0
        %3388 = vmatpush1.msra.mxu0 0.0
        %3389 = vmatprep.subr.mxu0 0.0
        %3390 = vmatpush1.msra.mxu0 0.0
        %3391 = vmatprep.subr.mxu0 0.0
        %3392 = vmatpush1.msra.mxu0 0.0
        %3393 = vmatprep.subr.mxu0 0.0
        %3394 = vmatpush1.msra.mxu0 0.0
        %3395 = vmatprep.subr.mxu0 0.0
        %3396 = vmatpush1.msra.mxu0 0.0
        %3397 = vmatprep.subr.mxu0 0.0
        %3398 = vmatpush1.msra.mxu0 %v3340
        %3399 = vmatprep.subr.mxu0 0.0
        %3400 = vmatpush1.msra.mxu0 %v3339
        %3401 = vmatprep.subr.mxu0 0.0
        %3402 = vmatpush1.msra.mxu0 %v3338
        %3403 = vmatprep.subr.mxu0 0.0
        %3404 = vmatpush1.msra.mxu0 %v3337
        %3405 = vmatprep.subr.mxu0 0.0
        %3406 = vmatpush2.msra.mxu0 0.0
        %3407 = vmatprep.subr.mxu0 0.0
        %3408 = vmatpush2.msra.mxu0 0.0
        %3409 = vmatprep.subr.mxu0 0.0
        %3410 = vmatpush2.msra.mxu0 0.0
        %3411 = vmatprep.subr.mxu0 0.0
        %3412 = vmatpush2.msra.mxu0 0.0
        %3413 = vmatprep.subr.mxu0 0.0
        %3414 = vmatpush2.msra.mxu0 0.0
        %3415 = vmatprep.subr.mxu0 0.0
        %3416 = vmatpush2.msra.mxu0 0.0
        %3417 = vmatprep.subr.mxu0 0.0
        %3418 = vmatpush2.msra.mxu0 0.0
        %3419 = vmatprep.subr.mxu0 0.0
        %3420 = vmatpush2.msra.mxu0 0.0
        %3421 = vmatprep.subr.mxu0 0.0
        %3422 = vmatpush2.msra.mxu0 0.0
        %3423 = vmatprep.subr.mxu0 0.0
        %3424 = vmatpush2.msra.mxu0 0.0
        %3425 = vmatprep.subr.mxu0 0.0
        %3426 = vmatpush2.msra.mxu0 0.0
        %3427 = vmatprep.subr.mxu0 0.0
        %3428 = vmatpush2.msra.mxu0 0.0
        %3429 = vmatprep.subr.mxu0 0.0
        %3430 = vmatpush2.msra.mxu0 0.0
        %3431 = vmatprep.subr.mxu0 0.0
        %3432 = vmatpush2.msra.mxu0 0.0
        %3433 = vmatprep.subr.mxu0 0.0
        %3434 = vmatpush2.msra.mxu0 0.0
        %3435 = vmatprep.subr.mxu0 0.0
        %3436 = vmatpush2.msra.mxu0 0.0
        %3437 = vmatprep.mubr.f32.mxu0 0.0
        %3438 = vmatmul.mubr.f32.gmra.mxu0 %v3350
        %v3439 = vpop.f32.mrf.mxu0
        %v3440 = vadd.f32 %v3347, %v3439
        %v3441 = vpop.f32.mrf.mxu0
        %3442 = vmatprep.mubr.f32.mxu0 0.0
        %3443 = vmatmul.mubr.f32.gmra.mxu0 %v3353
        %v3444 = vpop.f32.mrf.mxu0
        %v3445 = vadd.f32 %v3347, %v3444
        %v3446 = vpop.f32.mrf.mxu0
        %3447 = vmatprep.mubr.f32.mxu0 0.0
        %3448 = vmatmul.mubr.f32.gmra.mxu0 %v3356
        %v3449 = vpop.f32.mrf.mxu0
        %v3450 = vadd.f32 %v3347, %v3449
        %v3451 = vpop.f32.mrf.mxu0
        %3452 = vmatprep.mubr.f32.mxu0 0.0
        %3453 = vmatmul.mubr.f32.gmra.mxu0 %v3359
        %v3454 = vpop.f32.mrf.mxu0
        %v3455 = vadd.f32 %v3347, %v3454
        %v3456 = vpop.f32.mrf.mxu0
        %3457 = vmatprep.mubr.f32.mxu0 0.0
        %3458 = vmatmul.mubr.f32.gmra.mxu0 %v3362
        %v3459 = vpop.f32.mrf.mxu0
        %v3460 = vadd.f32 %v3347, %v3459
        %v3461 = vpop.f32.mrf.mxu0
        %3462 = vmatprep.mubr.f32.mxu0 0.0
        %3463 = vmatmul.mubr.f32.gmra.mxu0 %v3365
        %v3464 = vpop.f32.mrf.mxu0
        %v3465 = vadd.f32 %v3347, %v3464
        %v3466 = vpop.f32.mrf.mxu0
        %3467 = vmatprep.mubr.f32.mxu0 0.0
        %3468 = vmatmul.mubr.f32.gmra.mxu0 %v3368
        %v3469 = vpop.f32.mrf.mxu0
        %v3470 = vadd.f32 %v3347, %v3469
        %v3471 = vpop.f32.mrf.mxu0
        %3472 = vmatprep.mubr.f32.mxu0 0.0
        %3473 = vmatmul.mubr.f32.gmra.mxu0 %v3371
        %v3474 = vpop.f32.mrf.mxu0
        %v3475 = vadd.f32 %v3347, %v3474
        %v3476 = vpop.f32.mrf.mxu0
        %3477 = vdwg.mxu0
        %s3478 = scalar_lea.vmem %s4, 32
        %v3479 = vld [vmem:[%s3478] sm:$0xff]
        %v3480 = vld [vmem:[%s3478 + $0x8] sm:$0xff]
        %v3481 = vld [vmem:[%s3478 + $0x10] sm:$0xff]
        %v3482 = vld [vmem:[%s3478 + $0x18] sm:$0xff]
        %s3483 = scalar_lea.vmem %s8, 1
        %v3484 = vld [vmem:[%s3483] sm:$0x1]
        %v3485 = vmul.f32 %v3484, 0.0
        %v3487 = vlaneseq
        %v3488 = vshrl.u32 %v3487, 7
        %v3489 = vsub.s32 0, %v3488
        %v3490 = vrot.slane %v3485, %v3489
        %3492 = vmatprep.subr.mxu0 0.0
        %3493 = vmatpush1.msra.mxu0 0.0
        %3494 = vmatprep.subr.mxu0 0.0
        %3495 = vmatpush1.msra.mxu0 0.0
        %3496 = vmatprep.subr.mxu0 0.0
        %3497 = vmatpush1.msra.mxu0 0.0
        %3498 = vmatprep.subr.mxu0 0.0
        %3499 = vmatpush1.msra.mxu0 0.0
        %3500 = vmatprep.subr.mxu0 0.0
        %3501 = vmatpush1.msra.mxu0 0.0
        %3502 = vmatprep.subr.mxu0 0.0
        %3503 = vmatpush1.msra.mxu0 0.0
        %3504 = vmatprep.subr.mxu0 0.0
        %3505 = vmatpush1.msra.mxu0 0.0
        %3506 = vmatprep.subr.mxu0 0.0
        %3507 = vmatpush1.msra.mxu0 0.0
        %3508 = vmatprep.subr.mxu0 0.0
        %3509 = vmatpush1.msra.mxu0 0.0
        %3510 = vmatprep.subr.mxu0 0.0
        %3511 = vmatpush1.msra.mxu0 0.0
        %3512 = vmatprep.subr.mxu0 0.0
        %3513 = vmatpush1.msra.mxu0 0.0
        %3514 = vmatprep.subr.mxu0 0.0
        %3515 = vmatpush1.msra.mxu0 0.0
        %3516 = vmatprep.subr.mxu0 0.0
        %3517 = vmatpush1.msra.mxu0 %v3482
        %3518 = vmatprep.subr.mxu0 0.0
        %3519 = vmatpush1.msra.mxu0 %v3481
        %3520 = vmatprep.subr.mxu0 0.0
        %3521 = vmatpush1.msra.mxu0 %v3480
        %3522 = vmatprep.subr.mxu0 0.0
        %3523 = vmatpush1.msra.mxu0 %v3479
        %3524 = vmatprep.subr.mxu0 0.0
        %3525 = vmatpush2.msra.mxu0 0.0
        %3526 = vmatprep.subr.mxu0 0.0
        %3527 = vmatpush2.msra.mxu0 0.0
        %3528 = vmatprep.subr.mxu0 0.0
        %3529 = vmatpush2.msra.mxu0 0.0
        %3530 = vmatprep.subr.mxu0 0.0
        %3531 = vmatpush2.msra.mxu0 0.0
        %3532 = vmatprep.subr.mxu0 0.0
        %3533 = vmatpush2.msra.mxu0 0.0
        %3534 = vmatprep.subr.mxu0 0.0
        %3535 = vmatpush2.msra.mxu0 0.0
        %3536 = vmatprep.subr.mxu0 0.0
        %3537 = vmatpush2.msra.mxu0 0.0
        %3538 = vmatprep.subr.mxu0 0.0
        %3539 = vmatpush2.msra.mxu0 0.0
        %3540 = vmatprep.subr.mxu0 0.0
        %3541 = vmatpush2.msra.mxu0 0.0
        %3542 = vmatprep.subr.mxu0 0.0
        %3543 = vmatpush2.msra.mxu0 0.0
        %3544 = vmatprep.subr.mxu0 0.0
        %3545 = vmatpush2.msra.mxu0 0.0
        %3546 = vmatprep.subr.mxu0 0.0
        %3547 = vmatpush2.msra.mxu0 0.0
        %3548 = vmatprep.subr.mxu0 0.0
        %3549 = vmatpush2.msra.mxu0 0.0
        %3550 = vmatprep.subr.mxu0 0.0
        %3551 = vmatpush2.msra.mxu0 0.0
        %3552 = vmatprep.subr.mxu0 0.0
        %3553 = vmatpush2.msra.mxu0 0.0
        %3554 = vmatprep.subr.mxu0 0.0
        %3555 = vmatpush2.msra.mxu0 0.0
        %3556 = vmatprep.mubr.f32.mxu0 0.0
        %3557 = vmatmul.mubr.f32.gmra.mxu0 %v3350
        %v3558 = vpop.f32.mrf.mxu0
        %v3559 = vadd.f32 %v3490, %v3558
        %v3560 = vpop.f32.mrf.mxu0
        %3561 = vmatprep.mubr.f32.mxu0 0.0
        %3562 = vmatmul.mubr.f32.gmra.mxu0 %v3353
        %v3563 = vpop.f32.mrf.mxu0
        %v3564 = vadd.f32 %v3490, %v3563
        %v3565 = vpop.f32.mrf.mxu0
        %3566 = vmatprep.mubr.f32.mxu0 0.0
        %3567 = vmatmul.mubr.f32.gmra.mxu0 %v3356
        %v3568 = vpop.f32.mrf.mxu0
        %v3569 = vadd.f32 %v3490, %v3568
        %v3570 = vpop.f32.mrf.mxu0
        %3571 = vmatprep.mubr.f32.mxu0 0.0
        %3572 = vmatmul.mubr.f32.gmra.mxu0 %v3359
        %v3573 = vpop.f32.mrf.mxu0
        %v3574 = vadd.f32 %v3490, %v3573
        %v3575 = vpop.f32.mrf.mxu0
        %3576 = vmatprep.mubr.f32.mxu0 0.0
        %3577 = vmatmul.mubr.f32.gmra.mxu0 %v3362
        %v3578 = vpop.f32.mrf.mxu0
        %v3579 = vadd.f32 %v3490, %v3578
        %v3580 = vpop.f32.mrf.mxu0
        %3581 = vmatprep.mubr.f32.mxu0 0.0
        %3582 = vmatmul.mubr.f32.gmra.mxu0 %v3365
        %v3583 = vpop.f32.mrf.mxu0
        %v3584 = vadd.f32 %v3490, %v3583
        %v3585 = vpop.f32.mrf.mxu0
        %3586 = vmatprep.mubr.f32.mxu0 0.0
        %3587 = vmatmul.mubr.f32.gmra.mxu0 %v3368
        %v3588 = vpop.f32.mrf.mxu0
        %v3589 = vadd.f32 %v3490, %v3588
        %v3590 = vpop.f32.mrf.mxu0
        %3591 = vmatprep.mubr.f32.mxu0 0.0
        %3592 = vmatmul.mubr.f32.gmra.mxu0 %v3371
        %v3593 = vpop.f32.mrf.mxu0
        %v3594 = vadd.f32 %v3490, %v3593
        %v3595 = vpop.f32.mrf.mxu0
        %3596 = vdwg.mxu0
        %s3597 = scalar_lea.vmem %s7, 1
        %v3598 = vld [vmem:[%s3597] sm:$0x1]
        %v3600 = vlaneseq
        %v3601 = vshrl.u32 %v3600, 7
        %v3602 = vsub.s32 0, %v3601
        %v3603 = vrot.slane %v3598, %v3602
        %v3605 = vadd.f32 %v3559, %v3603
        %v3606 = vadd.f32 %v3564, %v3603
        %v3607 = vadd.f32 %v3569, %v3603
        %v3608 = vadd.f32 %v3574, %v3603
        %v3609 = vadd.f32 %v3579, %v3603
        %v3610 = vadd.f32 %v3584, %v3603
        %v3611 = vadd.f32 %v3589, %v3603
        %v3612 = vadd.f32 %v3594, %v3603
        %s3613 = scalar_lea.vmem %s5, 32
        %v3614 = vld [vmem:[%s3613] sm:$0xff]
        %v3615 = vld [vmem:[%s3613 + $0x8] sm:$0xff]
        %v3616 = vld [vmem:[%s3613 + $0x10] sm:$0xff]
        %v3617 = vld [vmem:[%s3613 + $0x18] sm:$0xff]
        %v3619 = vlaneseq
        %v3620 = vshrl.u32 %v3619, 7
        %v3621 = vsub.s32 0, %v3620
        %v3622 = vrot.slane %v3484, %v3621
        %3624 = vmatprep.subr.mxu0 0.0
        %3625 = vmatpush1.msra.mxu0 0.0
        %3626 = vmatprep.subr.mxu0 0.0
        %3627 = vmatpush1.msra.mxu0 0.0
        %3628 = vmatprep.subr.mxu0 0.0
        %3629 = vmatpush1.msra.mxu0 0.0
        %3630 = vmatprep.subr.mxu0 0.0
        %3631 = vmatpush1.msra.mxu0 0.0
        %3632 = vmatprep.subr.mxu0 0.0
        %3633 = vmatpush1.msra.mxu0 0.0
        %3634 = vmatprep.subr.mxu0 0.0
        %3635 = vmatpush1.msra.mxu0 0.0
        %3636 = vmatprep.subr.mxu0 0.0
        %3637 = vmatpush1.msra.mxu0 0.0
        %3638 = vmatprep.subr.mxu0 0.0
        %3639 = vmatpush1.msra.mxu0 0.0
        %3640 = vmatprep.subr.mxu0 0.0
        %3641 = vmatpush1.msra.mxu0 0.0
        %3642 = vmatprep.subr.mxu0 0.0
        %3643 = vmatpush1.msra.mxu0 0.0
        %3644 = vmatprep.subr.mxu0 0.0
        %3645 = vmatpush1.msra.mxu0 0.0
        %3646 = vmatprep.subr.mxu0 0.0
        %3647 = vmatpush1.msra.mxu0 0.0
        %3648 = vmatprep.subr.mxu0 0.0
        %3649 = vmatpush1.msra.mxu0 %v3617
        %3650 = vmatprep.subr.mxu0 0.0
        %3651 = vmatpush1.msra.mxu0 %v3616
        %3652 = vmatprep.subr.mxu0 0.0
        %3653 = vmatpush1.msra.mxu0 %v3615
        %3654 = vmatprep.subr.mxu0 0.0
        %3655 = vmatpush1.msra.mxu0 %v3614
        %3656 = vmatprep.subr.mxu0 0.0
        %3657 = vmatpush2.msra.mxu0 0.0
        %3658 = vmatprep.subr.mxu0 0.0
        %3659 = vmatpush2.msra.mxu0 0.0
        %3660 = vmatprep.subr.mxu0 0.0
        %3661 = vmatpush2.msra.mxu0 0.0
        %3662 = vmatprep.subr.mxu0 0.0
        %3663 = vmatpush2.msra.mxu0 0.0
        %3664 = vmatprep.subr.mxu0 0.0
        %3665 = vmatpush2.msra.mxu0 0.0
        %3666 = vmatprep.subr.mxu0 0.0
        %3667 = vmatpush2.msra.mxu0 0.0
        %3668 = vmatprep.subr.mxu0 0.0
        %3669 = vmatpush2.msra.mxu0 0.0
        %3670 = vmatprep.subr.mxu0 0.0
        %3671 = vmatpush2.msra.mxu0 0.0
        %3672 = vmatprep.subr.mxu0 0.0
        %3673 = vmatpush2.msra.mxu0 0.0
        %3674 = vmatprep.subr.mxu0 0.0
        %3675 = vmatpush2.msra.mxu0 0.0
        %3676 = vmatprep.subr.mxu0 0.0
        %3677 = vmatpush2.msra.mxu0 0.0
        %3678 = vmatprep.subr.mxu0 0.0
        %3679 = vmatpush2.msra.mxu0 0.0
        %3680 = vmatprep.subr.mxu0 0.0
        %3681 = vmatpush2.msra.mxu0 0.0
        %3682 = vmatprep.subr.mxu0 0.0
        %3683 = vmatpush2.msra.mxu0 0.0
        %3684 = vmatprep.subr.mxu0 0.0
        %3685 = vmatpush2.msra.mxu0 0.0
        %3686 = vmatprep.subr.mxu0 0.0
        %3687 = vmatpush2.msra.mxu0 0.0
        %3688 = vmatprep.mubr.f32.mxu0 0.0
        %3689 = vmatmul.mubr.f32.gmra.mxu0 %v3350
        %v3690 = vpop.f32.mrf.mxu0
        %v3691 = vadd.f32 %v3622, %v3690
        %v3692 = vpop.f32.mrf.mxu0
        %3693 = vmatprep.mubr.f32.mxu0 0.0
        %3694 = vmatmul.mubr.f32.gmra.mxu0 %v3353
        %v3695 = vpop.f32.mrf.mxu0
        %v3696 = vadd.f32 %v3622, %v3695
        %v3697 = vpop.f32.mrf.mxu0
        %3698 = vmatprep.mubr.f32.mxu0 0.0
        %3699 = vmatmul.mubr.f32.gmra.mxu0 %v3356
        %v3700 = vpop.f32.mrf.mxu0
        %v3701 = vadd.f32 %v3622, %v3700
        %v3702 = vpop.f32.mrf.mxu0
        %3703 = vmatprep.mubr.f32.mxu0 0.0
        %3704 = vmatmul.mubr.f32.gmra.mxu0 %v3359
        %v3705 = vpop.f32.mrf.mxu0
        %v3706 = vadd.f32 %v3622, %v3705
        %v3707 = vpop.f32.mrf.mxu0
        %3708 = vmatprep.mubr.f32.mxu0 0.0
        %3709 = vmatmul.mubr.f32.gmra.mxu0 %v3362
        %v3710 = vpop.f32.mrf.mxu0
        %v3711 = vadd.f32 %v3622, %v3710
        %v3712 = vpop.f32.mrf.mxu0
        %3713 = vmatprep.mubr.f32.mxu0 0.0
        %3714 = vmatmul.mubr.f32.gmra.mxu0 %v3365
        %v3715 = vpop.f32.mrf.mxu0
        %v3716 = vadd.f32 %v3622, %v3715
        %v3717 = vpop.f32.mrf.mxu0
        %3718 = vmatprep.mubr.f32.mxu0 0.0
        %3719 = vmatmul.mubr.f32.gmra.mxu0 %v3368
        %v3720 = vpop.f32.mrf.mxu0
        %v3721 = vadd.f32 %v3622, %v3720
        %v3722 = vpop.f32.mrf.mxu0
        %3723 = vmatprep.mubr.f32.mxu0 0.0
        %3724 = vmatmul.mubr.f32.gmra.mxu0 %v3371
        %v3725 = vpop.f32.mrf.mxu0
        %v3726 = vadd.f32 %v3622, %v3725
        %v3727 = vpop.f32.mrf.mxu0
        %3728 = vdwg.mxu0
        %3737 = vrot.lane.b32.xlu0 %v3440, 120
        %v3738 = vpop.permute.xlu0 %3737
        %3739 = vrot.lane.b32.xlu0 %v3445, 120
        %v3740 = vpop.permute.xlu0 %3739
        %3741 = vrot.lane.b32.xlu0 %v3450, 120
        %v3742 = vpop.permute.xlu0 %3741
        %3743 = vrot.lane.b32.xlu0 %v3455, 120
        %v3744 = vpop.permute.xlu0 %3743
        %3745 = vrot.lane.b32.xlu0 %v3460, 120
        %v3746 = vpop.permute.xlu0 %3745
        %3747 = vrot.lane.b32.xlu0 %v3465, 120
        %v3748 = vpop.permute.xlu0 %3747
        %3749 = vrot.lane.b32.xlu0 %v3470, 120
        %v3750 = vpop.permute.xlu0 %3749
        %3751 = vrot.lane.b32.xlu0 %v3475, 120
        %v3752 = vpop.permute.xlu0 %3751
        %3753 = vrot.lane.b32.xlu0 %v3440, 112
        %v3754 = vpop.permute.xlu0 %3753
        %3755 = vrot.lane.b32.xlu0 %v3445, 112
        %v3756 = vpop.permute.xlu0 %3755
        %3757 = vrot.lane.b32.xlu0 %v3450, 112
        %v3758 = vpop.permute.xlu0 %3757
        %3759 = vrot.lane.b32.xlu0 %v3455, 112
        %v3760 = vpop.permute.xlu0 %3759
        %3761 = vrot.lane.b32.xlu0 %v3460, 112
        %v3762 = vpop.permute.xlu0 %3761
        %3763 = vrot.lane.b32.xlu0 %v3465, 112
        %v3764 = vpop.permute.xlu0 %3763
        %3765 = vrot.lane.b32.xlu0 %v3470, 112
        %v3766 = vpop.permute.xlu0 %3765
        %3767 = vrot.lane.b32.xlu0 %v3475, 112
        %v3768 = vpop.permute.xlu0 %3767
        %3769 = vrot.lane.b32.xlu0 %v3440, 104
        %v3770 = vpop.permute.xlu0 %3769
        %3771 = vrot.lane.b32.xlu0 %v3445, 104
        %v3772 = vpop.permute.xlu0 %3771
        %3773 = vrot.lane.b32.xlu0 %v3450, 104
        %v3774 = vpop.permute.xlu0 %3773
        %3775 = vrot.lane.b32.xlu0 %v3455, 104
        %v3776 = vpop.permute.xlu0 %3775
        %3777 = vrot.lane.b32.xlu0 %v3460, 104
        %v3778 = vpop.permute.xlu0 %3777
        %3779 = vrot.lane.b32.xlu0 %v3465, 104
        %v3780 = vpop.permute.xlu0 %3779
        %3781 = vrot.lane.b32.xlu0 %v3470, 104
        %v3782 = vpop.permute.xlu0 %3781
        %3783 = vrot.lane.b32.xlu0 %v3475, 104
        %v3784 = vpop.permute.xlu0 %3783
        %3793 = vrot.lane.b32.xlu0 %v3605, 120
        %v3794 = vpop.permute.xlu0 %3793
        %3795 = vrot.lane.b32.xlu0 %v3606, 120
        %v3796 = vpop.permute.xlu0 %3795
        %3797 = vrot.lane.b32.xlu0 %v3607, 120
        %v3798 = vpop.permute.xlu0 %3797
        %3799 = vrot.lane.b32.xlu0 %v3608, 120
        %v3800 = vpop.permute.xlu0 %3799
        %3801 = vrot.lane.b32.xlu0 %v3609, 120
        %v3802 = vpop.permute.xlu0 %3801
        %3803 = vrot.lane.b32.xlu0 %v3610, 120
        %v3804 = vpop.permute.xlu0 %3803
        %3805 = vrot.lane.b32.xlu0 %v3611, 120
        %v3806 = vpop.permute.xlu0 %3805
        %3807 = vrot.lane.b32.xlu0 %v3612, 120
        %v3808 = vpop.permute.xlu0 %3807
        %3809 = vrot.lane.b32.xlu0 %v3605, 112
        %v3810 = vpop.permute.xlu0 %3809
        %3811 = vrot.lane.b32.xlu0 %v3606, 112
        %v3812 = vpop.permute.xlu0 %3811
        %3813 = vrot.lane.b32.xlu0 %v3607, 112
        %v3814 = vpop.permute.xlu0 %3813
        %3815 = vrot.lane.b32.xlu0 %v3608, 112
        %v3816 = vpop.permute.xlu0 %3815
        %3817 = vrot.lane.b32.xlu0 %v3609, 112
        %v3818 = vpop.permute.xlu0 %3817
        %3819 = vrot.lane.b32.xlu0 %v3610, 112
        %v3820 = vpop.permute.xlu0 %3819
        %3821 = vrot.lane.b32.xlu0 %v3611, 112
        %v3822 = vpop.permute.xlu0 %3821
        %3823 = vrot.lane.b32.xlu0 %v3612, 112
        %v3824 = vpop.permute.xlu0 %3823
        %3825 = vrot.lane.b32.xlu0 %v3605, 104
        %v3826 = vpop.permute.xlu0 %3825
        %3827 = vrot.lane.b32.xlu0 %v3606, 104
        %v3828 = vpop.permute.xlu0 %3827
        %3829 = vrot.lane.b32.xlu0 %v3607, 104
        %v3830 = vpop.permute.xlu0 %3829
        %3831 = vrot.lane.b32.xlu0 %v3608, 104
        %v3832 = vpop.permute.xlu0 %3831
        %3833 = vrot.lane.b32.xlu0 %v3609, 104
        %v3834 = vpop.permute.xlu0 %3833
        %3835 = vrot.lane.b32.xlu0 %v3610, 104
        %v3836 = vpop.permute.xlu0 %3835
        %3837 = vrot.lane.b32.xlu0 %v3611, 104
        %v3838 = vpop.permute.xlu0 %3837
        %3839 = vrot.lane.b32.xlu0 %v3612, 104
        %v3840 = vpop.permute.xlu0 %3839
        %3849 = vrot.lane.b32.xlu0 %v3691, 120
        %v3850 = vpop.permute.xlu0 %3849
        %3851 = vrot.lane.b32.xlu0 %v3696, 120
        %v3852 = vpop.permute.xlu0 %3851
        %3853 = vrot.lane.b32.xlu0 %v3701, 120
        %v3854 = vpop.permute.xlu0 %3853
        %3855 = vrot.lane.b32.xlu0 %v3706, 120
        %v3856 = vpop.permute.xlu0 %3855
        %3857 = vrot.lane.b32.xlu0 %v3711, 120
        %v3858 = vpop.permute.xlu0 %3857
        %3859 = vrot.lane.b32.xlu0 %v3716, 120
        %v3860 = vpop.permute.xlu0 %3859
        %3861 = vrot.lane.b32.xlu0 %v3721, 120
        %v3862 = vpop.permute.xlu0 %3861
        %3863 = vrot.lane.b32.xlu0 %v3726, 120
        %v3864 = vpop.permute.xlu0 %3863
        %3873 = vrot.lane.b32.xlu0 %v3691, 112
        %v3874 = vpop.permute.xlu0 %3873
        %3875 = vrot.lane.b32.xlu0 %v3696, 112
        %v3876 = vpop.permute.xlu0 %3875
        %3877 = vrot.lane.b32.xlu0 %v3701, 112
        %v3878 = vpop.permute.xlu0 %3877
        %3879 = vrot.lane.b32.xlu0 %v3706, 112
        %v3880 = vpop.permute.xlu0 %3879
        %3881 = vrot.lane.b32.xlu0 %v3711, 112
        %v3882 = vpop.permute.xlu0 %3881
        %3883 = vrot.lane.b32.xlu0 %v3716, 112
        %v3884 = vpop.permute.xlu0 %3883
        %3885 = vrot.lane.b32.xlu0 %v3721, 112
        %v3886 = vpop.permute.xlu0 %3885
        %3887 = vrot.lane.b32.xlu0 %v3726, 112
        %v3888 = vpop.permute.xlu0 %3887
        %3897 = vrot.lane.b32.xlu0 %v3691, 104
        %v3898 = vpop.permute.xlu0 %3897
        %3899 = vrot.lane.b32.xlu0 %v3696, 104
        %v3900 = vpop.permute.xlu0 %3899
        %3901 = vrot.lane.b32.xlu0 %v3701, 104
        %v3902 = vpop.permute.xlu0 %3901
        %3903 = vrot.lane.b32.xlu0 %v3706, 104
        %v3904 = vpop.permute.xlu0 %3903
        %3905 = vrot.lane.b32.xlu0 %v3711, 104
        %v3906 = vpop.permute.xlu0 %3905
        %3907 = vrot.lane.b32.xlu0 %v3716, 104
        %v3908 = vpop.permute.xlu0 %3907
        %3909 = vrot.lane.b32.xlu0 %v3721, 104
        %v3910 = vpop.permute.xlu0 %3909
        %3911 = vrot.lane.b32.xlu0 %v3726, 104
        %v3912 = vpop.permute.xlu0 %3911
        %v3921 = vsel %vm1186, %v3440, 0
        %v3923 = vsel %vm1186, %v3445, 0
        %v3925 = vsel %vm1186, %v3450, 0
        %v3927 = vsel %vm1186, %v3455, 0
        %v3929 = vsel %vm1186, %v3460, 0
        %v3931 = vsel %vm1186, %v3465, 0
        %v3933 = vsel %vm1186, %v3470, 0
        %v3935 = vsel %vm1186, %v3475, 0
        %v3937 = vsel %vm1186, %v3605, 0
        %v3939 = vsel %vm1186, %v3606, 0
        %v3941 = vsel %vm1186, %v3607, 0
        %v3943 = vsel %vm1186, %v3608, 0
        %v3945 = vsel %vm1186, %v3609, 0
        %v3947 = vsel %vm1186, %v3610, 0
        %v3949 = vsel %vm1186, %v3611, 0
        %v3951 = vsel %vm1186, %v3612, 0
        %3953 = vmatprep.subr.mxu0 0.0
        %3954 = vmatpush1.xpose.msra.mxu0 0.0
        %3955 = vmatprep.subr.mxu0 0.0
        %3956 = vmatpush1.xpose.msra.mxu0 0.0
        %3957 = vmatprep.subr.mxu0 0.0
        %3958 = vmatpush1.xpose.msra.mxu0 0.0
        %3959 = vmatprep.subr.mxu0 0.0
        %3960 = vmatpush1.xpose.msra.mxu0 0.0
        %3961 = vmatprep.subr.mxu0 0.0
        %3962 = vmatpush1.xpose.msra.mxu0 0.0
        %3963 = vmatprep.subr.mxu0 0.0
        %3964 = vmatpush1.xpose.msra.mxu0 0.0
        %3965 = vmatprep.subr.mxu0 0.0
        %3966 = vmatpush1.xpose.msra.mxu0 0.0
        %3967 = vmatprep.subr.mxu0 0.0
        %3968 = vmatpush1.xpose.msra.mxu0 0.0
        %3969 = vmatprep.subr.mxu0 0.0
        %3970 = vmatpush1.xpose.msra.mxu0 %v3951
        %3971 = vmatprep.subr.mxu0 0.0
        %3972 = vmatpush1.xpose.msra.mxu0 %v3949
        %3973 = vmatprep.subr.mxu0 0.0
        %3974 = vmatpush1.xpose.msra.mxu0 %v3947
        %3975 = vmatprep.subr.mxu0 0.0
        %3976 = vmatpush1.xpose.msra.mxu0 %v3945
        %3977 = vmatprep.subr.mxu0 0.0
        %3978 = vmatpush1.xpose.msra.mxu0 %v3943
        %3979 = vmatprep.subr.mxu0 0.0
        %3980 = vmatpush1.xpose.msra.mxu0 %v3941
        %3981 = vmatprep.subr.mxu0 0.0
        %3982 = vmatpush1.xpose.msra.mxu0 %v3939
        %3983 = vmatprep.subr.mxu0 0.0
        %3984 = vmatpush1.xpose.msra.mxu0 %v3937
        %3985 = vmatprep.subr.mxu0 0.0
        %3986 = vmatpush2.xpose.msra.mxu0 0.0
        %3987 = vmatprep.subr.mxu0 0.0
        %3988 = vmatpush2.xpose.msra.mxu0 0.0
        %3989 = vmatprep.subr.mxu0 0.0
        %3990 = vmatpush2.xpose.msra.mxu0 0.0
        %3991 = vmatprep.subr.mxu0 0.0
        %3992 = vmatpush2.xpose.msra.mxu0 0.0
        %3993 = vmatprep.subr.mxu0 0.0
        %3994 = vmatpush2.xpose.msra.mxu0 0.0
        %3995 = vmatprep.subr.mxu0 0.0
        %3996 = vmatpush2.xpose.msra.mxu0 0.0
        %3997 = vmatprep.subr.mxu0 0.0
        %3998 = vmatpush2.xpose.msra.mxu0 0.0
        %3999 = vmatprep.subr.mxu0 0.0
        %4000 = vmatpush2.xpose.msra.mxu0 0.0
        %4001 = vmatprep.subr.mxu0 0.0
        %4002 = vmatpush2.xpose.msra.mxu0 0.0
        %4003 = vmatprep.subr.mxu0 0.0
        %4004 = vmatpush2.xpose.msra.mxu0 0.0
        %4005 = vmatprep.subr.mxu0 0.0
        %4006 = vmatpush2.xpose.msra.mxu0 0.0
        %4007 = vmatprep.subr.mxu0 0.0
        %4008 = vmatpush2.xpose.msra.mxu0 0.0
        %4009 = vmatprep.subr.mxu0 0.0
        %4010 = vmatpush2.xpose.msra.mxu0 0.0
        %4011 = vmatprep.subr.mxu0 0.0
        %4012 = vmatpush2.xpose.msra.mxu0 0.0
        %4013 = vmatprep.subr.mxu0 0.0
        %4014 = vmatpush2.xpose.msra.mxu0 0.0
        %4015 = vmatprep.subr.mxu0 0.0
        %4016 = vmatpush2.xpose.msra.mxu0 0.0
        %4017 = vmatprep.mubr.f32.mxu0 0.0
        %4018 = vmatmul.mubr.f32.gmra.mxu0 %v3921
        %v4019 = vpop.f32.mrf.mxu0
        %v4020 = vadd.f32 0.0, %v4019
        %v4021 = vpop.f32.mrf.mxu0
        %4022 = vmatprep.mubr.f32.mxu0 0.0
        %4023 = vmatmul.mubr.f32.gmra.mxu0 %v3923
        %v4024 = vpop.f32.mrf.mxu0
        %v4025 = vadd.f32 0.0, %v4024
        %v4026 = vpop.f32.mrf.mxu0
        %4027 = vmatprep.mubr.f32.mxu0 0.0
        %4028 = vmatmul.mubr.f32.gmra.mxu0 %v3925
        %v4029 = vpop.f32.mrf.mxu0
        %v4030 = vadd.f32 0.0, %v4029
        %v4031 = vpop.f32.mrf.mxu0
        %4032 = vmatprep.mubr.f32.mxu0 0.0
        %4033 = vmatmul.mubr.f32.gmra.mxu0 %v3927
        %v4034 = vpop.f32.mrf.mxu0
        %v4035 = vadd.f32 0.0, %v4034
        %v4036 = vpop.f32.mrf.mxu0
        %4037 = vmatprep.mubr.f32.mxu0 0.0
        %4038 = vmatmul.mubr.f32.gmra.mxu0 %v3929
        %v4039 = vpop.f32.mrf.mxu0
        %v4040 = vadd.f32 0.0, %v4039
        %v4041 = vpop.f32.mrf.mxu0
        %4042 = vmatprep.mubr.f32.mxu0 0.0
        %4043 = vmatmul.mubr.f32.gmra.mxu0 %v3931
        %v4044 = vpop.f32.mrf.mxu0
        %v4045 = vadd.f32 0.0, %v4044
        %v4046 = vpop.f32.mrf.mxu0
        %4047 = vmatprep.mubr.f32.mxu0 0.0
        %4048 = vmatmul.mubr.f32.gmra.mxu0 %v3933
        %v4049 = vpop.f32.mrf.mxu0
        %v4050 = vadd.f32 0.0, %v4049
        %v4051 = vpop.f32.mrf.mxu0
        %4052 = vmatprep.mubr.f32.mxu0 0.0
        %4053 = vmatmul.mubr.f32.gmra.mxu0 %v3935
        %v4054 = vpop.f32.mrf.mxu0
        %v4055 = vadd.f32 0.0, %v4054
        %v4056 = vpop.f32.mrf.mxu0
        %4057 = vdwg.mxu0
        %v4058 = vsel %vm1186, %v3738, 0
        %v4060 = vsel %vm1186, %v3740, 0
        %v4062 = vsel %vm1186, %v3742, 0
        %v4064 = vsel %vm1186, %v3744, 0
        %v4066 = vsel %vm1186, %v3746, 0
        %v4068 = vsel %vm1186, %v3748, 0
        %v4070 = vsel %vm1186, %v3750, 0
        %v4072 = vsel %vm1186, %v3752, 0
        %v4074 = vsel %vm1186, %v3794, 0
        %v4076 = vsel %vm1186, %v3796, 0
        %v4078 = vsel %vm1186, %v3798, 0
        %v4080 = vsel %vm1186, %v3800, 0
        %v4082 = vsel %vm1186, %v3802, 0
        %v4084 = vsel %vm1186, %v3804, 0
        %v4086 = vsel %vm1186, %v3806, 0
        %v4088 = vsel %vm1186, %v3808, 0
        %4090 = vmatprep.subr.mxu0 0.0
        %4091 = vmatpush1.xpose.msra.mxu0 0.0
        %4092 = vmatprep.subr.mxu0 0.0
        %4093 = vmatpush1.xpose.msra.mxu0 0.0
        %4094 = vmatprep.subr.mxu0 0.0
        %4095 = vmatpush1.xpose.msra.mxu0 0.0
        %4096 = vmatprep.subr.mxu0 0.0
        %4097 = vmatpush1.xpose.msra.mxu0 0.0
        %4098 = vmatprep.subr.mxu0 0.0
        %4099 = vmatpush1.xpose.msra.mxu0 0.0
        %4100 = vmatprep.subr.mxu0 0.0
        %4101 = vmatpush1.xpose.msra.mxu0 0.0
        %4102 = vmatprep.subr.mxu0 0.0
        %4103 = vmatpush1.xpose.msra.mxu0 0.0
        %4104 = vmatprep.subr.mxu0 0.0
        %4105 = vmatpush1.xpose.msra.mxu0 0.0
        %4106 = vmatprep.subr.mxu0 0.0
        %4107 = vmatpush1.xpose.msra.mxu0 %v4088
        %4108 = vmatprep.subr.mxu0 0.0
        %4109 = vmatpush1.xpose.msra.mxu0 %v4086
        %4110 = vmatprep.subr.mxu0 0.0
        %4111 = vmatpush1.xpose.msra.mxu0 %v4084
        %4112 = vmatprep.subr.mxu0 0.0
        %4113 = vmatpush1.xpose.msra.mxu0 %v4082
        %4114 = vmatprep.subr.mxu0 0.0
        %4115 = vmatpush1.xpose.msra.mxu0 %v4080
        %4116 = vmatprep.subr.mxu0 0.0
        %4117 = vmatpush1.xpose.msra.mxu0 %v4078
        %4118 = vmatprep.subr.mxu0 0.0
        %4119 = vmatpush1.xpose.msra.mxu0 %v4076
        %4120 = vmatprep.subr.mxu0 0.0
        %4121 = vmatpush1.xpose.msra.mxu0 %v4074
        %4122 = vmatprep.subr.mxu0 0.0
        %4123 = vmatpush2.xpose.msra.mxu0 0.0
        %4124 = vmatprep.subr.mxu0 0.0
        %4125 = vmatpush2.xpose.msra.mxu0 0.0
        %4126 = vmatprep.subr.mxu0 0.0
        %4127 = vmatpush2.xpose.msra.mxu0 0.0
        %4128 = vmatprep.subr.mxu0 0.0
        %4129 = vmatpush2.xpose.msra.mxu0 0.0
        %4130 = vmatprep.subr.mxu0 0.0
        %4131 = vmatpush2.xpose.msra.mxu0 0.0
        %4132 = vmatprep.subr.mxu0 0.0
        %4133 = vmatpush2.xpose.msra.mxu0 0.0
        %4134 = vmatprep.subr.mxu0 0.0
        %4135 = vmatpush2.xpose.msra.mxu0 0.0
        %4136 = vmatprep.subr.mxu0 0.0
        %4137 = vmatpush2.xpose.msra.mxu0 0.0
        %4138 = vmatprep.subr.mxu0 0.0
        %4139 = vmatpush2.xpose.msra.mxu0 0.0
        %4140 = vmatprep.subr.mxu0 0.0
        %4141 = vmatpush2.xpose.msra.mxu0 0.0
        %4142 = vmatprep.subr.mxu0 0.0
        %4143 = vmatpush2.xpose.msra.mxu0 0.0
        %4144 = vmatprep.subr.mxu0 0.0
        %4145 = vmatpush2.xpose.msra.mxu0 0.0
        %4146 = vmatprep.subr.mxu0 0.0
        %4147 = vmatpush2.xpose.msra.mxu0 0.0
        %4148 = vmatprep.subr.mxu0 0.0
        %4149 = vmatpush2.xpose.msra.mxu0 0.0
        %4150 = vmatprep.subr.mxu0 0.0
        %4151 = vmatpush2.xpose.msra.mxu0 0.0
        %4152 = vmatprep.subr.mxu0 0.0
        %4153 = vmatpush2.xpose.msra.mxu0 0.0
        %4154 = vmatprep.mubr.f32.mxu0 0.0
        %4155 = vmatmul.mubr.f32.gmra.mxu0 %v4058
        %v4156 = vpop.f32.mrf.mxu0
        %v4157 = vadd.f32 0.0, %v4156
        %v4158 = vpop.f32.mrf.mxu0
        %4159 = vmatprep.mubr.f32.mxu0 0.0
        %4160 = vmatmul.mubr.f32.gmra.mxu0 %v4060
        %v4161 = vpop.f32.mrf.mxu0
        %v4162 = vadd.f32 0.0, %v4161
        %v4163 = vpop.f32.mrf.mxu0
        %4164 = vmatprep.mubr.f32.mxu0 0.0
        %4165 = vmatmul.mubr.f32.gmra.mxu0 %v4062
        %v4166 = vpop.f32.mrf.mxu0
        %v4167 = vadd.f32 0.0, %v4166
        %v4168 = vpop.f32.mrf.mxu0
        %4169 = vmatprep.mubr.f32.mxu0 0.0
        %4170 = vmatmul.mubr.f32.gmra.mxu0 %v4064
        %v4171 = vpop.f32.mrf.mxu0
        %v4172 = vadd.f32 0.0, %v4171
        %v4173 = vpop.f32.mrf.mxu0
        %4174 = vmatprep.mubr.f32.mxu0 0.0
        %4175 = vmatmul.mubr.f32.gmra.mxu0 %v4066
        %v4176 = vpop.f32.mrf.mxu0
        %v4177 = vadd.f32 0.0, %v4176
        %v4178 = vpop.f32.mrf.mxu0
        %4179 = vmatprep.mubr.f32.mxu0 0.0
        %4180 = vmatmul.mubr.f32.gmra.mxu0 %v4068
        %v4181 = vpop.f32.mrf.mxu0
        %v4182 = vadd.f32 0.0, %v4181
        %v4183 = vpop.f32.mrf.mxu0
        %4184 = vmatprep.mubr.f32.mxu0 0.0
        %4185 = vmatmul.mubr.f32.gmra.mxu0 %v4070
        %v4186 = vpop.f32.mrf.mxu0
        %v4187 = vadd.f32 0.0, %v4186
        %v4188 = vpop.f32.mrf.mxu0
        %4189 = vmatprep.mubr.f32.mxu0 0.0
        %4190 = vmatmul.mubr.f32.gmra.mxu0 %v4072
        %v4191 = vpop.f32.mrf.mxu0
        %v4192 = vadd.f32 0.0, %v4191
        %v4193 = vpop.f32.mrf.mxu0
        %4194 = vdwg.mxu0
        %v4195 = vsel %vm1186, %v3754, 0
        %v4197 = vsel %vm1186, %v3756, 0
        %v4199 = vsel %vm1186, %v3758, 0
        %v4201 = vsel %vm1186, %v3760, 0
        %v4203 = vsel %vm1186, %v3762, 0
        %v4205 = vsel %vm1186, %v3764, 0
        %v4207 = vsel %vm1186, %v3766, 0
        %v4209 = vsel %vm1186, %v3768, 0
        %v4211 = vsel %vm1186, %v3810, 0
        %v4213 = vsel %vm1186, %v3812, 0
        %v4215 = vsel %vm1186, %v3814, 0
        %v4217 = vsel %vm1186, %v3816, 0
        %v4219 = vsel %vm1186, %v3818, 0
        %v4221 = vsel %vm1186, %v3820, 0
        %v4223 = vsel %vm1186, %v3822, 0
        %v4225 = vsel %vm1186, %v3824, 0
        %4227 = vmatprep.subr.mxu0 0.0
        %4228 = vmatpush1.xpose.msra.mxu0 0.0
        %4229 = vmatprep.subr.mxu0 0.0
        %4230 = vmatpush1.xpose.msra.mxu0 0.0
        %4231 = vmatprep.subr.mxu0 0.0
        %4232 = vmatpush1.xpose.msra.mxu0 0.0
        %4233 = vmatprep.subr.mxu0 0.0
        %4234 = vmatpush1.xpose.msra.mxu0 0.0
        %4235 = vmatprep.subr.mxu0 0.0
        %4236 = vmatpush1.xpose.msra.mxu0 0.0
        %4237 = vmatprep.subr.mxu0 0.0
        %4238 = vmatpush1.xpose.msra.mxu0 0.0
        %4239 = vmatprep.subr.mxu0 0.0
        %4240 = vmatpush1.xpose.msra.mxu0 0.0
        %4241 = vmatprep.subr.mxu0 0.0
        %4242 = vmatpush1.xpose.msra.mxu0 0.0
        %4243 = vmatprep.subr.mxu0 0.0
        %4244 = vmatpush1.xpose.msra.mxu0 %v4225
        %4245 = vmatprep.subr.mxu0 0.0
        %4246 = vmatpush1.xpose.msra.mxu0 %v4223
        %4247 = vmatprep.subr.mxu0 0.0
        %4248 = vmatpush1.xpose.msra.mxu0 %v4221
        %4249 = vmatprep.subr.mxu0 0.0
        %4250 = vmatpush1.xpose.msra.mxu0 %v4219
        %4251 = vmatprep.subr.mxu0 0.0
        %4252 = vmatpush1.xpose.msra.mxu0 %v4217
        %4253 = vmatprep.subr.mxu0 0.0
        %4254 = vmatpush1.xpose.msra.mxu0 %v4215
        %4255 = vmatprep.subr.mxu0 0.0
        %4256 = vmatpush1.xpose.msra.mxu0 %v4213
        %4257 = vmatprep.subr.mxu0 0.0
        %4258 = vmatpush1.xpose.msra.mxu0 %v4211
        %4259 = vmatprep.subr.mxu0 0.0
        %4260 = vmatpush2.xpose.msra.mxu0 0.0
        %4261 = vmatprep.subr.mxu0 0.0
        %4262 = vmatpush2.xpose.msra.mxu0 0.0
        %4263 = vmatprep.subr.mxu0 0.0
        %4264 = vmatpush2.xpose.msra.mxu0 0.0
        %4265 = vmatprep.subr.mxu0 0.0
        %4266 = vmatpush2.xpose.msra.mxu0 0.0
        %4267 = vmatprep.subr.mxu0 0.0
        %4268 = vmatpush2.xpose.msra.mxu0 0.0
        %4269 = vmatprep.subr.mxu0 0.0
        %4270 = vmatpush2.xpose.msra.mxu0 0.0
        %4271 = vmatprep.subr.mxu0 0.0
        %4272 = vmatpush2.xpose.msra.mxu0 0.0
        %4273 = vmatprep.subr.mxu0 0.0
        %4274 = vmatpush2.xpose.msra.mxu0 0.0
        %4275 = vmatprep.subr.mxu0 0.0
        %4276 = vmatpush2.xpose.msra.mxu0 0.0
        %4277 = vmatprep.subr.mxu0 0.0
        %4278 = vmatpush2.xpose.msra.mxu0 0.0
        %4279 = vmatprep.subr.mxu0 0.0
        %4280 = vmatpush2.xpose.msra.mxu0 0.0
        %4281 = vmatprep.subr.mxu0 0.0
        %4282 = vmatpush2.xpose.msra.mxu0 0.0
        %4283 = vmatprep.subr.mxu0 0.0
        %4284 = vmatpush2.xpose.msra.mxu0 0.0
        %4285 = vmatprep.subr.mxu0 0.0
        %4286 = vmatpush2.xpose.msra.mxu0 0.0
        %4287 = vmatprep.subr.mxu0 0.0
        %4288 = vmatpush2.xpose.msra.mxu0 0.0
        %4289 = vmatprep.subr.mxu0 0.0
        %4290 = vmatpush2.xpose.msra.mxu0 0.0
        %4291 = vmatprep.mubr.f32.mxu0 0.0
        %4292 = vmatmul.mubr.f32.gmra.mxu0 %v4195
        %v4293 = vpop.f32.mrf.mxu0
        %v4294 = vadd.f32 0.0, %v4293
        %v4295 = vpop.f32.mrf.mxu0
        %4296 = vmatprep.mubr.f32.mxu0 0.0
        %4297 = vmatmul.mubr.f32.gmra.mxu0 %v4197
        %v4298 = vpop.f32.mrf.mxu0
        %v4299 = vadd.f32 0.0, %v4298
        %v4300 = vpop.f32.mrf.mxu0
        %4301 = vmatprep.mubr.f32.mxu0 0.0
        %4302 = vmatmul.mubr.f32.gmra.mxu0 %v4199
        %v4303 = vpop.f32.mrf.mxu0
        %v4304 = vadd.f32 0.0, %v4303
        %v4305 = vpop.f32.mrf.mxu0
        %4306 = vmatprep.mubr.f32.mxu0 0.0
        %4307 = vmatmul.mubr.f32.gmra.mxu0 %v4201
        %v4308 = vpop.f32.mrf.mxu0
        %v4309 = vadd.f32 0.0, %v4308
        %v4310 = vpop.f32.mrf.mxu0
        %4311 = vmatprep.mubr.f32.mxu0 0.0
        %4312 = vmatmul.mubr.f32.gmra.mxu0 %v4203
        %v4313 = vpop.f32.mrf.mxu0
        %v4314 = vadd.f32 0.0, %v4313
        %v4315 = vpop.f32.mrf.mxu0
        %4316 = vmatprep.mubr.f32.mxu0 0.0
        %4317 = vmatmul.mubr.f32.gmra.mxu0 %v4205
        %v4318 = vpop.f32.mrf.mxu0
        %v4319 = vadd.f32 0.0, %v4318
        %v4320 = vpop.f32.mrf.mxu0
        %4321 = vmatprep.mubr.f32.mxu0 0.0
        %4322 = vmatmul.mubr.f32.gmra.mxu0 %v4207
        %v4323 = vpop.f32.mrf.mxu0
        %v4324 = vadd.f32 0.0, %v4323
        %v4325 = vpop.f32.mrf.mxu0
        %4326 = vmatprep.mubr.f32.mxu0 0.0
        %4327 = vmatmul.mubr.f32.gmra.mxu0 %v4209
        %v4328 = vpop.f32.mrf.mxu0
        %v4329 = vadd.f32 0.0, %v4328
        %v4330 = vpop.f32.mrf.mxu0
        %4331 = vdwg.mxu0
        %v4332 = vsel %vm1186, %v3770, 0
        %v4334 = vsel %vm1186, %v3772, 0
        %v4336 = vsel %vm1186, %v3774, 0
        %v4338 = vsel %vm1186, %v3776, 0
        %v4340 = vsel %vm1186, %v3778, 0
        %v4342 = vsel %vm1186, %v3780, 0
        %v4344 = vsel %vm1186, %v3782, 0
        %v4346 = vsel %vm1186, %v3784, 0
        %v4348 = vsel %vm1186, %v3826, 0
        %v4350 = vsel %vm1186, %v3828, 0
        %v4352 = vsel %vm1186, %v3830, 0
        %v4354 = vsel %vm1186, %v3832, 0
        %v4356 = vsel %vm1186, %v3834, 0
        %v4358 = vsel %vm1186, %v3836, 0
        %v4360 = vsel %vm1186, %v3838, 0
        %v4362 = vsel %vm1186, %v3840, 0
        %4364 = vmatprep.subr.mxu0 0.0
        %4365 = vmatpush1.xpose.msra.mxu0 0.0
        %4366 = vmatprep.subr.mxu0 0.0
        %4367 = vmatpush1.xpose.msra.mxu0 0.0
        %4368 = vmatprep.subr.mxu0 0.0
        %4369 = vmatpush1.xpose.msra.mxu0 0.0
        %4370 = vmatprep.subr.mxu0 0.0
        %4371 = vmatpush1.xpose.msra.mxu0 0.0
        %4372 = vmatprep.subr.mxu0 0.0
        %4373 = vmatpush1.xpose.msra.mxu0 0.0
        %4374 = vmatprep.subr.mxu0 0.0
        %4375 = vmatpush1.xpose.msra.mxu0 0.0
        %4376 = vmatprep.subr.mxu0 0.0
        %4377 = vmatpush1.xpose.msra.mxu0 0.0
        %4378 = vmatprep.subr.mxu0 0.0
        %4379 = vmatpush1.xpose.msra.mxu0 0.0
        %4380 = vmatprep.subr.mxu0 0.0
        %4381 = vmatpush1.xpose.msra.mxu0 %v4362
        %4382 = vmatprep.subr.mxu0 0.0
        %4383 = vmatpush1.xpose.msra.mxu0 %v4360
        %4384 = vmatprep.subr.mxu0 0.0
        %4385 = vmatpush1.xpose.msra.mxu0 %v4358
        %4386 = vmatprep.subr.mxu0 0.0
        %4387 = vmatpush1.xpose.msra.mxu0 %v4356
        %4388 = vmatprep.subr.mxu0 0.0
        %4389 = vmatpush1.xpose.msra.mxu0 %v4354
        %4390 = vmatprep.subr.mxu0 0.0
        %4391 = vmatpush1.xpose.msra.mxu0 %v4352
        %4392 = vmatprep.subr.mxu0 0.0
        %4393 = vmatpush1.xpose.msra.mxu0 %v4350
        %4394 = vmatprep.subr.mxu0 0.0
        %4395 = vmatpush1.xpose.msra.mxu0 %v4348
        %4396 = vmatprep.subr.mxu0 0.0
        %4397 = vmatpush2.xpose.msra.mxu0 0.0
        %4398 = vmatprep.subr.mxu0 0.0
        %4399 = vmatpush2.xpose.msra.mxu0 0.0
        %4400 = vmatprep.subr.mxu0 0.0
        %4401 = vmatpush2.xpose.msra.mxu0 0.0
        %4402 = vmatprep.subr.mxu0 0.0
        %4403 = vmatpush2.xpose.msra.mxu0 0.0
        %4404 = vmatprep.subr.mxu0 0.0
        %4405 = vmatpush2.xpose.msra.mxu0 0.0
        %4406 = vmatprep.subr.mxu0 0.0
        %4407 = vmatpush2.xpose.msra.mxu0 0.0
        %4408 = vmatprep.subr.mxu0 0.0
        %4409 = vmatpush2.xpose.msra.mxu0 0.0
        %4410 = vmatprep.subr.mxu0 0.0
        %4411 = vmatpush2.xpose.msra.mxu0 0.0
        %4412 = vmatprep.subr.mxu0 0.0
        %4413 = vmatpush2.xpose.msra.mxu0 0.0
        %4414 = vmatprep.subr.mxu0 0.0
        %4415 = vmatpush2.xpose.msra.mxu0 0.0
        %4416 = vmatprep.subr.mxu0 0.0
        %4417 = vmatpush2.xpose.msra.mxu0 0.0
        %4418 = vmatprep.subr.mxu0 0.0
        %4419 = vmatpush2.xpose.msra.mxu0 0.0
        %4420 = vmatprep.subr.mxu0 0.0
        %4421 = vmatpush2.xpose.msra.mxu0 0.0
        %4422 = vmatprep.subr.mxu0 0.0
        %4423 = vmatpush2.xpose.msra.mxu0 0.0
        %4424 = vmatprep.subr.mxu0 0.0
        %4425 = vmatpush2.xpose.msra.mxu0 0.0
        %4426 = vmatprep.subr.mxu0 0.0
        %4427 = vmatpush2.xpose.msra.mxu0 0.0
        %4428 = vmatprep.mubr.f32.mxu0 0.0
        %4429 = vmatmul.mubr.f32.gmra.mxu0 %v4332
        %v4430 = vpop.f32.mrf.mxu0
        %v4431 = vadd.f32 0.0, %v4430
        %v4432 = vpop.f32.mrf.mxu0
        %4433 = vmatprep.mubr.f32.mxu0 0.0
        %4434 = vmatmul.mubr.f32.gmra.mxu0 %v4334
        %v4435 = vpop.f32.mrf.mxu0
        %v4436 = vadd.f32 0.0, %v4435
        %v4437 = vpop.f32.mrf.mxu0
        %4438 = vmatprep.mubr.f32.mxu0 0.0
        %4439 = vmatmul.mubr.f32.gmra.mxu0 %v4336
        %v4440 = vpop.f32.mrf.mxu0
        %v4441 = vadd.f32 0.0, %v4440
        %v4442 = vpop.f32.mrf.mxu0
        %4443 = vmatprep.mubr.f32.mxu0 0.0
        %4444 = vmatmul.mubr.f32.gmra.mxu0 %v4338
        %v4445 = vpop.f32.mrf.mxu0
        %v4446 = vadd.f32 0.0, %v4445
        %v4447 = vpop.f32.mrf.mxu0
        %4448 = vmatprep.mubr.f32.mxu0 0.0
        %4449 = vmatmul.mubr.f32.gmra.mxu0 %v4340
        %v4450 = vpop.f32.mrf.mxu0
        %v4451 = vadd.f32 0.0, %v4450
        %v4452 = vpop.f32.mrf.mxu0
        %4453 = vmatprep.mubr.f32.mxu0 0.0
        %4454 = vmatmul.mubr.f32.gmra.mxu0 %v4342
        %v4455 = vpop.f32.mrf.mxu0
        %v4456 = vadd.f32 0.0, %v4455
        %v4457 = vpop.f32.mrf.mxu0
        %4458 = vmatprep.mubr.f32.mxu0 0.0
        %4459 = vmatmul.mubr.f32.gmra.mxu0 %v4344
        %v4460 = vpop.f32.mrf.mxu0
        %v4461 = vadd.f32 0.0, %v4460
        %v4462 = vpop.f32.mrf.mxu0
        %4463 = vmatprep.mubr.f32.mxu0 0.0
        %4464 = vmatmul.mubr.f32.gmra.mxu0 %v4346
        %v4465 = vpop.f32.mrf.mxu0
        %v4466 = vadd.f32 0.0, %v4465
        %v4467 = vpop.f32.mrf.mxu0
        %4468 = vdwg.mxu0
        %v4469 = vsel %vm1735, %v4020, -inf
        %4470 = vmax.xlane.f32.xlu0 %v4469
        %v4471 = vpop.xlane.xlu0 %4470
        %v4472 = vsel %vm1735, %v4025, -inf
        %4473 = vmax.xlane.f32.xlu0 %v4472
        %v4474 = vpop.xlane.xlu0 %4473
        %v4475 = vsel %vm1735, %v4030, -inf
        %4476 = vmax.xlane.f32.xlu0 %v4475
        %v4477 = vpop.xlane.xlu0 %4476
        %v4478 = vsel %vm1735, %v4035, -inf
        %4479 = vmax.xlane.f32.xlu0 %v4478
        %v4480 = vpop.xlane.xlu0 %4479
        %v4481 = vsel %vm1735, %v4040, -inf
        %4482 = vmax.xlane.f32.xlu0 %v4481
        %v4483 = vpop.xlane.xlu0 %4482
        %v4484 = vsel %vm1735, %v4045, -inf
        %4485 = vmax.xlane.f32.xlu0 %v4484
        %v4486 = vpop.xlane.xlu0 %4485
        %v4487 = vsel %vm1735, %v4050, -inf
        %4488 = vmax.xlane.f32.xlu0 %v4487
        %v4489 = vpop.xlane.xlu0 %4488
        %v4490 = vsel %vm1735, %v4055, -inf
        %4491 = vmax.xlane.f32.xlu0 %v4490
        %v4492 = vpop.xlane.xlu0 %4491
        %v4493 = vsel %vm1735, %v4157, -inf
        %4494 = vmax.xlane.f32.xlu0 %v4493
        %v4495 = vpop.xlane.xlu0 %4494
        %v4496 = vsel %vm1735, %v4162, -inf
        %4497 = vmax.xlane.f32.xlu0 %v4496
        %v4498 = vpop.xlane.xlu0 %4497
        %v4499 = vsel %vm1735, %v4167, -inf
        %4500 = vmax.xlane.f32.xlu0 %v4499
        %v4501 = vpop.xlane.xlu0 %4500
        %v4502 = vsel %vm1735, %v4172, -inf
        %4503 = vmax.xlane.f32.xlu0 %v4502
        %v4504 = vpop.xlane.xlu0 %4503
        %v4505 = vsel %vm1735, %v4177, -inf
        %4506 = vmax.xlane.f32.xlu0 %v4505
        %v4507 = vpop.xlane.xlu0 %4506
        %v4508 = vsel %vm1735, %v4182, -inf
        %4509 = vmax.xlane.f32.xlu0 %v4508
        %v4510 = vpop.xlane.xlu0 %4509
        %v4511 = vsel %vm1735, %v4187, -inf
        %4512 = vmax.xlane.f32.xlu0 %v4511
        %v4513 = vpop.xlane.xlu0 %4512
        %v4514 = vsel %vm1735, %v4192, -inf
        %4515 = vmax.xlane.f32.xlu0 %v4514
        %v4516 = vpop.xlane.xlu0 %4515
        %v4517 = vsel %vm1735, %v4294, -inf
        %4518 = vmax.xlane.f32.xlu0 %v4517
        %v4519 = vpop.xlane.xlu0 %4518
        %v4520 = vsel %vm1735, %v4299, -inf
        %4521 = vmax.xlane.f32.xlu0 %v4520
        %v4522 = vpop.xlane.xlu0 %4521
        %v4523 = vsel %vm1735, %v4304, -inf
        %4524 = vmax.xlane.f32.xlu0 %v4523
        %v4525 = vpop.xlane.xlu0 %4524
        %v4526 = vsel %vm1735, %v4309, -inf
        %4527 = vmax.xlane.f32.xlu0 %v4526
        %v4528 = vpop.xlane.xlu0 %4527
        %v4529 = vsel %vm1735, %v4314, -inf
        %4530 = vmax.xlane.f32.xlu0 %v4529
        %v4531 = vpop.xlane.xlu0 %4530
        %v4532 = vsel %vm1735, %v4319, -inf
        %4533 = vmax.xlane.f32.xlu0 %v4532
        %v4534 = vpop.xlane.xlu0 %4533
        %v4535 = vsel %vm1735, %v4324, -inf
        %4536 = vmax.xlane.f32.xlu0 %v4535
        %v4537 = vpop.xlane.xlu0 %4536
        %v4538 = vsel %vm1735, %v4329, -inf
        %4539 = vmax.xlane.f32.xlu0 %v4538
        %v4540 = vpop.xlane.xlu0 %4539
        %v4541 = vsel %vm1735, %v4431, -inf
        %4542 = vmax.xlane.f32.xlu0 %v4541
        %v4543 = vpop.xlane.xlu0 %4542
        %v4544 = vsel %vm1735, %v4436, -inf
        %4545 = vmax.xlane.f32.xlu0 %v4544
        %v4546 = vpop.xlane.xlu0 %4545
        %v4547 = vsel %vm1735, %v4441, -inf
        %4548 = vmax.xlane.f32.xlu0 %v4547
        %v4549 = vpop.xlane.xlu0 %4548
        %v4550 = vsel %vm1735, %v4446, -inf
        %4551 = vmax.xlane.f32.xlu0 %v4550
        %v4552 = vpop.xlane.xlu0 %4551
        %v4553 = vsel %vm1735, %v4451, -inf
        %4554 = vmax.xlane.f32.xlu0 %v4553
        %v4555 = vpop.xlane.xlu0 %4554
        %v4556 = vsel %vm1735, %v4456, -inf
        %4557 = vmax.xlane.f32.xlu0 %v4556
        %v4558 = vpop.xlane.xlu0 %4557
        %v4559 = vsel %vm1735, %v4461, -inf
        %4560 = vmax.xlane.f32.xlu0 %v4559
        %v4561 = vpop.xlane.xlu0 %4560
        %v4562 = vsel %vm1735, %v4466, -inf
        %4563 = vmax.xlane.f32.xlu0 %v4562
        %v4564 = vpop.xlane.xlu0 %4563
        %v4565 = vsub.f32 %v4020, %v4471
        %v4566 = vsub.f32 %v4025, %v4474
        %v4567 = vsub.f32 %v4030, %v4477
        %v4568 = vsub.f32 %v4035, %v4480
        %v4569 = vsub.f32 %v4040, %v4483
        %v4570 = vsub.f32 %v4045, %v4486
        %v4571 = vsub.f32 %v4050, %v4489
        %v4572 = vsub.f32 %v4055, %v4492
        %v4573 = vsub.f32 %v4157, %v4495
        %v4574 = vsub.f32 %v4162, %v4498
        %v4575 = vsub.f32 %v4167, %v4501
        %v4576 = vsub.f32 %v4172, %v4504
        %v4577 = vsub.f32 %v4177, %v4507
        %v4578 = vsub.f32 %v4182, %v4510
        %v4579 = vsub.f32 %v4187, %v4513
        %v4580 = vsub.f32 %v4192, %v4516
        %v4581 = vsub.f32 %v4294, %v4519
        %v4582 = vsub.f32 %v4299, %v4522
        %v4583 = vsub.f32 %v4304, %v4525
        %v4584 = vsub.f32 %v4309, %v4528
        %v4585 = vsub.f32 %v4314, %v4531
        %v4586 = vsub.f32 %v4319, %v4534
        %v4587 = vsub.f32 %v4324, %v4537
        %v4588 = vsub.f32 %v4329, %v4540
        %v4589 = vsub.f32 %v4431, %v4543
        %v4590 = vsub.f32 %v4436, %v4546
        %v4591 = vsub.f32 %v4441, %v4549
        %v4592 = vsub.f32 %v4446, %v4552
        %v4593 = vsub.f32 %v4451, %v4555
        %v4594 = vsub.f32 %v4456, %v4558
        %v4595 = vsub.f32 %v4461, %v4561
        %v4596 = vsub.f32 %v4466, %v4564
        %v4597 = vmul.f32 %v4565, 1.442695
        %v4598 = vpow.pop %v4597
        %v4599 = vmul.f32 %v4566, 1.442695
        %v4600 = vpow.pop %v4599
        %v4601 = vmul.f32 %v4567, 1.442695
        %v4602 = vpow.pop %v4601
        %v4603 = vmul.f32 %v4568, 1.442695
        %v4604 = vpow.pop %v4603
        %v4605 = vmul.f32 %v4569, 1.442695
        %v4606 = vpow.pop %v4605
        %v4607 = vmul.f32 %v4570, 1.442695
        %v4608 = vpow.pop %v4607
        %v4609 = vmul.f32 %v4571, 1.442695
        %v4610 = vpow.pop %v4609
        %v4611 = vmul.f32 %v4572, 1.442695
        %v4612 = vpow.pop %v4611
        %v4613 = vmul.f32 %v4573, 1.442695
        %v4614 = vpow.pop %v4613
        %v4615 = vmul.f32 %v4574, 1.442695
        %v4616 = vpow.pop %v4615
        %v4617 = vmul.f32 %v4575, 1.442695
        %v4618 = vpow.pop %v4617
        %v4619 = vmul.f32 %v4576, 1.442695
        %v4620 = vpow.pop %v4619
        %v4621 = vmul.f32 %v4577, 1.442695
        %v4622 = vpow.pop %v4621
        %v4623 = vmul.f32 %v4578, 1.442695
        %v4624 = vpow.pop %v4623
        %v4625 = vmul.f32 %v4579, 1.442695
        %v4626 = vpow.pop %v4625
        %v4627 = vmul.f32 %v4580, 1.442695
        %v4628 = vpow.pop %v4627
        %v4629 = vmul.f32 %v4581, 1.442695
        %v4630 = vpow.pop %v4629
        %v4631 = vmul.f32 %v4582, 1.442695
        %v4632 = vpow.pop %v4631
        %v4633 = vmul.f32 %v4583, 1.442695
        %v4634 = vpow.pop %v4633
        %v4635 = vmul.f32 %v4584, 1.442695
        %v4636 = vpow.pop %v4635
        %v4637 = vmul.f32 %v4585, 1.442695
        %v4638 = vpow.pop %v4637
        %v4639 = vmul.f32 %v4586, 1.442695
        %v4640 = vpow.pop %v4639
        %v4641 = vmul.f32 %v4587, 1.442695
        %v4642 = vpow.pop %v4641
        %v4643 = vmul.f32 %v4588, 1.442695
        %v4644 = vpow.pop %v4643
        %v4645 = vmul.f32 %v4589, 1.442695
        %v4646 = vpow.pop %v4645
        %v4647 = vmul.f32 %v4590, 1.442695
        %v4648 = vpow.pop %v4647
        %v4649 = vmul.f32 %v4591, 1.442695
        %v4650 = vpow.pop %v4649
        %v4651 = vmul.f32 %v4592, 1.442695
        %v4652 = vpow.pop %v4651
        %v4653 = vmul.f32 %v4593, 1.442695
        %v4654 = vpow.pop %v4653
        %v4655 = vmul.f32 %v4594, 1.442695
        %v4656 = vpow.pop %v4655
        %v4657 = vmul.f32 %v4595, 1.442695
        %v4658 = vpow.pop %v4657
        %v4659 = vmul.f32 %v4596, 1.442695
        %v4660 = vpow.pop %v4659
        %v4662 = vsel %vm1735, %v4598, 0
        %v4665 = vsel %vm1735, %v4600, 0
        %v4668 = vsel %vm1735, %v4602, 0
        %v4671 = vsel %vm1735, %v4604, 0
        %v4674 = vsel %vm1735, %v4606, 0
        %v4677 = vsel %vm1735, %v4608, 0
        %v4680 = vsel %vm1735, %v4610, 0
        %v4683 = vsel %vm1735, %v4612, 0
        %4685 = vmatprep.subr.mxu0 0.0
        %4686 = vmatpush1.msra.mxu0 0.0
        %4687 = vmatprep.subr.mxu0 0.0
        %4688 = vmatpush1.msra.mxu0 0.0
        %4689 = vmatprep.subr.mxu0 0.0
        %4690 = vmatpush1.msra.mxu0 0.0
        %4691 = vmatprep.subr.mxu0 0.0
        %4692 = vmatpush1.msra.mxu0 0.0
        %4693 = vmatprep.subr.mxu0 0.0
        %4694 = vmatpush1.msra.mxu0 0.0
        %4695 = vmatprep.subr.mxu0 0.0
        %4696 = vmatpush1.msra.mxu0 0.0
        %4697 = vmatprep.subr.mxu0 0.0
        %4698 = vmatpush1.msra.mxu0 0.0
        %4699 = vmatprep.subr.mxu0 0.0
        %4700 = vmatpush1.msra.mxu0 0.0
        %4701 = vmatprep.subr.mxu0 0.0
        %4702 = vmatpush1.msra.mxu0 %v3726
        %4703 = vmatprep.subr.mxu0 0.0
        %4704 = vmatpush1.msra.mxu0 %v3721
        %4705 = vmatprep.subr.mxu0 0.0
        %4706 = vmatpush1.msra.mxu0 %v3716
        %4707 = vmatprep.subr.mxu0 0.0
        %4708 = vmatpush1.msra.mxu0 %v3711
        %4709 = vmatprep.subr.mxu0 0.0
        %4710 = vmatpush1.msra.mxu0 %v3706
        %4711 = vmatprep.subr.mxu0 0.0
        %4712 = vmatpush1.msra.mxu0 %v3701
        %4713 = vmatprep.subr.mxu0 0.0
        %4714 = vmatpush1.msra.mxu0 %v3696
        %4715 = vmatprep.subr.mxu0 0.0
        %4716 = vmatpush1.msra.mxu0 %v3691
        %4717 = vmatprep.subr.mxu0 0.0
        %4718 = vmatpush2.msra.mxu0 0.0
        %4719 = vmatprep.subr.mxu0 0.0
        %4720 = vmatpush2.msra.mxu0 0.0
        %4721 = vmatprep.subr.mxu0 0.0
        %4722 = vmatpush2.msra.mxu0 0.0
        %4723 = vmatprep.subr.mxu0 0.0
        %4724 = vmatpush2.msra.mxu0 0.0
        %4725 = vmatprep.subr.mxu0 0.0
        %4726 = vmatpush2.msra.mxu0 0.0
        %4727 = vmatprep.subr.mxu0 0.0
        %4728 = vmatpush2.msra.mxu0 0.0
        %4729 = vmatprep.subr.mxu0 0.0
        %4730 = vmatpush2.msra.mxu0 0.0
        %4731 = vmatprep.subr.mxu0 0.0
        %4732 = vmatpush2.msra.mxu0 0.0
        %4733 = vmatprep.subr.mxu0 0.0
        %4734 = vmatpush2.msra.mxu0 0.0
        %4735 = vmatprep.subr.mxu0 0.0
        %4736 = vmatpush2.msra.mxu0 0.0
        %4737 = vmatprep.subr.mxu0 0.0
        %4738 = vmatpush2.msra.mxu0 0.0
        %4739 = vmatprep.subr.mxu0 0.0
        %4740 = vmatpush2.msra.mxu0 0.0
        %4741 = vmatprep.subr.mxu0 0.0
        %4742 = vmatpush2.msra.mxu0 0.0
        %4743 = vmatprep.subr.mxu0 0.0
        %4744 = vmatpush2.msra.mxu0 0.0
        %4745 = vmatprep.subr.mxu0 0.0
        %4746 = vmatpush2.msra.mxu0 0.0
        %4747 = vmatprep.subr.mxu0 0.0
        %4748 = vmatpush2.msra.mxu0 0.0
        %4749 = vmatprep.mubr.f32.mxu0 0.0
        %4750 = vmatmul.mubr.f32.gmra.mxu0 %v4662
        %v4751 = vpop.f32.mrf.mxu0
        %v4752 = vadd.f32 0.0, %v4751
        %v4753 = vpop.f32.mrf.mxu0
        %4754 = vmatprep.mubr.f32.mxu0 0.0
        %4755 = vmatmul.mubr.f32.gmra.mxu0 %v4665
        %v4756 = vpop.f32.mrf.mxu0
        %v4757 = vadd.f32 0.0, %v4756
        %v4758 = vpop.f32.mrf.mxu0
        %4759 = vmatprep.mubr.f32.mxu0 0.0
        %4760 = vmatmul.mubr.f32.gmra.mxu0 %v4668
        %v4761 = vpop.f32.mrf.mxu0
        %v4762 = vadd.f32 0.0, %v4761
        %v4763 = vpop.f32.mrf.mxu0
        %4764 = vmatprep.mubr.f32.mxu0 0.0
        %4765 = vmatmul.mubr.f32.gmra.mxu0 %v4671
        %v4766 = vpop.f32.mrf.mxu0
        %v4767 = vadd.f32 0.0, %v4766
        %v4768 = vpop.f32.mrf.mxu0
        %4769 = vmatprep.mubr.f32.mxu0 0.0
        %4770 = vmatmul.mubr.f32.gmra.mxu0 %v4674
        %v4771 = vpop.f32.mrf.mxu0
        %v4772 = vadd.f32 0.0, %v4771
        %v4773 = vpop.f32.mrf.mxu0
        %4774 = vmatprep.mubr.f32.mxu0 0.0
        %4775 = vmatmul.mubr.f32.gmra.mxu0 %v4677
        %v4776 = vpop.f32.mrf.mxu0
        %v4777 = vadd.f32 0.0, %v4776
        %v4778 = vpop.f32.mrf.mxu0
        %4779 = vmatprep.mubr.f32.mxu0 0.0
        %4780 = vmatmul.mubr.f32.gmra.mxu0 %v4680
        %v4781 = vpop.f32.mrf.mxu0
        %v4782 = vadd.f32 0.0, %v4781
        %v4783 = vpop.f32.mrf.mxu0
        %4784 = vmatprep.mubr.f32.mxu0 0.0
        %4785 = vmatmul.mubr.f32.gmra.mxu0 %v4683
        %v4786 = vpop.f32.mrf.mxu0
        %v4787 = vadd.f32 0.0, %v4786
        %v4788 = vpop.f32.mrf.mxu0
        %4789 = vdwg.mxu0
        %v4791 = vsel %vm1735, %v4614, 0
        %v4794 = vsel %vm1735, %v4616, 0
        %v4797 = vsel %vm1735, %v4618, 0
        %v4800 = vsel %vm1735, %v4620, 0
        %v4803 = vsel %vm1735, %v4622, 0
        %v4806 = vsel %vm1735, %v4624, 0
        %v4809 = vsel %vm1735, %v4626, 0
        %v4812 = vsel %vm1735, %v4628, 0
        %4814 = vmatprep.subr.mxu0 0.0
        %4815 = vmatpush1.msra.mxu0 0.0
        %4816 = vmatprep.subr.mxu0 0.0
        %4817 = vmatpush1.msra.mxu0 0.0
        %4818 = vmatprep.subr.mxu0 0.0
        %4819 = vmatpush1.msra.mxu0 0.0
        %4820 = vmatprep.subr.mxu0 0.0
        %4821 = vmatpush1.msra.mxu0 0.0
        %4822 = vmatprep.subr.mxu0 0.0
        %4823 = vmatpush1.msra.mxu0 0.0
        %4824 = vmatprep.subr.mxu0 0.0
        %4825 = vmatpush1.msra.mxu0 0.0
        %4826 = vmatprep.subr.mxu0 0.0
        %4827 = vmatpush1.msra.mxu0 0.0
        %4828 = vmatprep.subr.mxu0 0.0
        %4829 = vmatpush1.msra.mxu0 0.0
        %4830 = vmatprep.subr.mxu0 0.0
        %4831 = vmatpush1.msra.mxu0 %v3864
        %4832 = vmatprep.subr.mxu0 0.0
        %4833 = vmatpush1.msra.mxu0 %v3862
        %4834 = vmatprep.subr.mxu0 0.0
        %4835 = vmatpush1.msra.mxu0 %v3860
        %4836 = vmatprep.subr.mxu0 0.0
        %4837 = vmatpush1.msra.mxu0 %v3858
        %4838 = vmatprep.subr.mxu0 0.0
        %4839 = vmatpush1.msra.mxu0 %v3856
        %4840 = vmatprep.subr.mxu0 0.0
        %4841 = vmatpush1.msra.mxu0 %v3854
        %4842 = vmatprep.subr.mxu0 0.0
        %4843 = vmatpush1.msra.mxu0 %v3852
        %4844 = vmatprep.subr.mxu0 0.0
        %4845 = vmatpush1.msra.mxu0 %v3850
        %4846 = vmatprep.subr.mxu0 0.0
        %4847 = vmatpush2.msra.mxu0 0.0
        %4848 = vmatprep.subr.mxu0 0.0
        %4849 = vmatpush2.msra.mxu0 0.0
        %4850 = vmatprep.subr.mxu0 0.0
        %4851 = vmatpush2.msra.mxu0 0.0
        %4852 = vmatprep.subr.mxu0 0.0
        %4853 = vmatpush2.msra.mxu0 0.0
        %4854 = vmatprep.subr.mxu0 0.0
        %4855 = vmatpush2.msra.mxu0 0.0
        %4856 = vmatprep.subr.mxu0 0.0
        %4857 = vmatpush2.msra.mxu0 0.0
        %4858 = vmatprep.subr.mxu0 0.0
        %4859 = vmatpush2.msra.mxu0 0.0
        %4860 = vmatprep.subr.mxu0 0.0
        %4861 = vmatpush2.msra.mxu0 0.0
        %4862 = vmatprep.subr.mxu0 0.0
        %4863 = vmatpush2.msra.mxu0 0.0
        %4864 = vmatprep.subr.mxu0 0.0
        %4865 = vmatpush2.msra.mxu0 0.0
        %4866 = vmatprep.subr.mxu0 0.0
        %4867 = vmatpush2.msra.mxu0 0.0
        %4868 = vmatprep.subr.mxu0 0.0
        %4869 = vmatpush2.msra.mxu0 0.0
        %4870 = vmatprep.subr.mxu0 0.0
        %4871 = vmatpush2.msra.mxu0 0.0
        %4872 = vmatprep.subr.mxu0 0.0
        %4873 = vmatpush2.msra.mxu0 0.0
        %4874 = vmatprep.subr.mxu0 0.0
        %4875 = vmatpush2.msra.mxu0 0.0
        %4876 = vmatprep.subr.mxu0 0.0
        %4877 = vmatpush2.msra.mxu0 0.0
        %4878 = vmatprep.mubr.f32.mxu0 0.0
        %4879 = vmatmul.mubr.f32.gmra.mxu0 %v4791
        %v4880 = vpop.f32.mrf.mxu0
        %v4881 = vadd.f32 0.0, %v4880
        %v4882 = vpop.f32.mrf.mxu0
        %4883 = vmatprep.mubr.f32.mxu0 0.0
        %4884 = vmatmul.mubr.f32.gmra.mxu0 %v4794
        %v4885 = vpop.f32.mrf.mxu0
        %v4886 = vadd.f32 0.0, %v4885
        %v4887 = vpop.f32.mrf.mxu0
        %4888 = vmatprep.mubr.f32.mxu0 0.0
        %4889 = vmatmul.mubr.f32.gmra.mxu0 %v4797
        %v4890 = vpop.f32.mrf.mxu0
        %v4891 = vadd.f32 0.0, %v4890
        %v4892 = vpop.f32.mrf.mxu0
        %4893 = vmatprep.mubr.f32.mxu0 0.0
        %4894 = vmatmul.mubr.f32.gmra.mxu0 %v4800
        %v4895 = vpop.f32.mrf.mxu0
        %v4896 = vadd.f32 0.0, %v4895
        %v4897 = vpop.f32.mrf.mxu0
        %4898 = vmatprep.mubr.f32.mxu0 0.0
        %4899 = vmatmul.mubr.f32.gmra.mxu0 %v4803
        %v4900 = vpop.f32.mrf.mxu0
        %v4901 = vadd.f32 0.0, %v4900
        %v4902 = vpop.f32.mrf.mxu0
        %4903 = vmatprep.mubr.f32.mxu0 0.0
        %4904 = vmatmul.mubr.f32.gmra.mxu0 %v4806
        %v4905 = vpop.f32.mrf.mxu0
        %v4906 = vadd.f32 0.0, %v4905
        %v4907 = vpop.f32.mrf.mxu0
        %4908 = vmatprep.mubr.f32.mxu0 0.0
        %4909 = vmatmul.mubr.f32.gmra.mxu0 %v4809
        %v4910 = vpop.f32.mrf.mxu0
        %v4911 = vadd.f32 0.0, %v4910
        %v4912 = vpop.f32.mrf.mxu0
        %4913 = vmatprep.mubr.f32.mxu0 0.0
        %4914 = vmatmul.mubr.f32.gmra.mxu0 %v4812
        %v4915 = vpop.f32.mrf.mxu0
        %v4916 = vadd.f32 0.0, %v4915
        %v4917 = vpop.f32.mrf.mxu0
        %4918 = vdwg.mxu0
        %v4920 = vsel %vm1735, %v4630, 0
        %v4923 = vsel %vm1735, %v4632, 0
        %v4926 = vsel %vm1735, %v4634, 0
        %v4929 = vsel %vm1735, %v4636, 0
        %v4932 = vsel %vm1735, %v4638, 0
        %v4935 = vsel %vm1735, %v4640, 0
        %v4938 = vsel %vm1735, %v4642, 0
        %v4941 = vsel %vm1735, %v4644, 0
        %4943 = vmatprep.subr.mxu0 0.0
        %4944 = vmatpush1.msra.mxu0 0.0
        %4945 = vmatprep.subr.mxu0 0.0
        %4946 = vmatpush1.msra.mxu0 0.0
        %4947 = vmatprep.subr.mxu0 0.0
        %4948 = vmatpush1.msra.mxu0 0.0
        %4949 = vmatprep.subr.mxu0 0.0
        %4950 = vmatpush1.msra.mxu0 0.0
        %4951 = vmatprep.subr.mxu0 0.0
        %4952 = vmatpush1.msra.mxu0 0.0
        %4953 = vmatprep.subr.mxu0 0.0
        %4954 = vmatpush1.msra.mxu0 0.0
        %4955 = vmatprep.subr.mxu0 0.0
        %4956 = vmatpush1.msra.mxu0 0.0
        %4957 = vmatprep.subr.mxu0 0.0
        %4958 = vmatpush1.msra.mxu0 0.0
        %4959 = vmatprep.subr.mxu0 0.0
        %4960 = vmatpush1.msra.mxu0 %v3888
        %4961 = vmatprep.subr.mxu0 0.0
        %4962 = vmatpush1.msra.mxu0 %v3886
        %4963 = vmatprep.subr.mxu0 0.0
        %4964 = vmatpush1.msra.mxu0 %v3884
        %4965 = vmatprep.subr.mxu0 0.0
        %4966 = vmatpush1.msra.mxu0 %v3882
        %4967 = vmatprep.subr.mxu0 0.0
        %4968 = vmatpush1.msra.mxu0 %v3880
        %4969 = vmatprep.subr.mxu0 0.0
        %4970 = vmatpush1.msra.mxu0 %v3878
        %4971 = vmatprep.subr.mxu0 0.0
        %4972 = vmatpush1.msra.mxu0 %v3876
        %4973 = vmatprep.subr.mxu0 0.0
        %4974 = vmatpush1.msra.mxu0 %v3874
        %4975 = vmatprep.subr.mxu0 0.0
        %4976 = vmatpush2.msra.mxu0 0.0
        %4977 = vmatprep.subr.mxu0 0.0
        %4978 = vmatpush2.msra.mxu0 0.0
        %4979 = vmatprep.subr.mxu0 0.0
        %4980 = vmatpush2.msra.mxu0 0.0
        %4981 = vmatprep.subr.mxu0 0.0
        %4982 = vmatpush2.msra.mxu0 0.0
        %4983 = vmatprep.subr.mxu0 0.0
        %4984 = vmatpush2.msra.mxu0 0.0
        %4985 = vmatprep.subr.mxu0 0.0
        %4986 = vmatpush2.msra.mxu0 0.0
        %4987 = vmatprep.subr.mxu0 0.0
        %4988 = vmatpush2.msra.mxu0 0.0
        %4989 = vmatprep.subr.mxu0 0.0
        %4990 = vmatpush2.msra.mxu0 0.0
        %4991 = vmatprep.subr.mxu0 0.0
        %4992 = vmatpush2.msra.mxu0 0.0
        %4993 = vmatprep.subr.mxu0 0.0
        %4994 = vmatpush2.msra.mxu0 0.0
        %4995 = vmatprep.subr.mxu0 0.0
        %4996 = vmatpush2.msra.mxu0 0.0
        %4997 = vmatprep.subr.mxu0 0.0
        %4998 = vmatpush2.msra.mxu0 0.0
        %4999 = vmatprep.subr.mxu0 0.0
        %5000 = vmatpush2.msra.mxu0 0.0
        %5001 = vmatprep.subr.mxu0 0.0
        %5002 = vmatpush2.msra.mxu0 0.0
        %5003 = vmatprep.subr.mxu0 0.0
        %5004 = vmatpush2.msra.mxu0 0.0
        %5005 = vmatprep.subr.mxu0 0.0
        %5006 = vmatpush2.msra.mxu0 0.0
        %5007 = vmatprep.mubr.f32.mxu0 0.0
        %5008 = vmatmul.mubr.f32.gmra.mxu0 %v4920
        %v5009 = vpop.f32.mrf.mxu0
        %v5010 = vadd.f32 0.0, %v5009
        %v5011 = vpop.f32.mrf.mxu0
        %5012 = vmatprep.mubr.f32.mxu0 0.0
        %5013 = vmatmul.mubr.f32.gmra.mxu0 %v4923
        %v5014 = vpop.f32.mrf.mxu0
        %v5015 = vadd.f32 0.0, %v5014
        %v5016 = vpop.f32.mrf.mxu0
        %5017 = vmatprep.mubr.f32.mxu0 0.0
        %5018 = vmatmul.mubr.f32.gmra.mxu0 %v4926
        %v5019 = vpop.f32.mrf.mxu0
        %v5020 = vadd.f32 0.0, %v5019
        %v5021 = vpop.f32.mrf.mxu0
        %5022 = vmatprep.mubr.f32.mxu0 0.0
        %5023 = vmatmul.mubr.f32.gmra.mxu0 %v4929
        %v5024 = vpop.f32.mrf.mxu0
        %v5025 = vadd.f32 0.0, %v5024
        %v5026 = vpop.f32.mrf.mxu0
        %5027 = vmatprep.mubr.f32.mxu0 0.0
        %5028 = vmatmul.mubr.f32.gmra.mxu0 %v4932
        %v5029 = vpop.f32.mrf.mxu0
        %v5030 = vadd.f32 0.0, %v5029
        %v5031 = vpop.f32.mrf.mxu0
        %5032 = vmatprep.mubr.f32.mxu0 0.0
        %5033 = vmatmul.mubr.f32.gmra.mxu0 %v4935
        %v5034 = vpop.f32.mrf.mxu0
        %v5035 = vadd.f32 0.0, %v5034
        %v5036 = vpop.f32.mrf.mxu0
        %5037 = vmatprep.mubr.f32.mxu0 0.0
        %5038 = vmatmul.mubr.f32.gmra.mxu0 %v4938
        %v5039 = vpop.f32.mrf.mxu0
        %v5040 = vadd.f32 0.0, %v5039
        %v5041 = vpop.f32.mrf.mxu0
        %5042 = vmatprep.mubr.f32.mxu0 0.0
        %5043 = vmatmul.mubr.f32.gmra.mxu0 %v4941
        %v5044 = vpop.f32.mrf.mxu0
        %v5045 = vadd.f32 0.0, %v5044
        %v5046 = vpop.f32.mrf.mxu0
        %5047 = vdwg.mxu0
        %v5049 = vsel %vm1735, %v4646, 0
        %v5052 = vsel %vm1735, %v4648, 0
        %v5055 = vsel %vm1735, %v4650, 0
        %v5058 = vsel %vm1735, %v4652, 0
        %v5061 = vsel %vm1735, %v4654, 0
        %v5064 = vsel %vm1735, %v4656, 0
        %v5067 = vsel %vm1735, %v4658, 0
        %v5070 = vsel %vm1735, %v4660, 0
        %5072 = vmatprep.subr.mxu0 0.0
        %5073 = vmatpush1.msra.mxu0 0.0
        %5074 = vmatprep.subr.mxu0 0.0
        %5075 = vmatpush1.msra.mxu0 0.0
        %5076 = vmatprep.subr.mxu0 0.0
        %5077 = vmatpush1.msra.mxu0 0.0
        %5078 = vmatprep.subr.mxu0 0.0
        %5079 = vmatpush1.msra.mxu0 0.0
        %5080 = vmatprep.subr.mxu0 0.0
        %5081 = vmatpush1.msra.mxu0 0.0
        %5082 = vmatprep.subr.mxu0 0.0
        %5083 = vmatpush1.msra.mxu0 0.0
        %5084 = vmatprep.subr.mxu0 0.0
        %5085 = vmatpush1.msra.mxu0 0.0
        %5086 = vmatprep.subr.mxu0 0.0
        %5087 = vmatpush1.msra.mxu0 0.0
        %5088 = vmatprep.subr.mxu0 0.0
        %5089 = vmatpush1.msra.mxu0 %v3912
        %5090 = vmatprep.subr.mxu0 0.0
        %5091 = vmatpush1.msra.mxu0 %v3910
        %5092 = vmatprep.subr.mxu0 0.0
        %5093 = vmatpush1.msra.mxu0 %v3908
        %5094 = vmatprep.subr.mxu0 0.0
        %5095 = vmatpush1.msra.mxu0 %v3906
        %5096 = vmatprep.subr.mxu0 0.0
        %5097 = vmatpush1.msra.mxu0 %v3904
        %5098 = vmatprep.subr.mxu0 0.0
        %5099 = vmatpush1.msra.mxu0 %v3902
        %5100 = vmatprep.subr.mxu0 0.0
        %5101 = vmatpush1.msra.mxu0 %v3900
        %5102 = vmatprep.subr.mxu0 0.0
        %5103 = vmatpush1.msra.mxu0 %v3898
        %5104 = vmatprep.subr.mxu0 0.0
        %5105 = vmatpush2.msra.mxu0 0.0
        %5106 = vmatprep.subr.mxu0 0.0
        %5107 = vmatpush2.msra.mxu0 0.0
        %5108 = vmatprep.subr.mxu0 0.0
        %5109 = vmatpush2.msra.mxu0 0.0
        %5110 = vmatprep.subr.mxu0 0.0
        %5111 = vmatpush2.msra.mxu0 0.0
        %5112 = vmatprep.subr.mxu0 0.0
        %5113 = vmatpush2.msra.mxu0 0.0
        %5114 = vmatprep.subr.mxu0 0.0
        %5115 = vmatpush2.msra.mxu0 0.0
        %5116 = vmatprep.subr.mxu0 0.0
        %5117 = vmatpush2.msra.mxu0 0.0
        %5118 = vmatprep.subr.mxu0 0.0
        %5119 = vmatpush2.msra.mxu0 0.0
        %5120 = vmatprep.subr.mxu0 0.0
        %5121 = vmatpush2.msra.mxu0 0.0
        %5122 = vmatprep.subr.mxu0 0.0
        %5123 = vmatpush2.msra.mxu0 0.0
        %5124 = vmatprep.subr.mxu0 0.0
        %5125 = vmatpush2.msra.mxu0 0.0
        %5126 = vmatprep.subr.mxu0 0.0
        %5127 = vmatpush2.msra.mxu0 0.0
        %5128 = vmatprep.subr.mxu0 0.0
        %5129 = vmatpush2.msra.mxu0 0.0
        %5130 = vmatprep.subr.mxu0 0.0
        %5131 = vmatpush2.msra.mxu0 0.0
        %5132 = vmatprep.subr.mxu0 0.0
        %5133 = vmatpush2.msra.mxu0 0.0
        %5134 = vmatprep.subr.mxu0 0.0
        %5135 = vmatpush2.msra.mxu0 0.0
        %5136 = vmatprep.mubr.f32.mxu0 0.0
        %5137 = vmatmul.mubr.f32.gmra.mxu0 %v5049
        %v5138 = vpop.f32.mrf.mxu0
        %v5139 = vadd.f32 0.0, %v5138
        %v5140 = vpop.f32.mrf.mxu0
        %5141 = vmatprep.mubr.f32.mxu0 0.0
        %5142 = vmatmul.mubr.f32.gmra.mxu0 %v5052
        %v5143 = vpop.f32.mrf.mxu0
        %v5144 = vadd.f32 0.0, %v5143
        %v5145 = vpop.f32.mrf.mxu0
        %5146 = vmatprep.mubr.f32.mxu0 0.0
        %5147 = vmatmul.mubr.f32.gmra.mxu0 %v5055
        %v5148 = vpop.f32.mrf.mxu0
        %v5149 = vadd.f32 0.0, %v5148
        %v5150 = vpop.f32.mrf.mxu0
        %5151 = vmatprep.mubr.f32.mxu0 0.0
        %5152 = vmatmul.mubr.f32.gmra.mxu0 %v5058
        %v5153 = vpop.f32.mrf.mxu0
        %v5154 = vadd.f32 0.0, %v5153
        %v5155 = vpop.f32.mrf.mxu0
        %5156 = vmatprep.mubr.f32.mxu0 0.0
        %5157 = vmatmul.mubr.f32.gmra.mxu0 %v5061
        %v5158 = vpop.f32.mrf.mxu0
        %v5159 = vadd.f32 0.0, %v5158
        %v5160 = vpop.f32.mrf.mxu0
        %5161 = vmatprep.mubr.f32.mxu0 0.0
        %5162 = vmatmul.mubr.f32.gmra.mxu0 %v5064
        %v5163 = vpop.f32.mrf.mxu0
        %v5164 = vadd.f32 0.0, %v5163
        %v5165 = vpop.f32.mrf.mxu0
        %5166 = vmatprep.mubr.f32.mxu0 0.0
        %5167 = vmatmul.mubr.f32.gmra.mxu0 %v5067
        %v5168 = vpop.f32.mrf.mxu0
        %v5169 = vadd.f32 0.0, %v5168
        %v5170 = vpop.f32.mrf.mxu0
        %5171 = vmatprep.mubr.f32.mxu0 0.0
        %5172 = vmatmul.mubr.f32.gmra.mxu0 %v5070
        %v5173 = vpop.f32.mrf.mxu0
        %v5174 = vadd.f32 0.0, %v5173
        %v5175 = vpop.f32.mrf.mxu0
        %5176 = vdwg.mxu0
        %v5177 = vsel %vm1735, %v4598, 0.0
        %5178 = vadd.xlane.f32.xlu0 %v5177
        %v5179 = vpop.xlane.xlu0 %5178
        %v5180 = vsel %vm1735, %v4600, 0.0
        %5181 = vadd.xlane.f32.xlu0 %v5180
        %v5182 = vpop.xlane.xlu0 %5181
        %v5183 = vsel %vm1735, %v4602, 0.0
        %5184 = vadd.xlane.f32.xlu0 %v5183
        %v5185 = vpop.xlane.xlu0 %5184
        %v5186 = vsel %vm1735, %v4604, 0.0
        %5187 = vadd.xlane.f32.xlu0 %v5186
        %v5188 = vpop.xlane.xlu0 %5187
        %v5189 = vsel %vm1735, %v4606, 0.0
        %5190 = vadd.xlane.f32.xlu0 %v5189
        %v5191 = vpop.xlane.xlu0 %5190
        %v5192 = vsel %vm1735, %v4608, 0.0
        %5193 = vadd.xlane.f32.xlu0 %v5192
        %v5194 = vpop.xlane.xlu0 %5193
        %v5195 = vsel %vm1735, %v4610, 0.0
        %5196 = vadd.xlane.f32.xlu0 %v5195
        %v5197 = vpop.xlane.xlu0 %5196
        %v5198 = vsel %vm1735, %v4612, 0.0
        %5199 = vadd.xlane.f32.xlu0 %v5198
        %v5200 = vpop.xlane.xlu0 %5199
        %v5201 = vsel %vm1735, %v4614, 0.0
        %5202 = vadd.xlane.f32.xlu0 %v5201
        %v5203 = vpop.xlane.xlu0 %5202
        %v5204 = vsel %vm1735, %v4616, 0.0
        %5205 = vadd.xlane.f32.xlu0 %v5204
        %v5206 = vpop.xlane.xlu0 %5205
        %v5207 = vsel %vm1735, %v4618, 0.0
        %5208 = vadd.xlane.f32.xlu0 %v5207
        %v5209 = vpop.xlane.xlu0 %5208
        %v5210 = vsel %vm1735, %v4620, 0.0
        %5211 = vadd.xlane.f32.xlu0 %v5210
        %v5212 = vpop.xlane.xlu0 %5211
        %v5213 = vsel %vm1735, %v4622, 0.0
        %5214 = vadd.xlane.f32.xlu0 %v5213
        %v5215 = vpop.xlane.xlu0 %5214
        %v5216 = vsel %vm1735, %v4624, 0.0
        %5217 = vadd.xlane.f32.xlu0 %v5216
        %v5218 = vpop.xlane.xlu0 %5217
        %v5219 = vsel %vm1735, %v4626, 0.0
        %5220 = vadd.xlane.f32.xlu0 %v5219
        %v5221 = vpop.xlane.xlu0 %5220
        %v5222 = vsel %vm1735, %v4628, 0.0
        %5223 = vadd.xlane.f32.xlu0 %v5222
        %v5224 = vpop.xlane.xlu0 %5223
        %v5225 = vsel %vm1735, %v4630, 0.0
        %5226 = vadd.xlane.f32.xlu0 %v5225
        %v5227 = vpop.xlane.xlu0 %5226
        %v5228 = vsel %vm1735, %v4632, 0.0
        %5229 = vadd.xlane.f32.xlu0 %v5228
        %v5230 = vpop.xlane.xlu0 %5229
        %v5231 = vsel %vm1735, %v4634, 0.0
        %5232 = vadd.xlane.f32.xlu0 %v5231
        %v5233 = vpop.xlane.xlu0 %5232
        %v5234 = vsel %vm1735, %v4636, 0.0
        %5235 = vadd.xlane.f32.xlu0 %v5234
        %v5236 = vpop.xlane.xlu0 %5235
        %v5237 = vsel %vm1735, %v4638, 0.0
        %5238 = vadd.xlane.f32.xlu0 %v5237
        %v5239 = vpop.xlane.xlu0 %5238
        %v5240 = vsel %vm1735, %v4640, 0.0
        %5241 = vadd.xlane.f32.xlu0 %v5240
        %v5242 = vpop.xlane.xlu0 %5241
        %v5243 = vsel %vm1735, %v4642, 0.0
        %5244 = vadd.xlane.f32.xlu0 %v5243
        %v5245 = vpop.xlane.xlu0 %5244
        %v5246 = vsel %vm1735, %v4644, 0.0
        %5247 = vadd.xlane.f32.xlu0 %v5246
        %v5248 = vpop.xlane.xlu0 %5247
        %v5249 = vsel %vm1735, %v4646, 0.0
        %5250 = vadd.xlane.f32.xlu0 %v5249
        %v5251 = vpop.xlane.xlu0 %5250
        %v5252 = vsel %vm1735, %v4648, 0.0
        %5253 = vadd.xlane.f32.xlu0 %v5252
        %v5254 = vpop.xlane.xlu0 %5253
        %v5255 = vsel %vm1735, %v4650, 0.0
        %5256 = vadd.xlane.f32.xlu0 %v5255
        %v5257 = vpop.xlane.xlu0 %5256
        %v5258 = vsel %vm1735, %v4652, 0.0
        %5259 = vadd.xlane.f32.xlu0 %v5258
        %v5260 = vpop.xlane.xlu0 %5259
        %v5261 = vsel %vm1735, %v4654, 0.0
        %5262 = vadd.xlane.f32.xlu0 %v5261
        %v5263 = vpop.xlane.xlu0 %5262
        %v5264 = vsel %vm1735, %v4656, 0.0
        %5265 = vadd.xlane.f32.xlu0 %v5264
        %v5266 = vpop.xlane.xlu0 %5265
        %v5267 = vsel %vm1735, %v4658, 0.0
        %5268 = vadd.xlane.f32.xlu0 %v5267
        %v5269 = vpop.xlane.xlu0 %5268
        %v5270 = vsel %vm1735, %v4660, 0.0
        %5271 = vadd.xlane.f32.xlu0 %v5270
        %v5272 = vpop.xlane.xlu0 %5271
        %v5273 = vrcp.pop %v5179
        %v5274 = vrcp.pop %v5182
        %v5275 = vrcp.pop %v5185
        %v5276 = vrcp.pop %v5188
        %v5277 = vrcp.pop %v5191
        %v5278 = vrcp.pop %v5194
        %v5279 = vrcp.pop %v5197
        %v5280 = vrcp.pop %v5200
        %v5281 = vrcp.pop %v5203
        %v5282 = vrcp.pop %v5206
        %v5283 = vrcp.pop %v5209
        %v5284 = vrcp.pop %v5212
        %v5285 = vrcp.pop %v5215
        %v5286 = vrcp.pop %v5218
        %v5287 = vrcp.pop %v5221
        %v5288 = vrcp.pop %v5224
        %v5289 = vrcp.pop %v5227
        %v5290 = vrcp.pop %v5230
        %v5291 = vrcp.pop %v5233
        %v5292 = vrcp.pop %v5236
        %v5293 = vrcp.pop %v5239
        %v5294 = vrcp.pop %v5242
        %v5295 = vrcp.pop %v5245
        %v5296 = vrcp.pop %v5248
        %v5297 = vrcp.pop %v5251
        %v5298 = vrcp.pop %v5254
        %v5299 = vrcp.pop %v5257
        %v5300 = vrcp.pop %v5260
        %v5301 = vrcp.pop %v5263
        %v5302 = vrcp.pop %v5266
        %v5303 = vrcp.pop %v5269
        %v5304 = vrcp.pop %v5272
        %v5305 = vmul.f32 %v4752, %v5273
        %v5306 = vmul.f32 %v4757, %v5274
        %v5307 = vmul.f32 %v4762, %v5275
        %v5308 = vmul.f32 %v4767, %v5276
        %v5309 = vmul.f32 %v4772, %v5277
        %v5310 = vmul.f32 %v4777, %v5278
        %v5311 = vmul.f32 %v4782, %v5279
        %v5312 = vmul.f32 %v4787, %v5280
        %v5313 = vmul.f32 %v4881, %v5281
        %v5314 = vmul.f32 %v4886, %v5282
        %v5315 = vmul.f32 %v4891, %v5283
        %v5316 = vmul.f32 %v4896, %v5284
        %v5317 = vmul.f32 %v4901, %v5285
        %v5318 = vmul.f32 %v4906, %v5286
        %v5319 = vmul.f32 %v4911, %v5287
        %v5320 = vmul.f32 %v4916, %v5288
        %v5321 = vmul.f32 %v5010, %v5289
        %v5322 = vmul.f32 %v5015, %v5290
        %v5323 = vmul.f32 %v5020, %v5291
        %v5324 = vmul.f32 %v5025, %v5292
        %v5325 = vmul.f32 %v5030, %v5293
        %v5326 = vmul.f32 %v5035, %v5294
        %v5327 = vmul.f32 %v5040, %v5295
        %v5328 = vmul.f32 %v5045, %v5296
        %v5329 = vmul.f32 %v5139, %v5297
        %v5330 = vmul.f32 %v5144, %v5298
        %v5331 = vmul.f32 %v5149, %v5299
        %v5332 = vmul.f32 %v5154, %v5300
        %v5333 = vmul.f32 %v5159, %v5301
        %v5334 = vmul.f32 %v5164, %v5302
        %v5335 = vmul.f32 %v5169, %v5303
        %v5336 = vmul.f32 %v5174, %v5304
        %s5337 = scalar_lea.vmem [#allocation4], 32
        %v5338 = vld [vmem:[%s5337] sm:$0xff]
        %v5339 = vld [vmem:[%s5337 + $0x8] sm:$0xff]
        %v5340 = vld [vmem:[%s5337 + $0x10] sm:$0xff]
        %v5341 = vld [vmem:[%s5337 + $0x18] sm:$0xff]
        %v5343 = vsel %vm1186, %v5305, 0
        %v5346 = vsel %vm1186, %v5306, 0
        %v5349 = vsel %vm1186, %v5307, 0
        %v5352 = vsel %vm1186, %v5308, 0
        %v5355 = vsel %vm1186, %v5309, 0
        %v5358 = vsel %vm1186, %v5310, 0
        %v5361 = vsel %vm1186, %v5311, 0
        %v5364 = vsel %vm1186, %v5312, 0
        %5366 = vmatprep.subr.mxu0 0.0
        %5367 = vmatpush1.msra.mxu0 0.0
        %5368 = vmatprep.subr.mxu0 0.0
        %5369 = vmatpush1.msra.mxu0 0.0
        %5370 = vmatprep.subr.mxu0 0.0
        %5371 = vmatpush1.msra.mxu0 0.0
        %5372 = vmatprep.subr.mxu0 0.0
        %5373 = vmatpush1.msra.mxu0 0.0
        %5374 = vmatprep.subr.mxu0 0.0
        %5375 = vmatpush1.msra.mxu0 0.0
        %5376 = vmatprep.subr.mxu0 0.0
        %5377 = vmatpush1.msra.mxu0 0.0
        %5378 = vmatprep.subr.mxu0 0.0
        %5379 = vmatpush1.msra.mxu0 0.0
        %5380 = vmatprep.subr.mxu0 0.0
        %5381 = vmatpush1.msra.mxu0 0.0
        %5382 = vmatprep.subr.mxu0 0.0
        %5383 = vmatpush1.msra.mxu0 0.0
        %5384 = vmatprep.subr.mxu0 0.0
        %5385 = vmatpush1.msra.mxu0 0.0
        %5386 = vmatprep.subr.mxu0 0.0
        %5387 = vmatpush1.msra.mxu0 0.0
        %5388 = vmatprep.subr.mxu0 0.0
        %5389 = vmatpush1.msra.mxu0 0.0
        %5390 = vmatprep.subr.mxu0 0.0
        %5391 = vmatpush1.msra.mxu0 0.0
        %5392 = vmatprep.subr.mxu0 0.0
        %5393 = vmatpush1.msra.mxu0 0.0
        %5394 = vmatprep.subr.mxu0 0.0
        %5395 = vmatpush1.msra.mxu0 0.0
        %5396 = vmatprep.subr.mxu0 0.0
        %5397 = vmatpush1.msra.mxu0 %v5338
        %5398 = vmatprep.subr.mxu0 0.0
        %5399 = vmatpush2.msra.mxu0 0.0
        %5400 = vmatprep.subr.mxu0 0.0
        %5401 = vmatpush2.msra.mxu0 0.0
        %5402 = vmatprep.subr.mxu0 0.0
        %5403 = vmatpush2.msra.mxu0 0.0
        %5404 = vmatprep.subr.mxu0 0.0
        %5405 = vmatpush2.msra.mxu0 0.0
        %5406 = vmatprep.subr.mxu0 0.0
        %5407 = vmatpush2.msra.mxu0 0.0
        %5408 = vmatprep.subr.mxu0 0.0
        %5409 = vmatpush2.msra.mxu0 0.0
        %5410 = vmatprep.subr.mxu0 0.0
        %5411 = vmatpush2.msra.mxu0 0.0
        %5412 = vmatprep.subr.mxu0 0.0
        %5413 = vmatpush2.msra.mxu0 0.0
        %5414 = vmatprep.subr.mxu0 0.0
        %5415 = vmatpush2.msra.mxu0 0.0
        %5416 = vmatprep.subr.mxu0 0.0
        %5417 = vmatpush2.msra.mxu0 0.0
        %5418 = vmatprep.subr.mxu0 0.0
        %5419 = vmatpush2.msra.mxu0 0.0
        %5420 = vmatprep.subr.mxu0 0.0
        %5421 = vmatpush2.msra.mxu0 0.0
        %5422 = vmatprep.subr.mxu0 0.0
        %5423 = vmatpush2.msra.mxu0 0.0
        %5424 = vmatprep.subr.mxu0 0.0
        %5425 = vmatpush2.msra.mxu0 0.0
        %5426 = vmatprep.subr.mxu0 0.0
        %5427 = vmatpush2.msra.mxu0 0.0
        %5428 = vmatprep.subr.mxu0 0.0
        %5429 = vmatpush2.msra.mxu0 0.0
        %5430 = vmatprep.mubr.f32.mxu0 0.0
        %5431 = vmatmul.mubr.f32.gmra.mxu0 %v5343
        %v5432 = vpop.f32.mrf.mxu0
        %v5433 = vadd.f32 0.0, %v5432
        %v5434 = vpop.f32.mrf.mxu0
        %5435 = vmatprep.mubr.f32.mxu0 0.0
        %5436 = vmatmul.mubr.f32.gmra.mxu0 %v5346
        %v5437 = vpop.f32.mrf.mxu0
        %v5438 = vadd.f32 0.0, %v5437
        %v5439 = vpop.f32.mrf.mxu0
        %5440 = vmatprep.mubr.f32.mxu0 0.0
        %5441 = vmatmul.mubr.f32.gmra.mxu0 %v5349
        %v5442 = vpop.f32.mrf.mxu0
        %v5443 = vadd.f32 0.0, %v5442
        %v5444 = vpop.f32.mrf.mxu0
        %5445 = vmatprep.mubr.f32.mxu0 0.0
        %5446 = vmatmul.mubr.f32.gmra.mxu0 %v5352
        %v5447 = vpop.f32.mrf.mxu0
        %v5448 = vadd.f32 0.0, %v5447
        %v5449 = vpop.f32.mrf.mxu0
        %5450 = vmatprep.mubr.f32.mxu0 0.0
        %5451 = vmatmul.mubr.f32.gmra.mxu0 %v5355
        %v5452 = vpop.f32.mrf.mxu0
        %v5453 = vadd.f32 0.0, %v5452
        %v5454 = vpop.f32.mrf.mxu0
        %5455 = vmatprep.mubr.f32.mxu0 0.0
        %5456 = vmatmul.mubr.f32.gmra.mxu0 %v5358
        %v5457 = vpop.f32.mrf.mxu0
        %v5458 = vadd.f32 0.0, %v5457
        %v5459 = vpop.f32.mrf.mxu0
        %5460 = vmatprep.mubr.f32.mxu0 0.0
        %5461 = vmatmul.mubr.f32.gmra.mxu0 %v5361
        %v5462 = vpop.f32.mrf.mxu0
        %v5463 = vadd.f32 0.0, %v5462
        %v5464 = vpop.f32.mrf.mxu0
        %5465 = vmatprep.mubr.f32.mxu0 0.0
        %5466 = vmatmul.mubr.f32.gmra.mxu0 %v5364
        %v5467 = vpop.f32.mrf.mxu0
        %v5468 = vadd.f32 0.0, %v5467
        %v5469 = vpop.f32.mrf.mxu0
        %5470 = vdwg.mxu0
        %v5472 = vsel %vm1186, %v5313, 0
        %v5475 = vsel %vm1186, %v5314, 0
        %v5478 = vsel %vm1186, %v5315, 0
        %v5481 = vsel %vm1186, %v5316, 0
        %v5484 = vsel %vm1186, %v5317, 0
        %v5487 = vsel %vm1186, %v5318, 0
        %v5490 = vsel %vm1186, %v5319, 0
        %v5493 = vsel %vm1186, %v5320, 0
        %5495 = vmatprep.subr.mxu0 0.0
        %5496 = vmatpush1.msra.mxu0 0.0
        %5497 = vmatprep.subr.mxu0 0.0
        %5498 = vmatpush1.msra.mxu0 0.0
        %5499 = vmatprep.subr.mxu0 0.0
        %5500 = vmatpush1.msra.mxu0 0.0
        %5501 = vmatprep.subr.mxu0 0.0
        %5502 = vmatpush1.msra.mxu0 0.0
        %5503 = vmatprep.subr.mxu0 0.0
        %5504 = vmatpush1.msra.mxu0 0.0
        %5505 = vmatprep.subr.mxu0 0.0
        %5506 = vmatpush1.msra.mxu0 0.0
        %5507 = vmatprep.subr.mxu0 0.0
        %5508 = vmatpush1.msra.mxu0 0.0
        %5509 = vmatprep.subr.mxu0 0.0
        %5510 = vmatpush1.msra.mxu0 0.0
        %5511 = vmatprep.subr.mxu0 0.0
        %5512 = vmatpush1.msra.mxu0 0.0
        %5513 = vmatprep.subr.mxu0 0.0
        %5514 = vmatpush1.msra.mxu0 0.0
        %5515 = vmatprep.subr.mxu0 0.0
        %5516 = vmatpush1.msra.mxu0 0.0
        %5517 = vmatprep.subr.mxu0 0.0
        %5518 = vmatpush1.msra.mxu0 0.0
        %5519 = vmatprep.subr.mxu0 0.0
        %5520 = vmatpush1.msra.mxu0 0.0
        %5521 = vmatprep.subr.mxu0 0.0
        %5522 = vmatpush1.msra.mxu0 0.0
        %5523 = vmatprep.subr.mxu0 0.0
        %5524 = vmatpush1.msra.mxu0 0.0
        %5525 = vmatprep.subr.mxu0 0.0
        %5526 = vmatpush1.msra.mxu0 %v5339
        %5527 = vmatprep.subr.mxu0 0.0
        %5528 = vmatpush2.msra.mxu0 0.0
        %5529 = vmatprep.subr.mxu0 0.0
        %5530 = vmatpush2.msra.mxu0 0.0
        %5531 = vmatprep.subr.mxu0 0.0
        %5532 = vmatpush2.msra.mxu0 0.0
        %5533 = vmatprep.subr.mxu0 0.0
        %5534 = vmatpush2.msra.mxu0 0.0
        %5535 = vmatprep.subr.mxu0 0.0
        %5536 = vmatpush2.msra.mxu0 0.0
        %5537 = vmatprep.subr.mxu0 0.0
        %5538 = vmatpush2.msra.mxu0 0.0
        %5539 = vmatprep.subr.mxu0 0.0
        %5540 = vmatpush2.msra.mxu0 0.0
        %5541 = vmatprep.subr.mxu0 0.0
        %5542 = vmatpush2.msra.mxu0 0.0
        %5543 = vmatprep.subr.mxu0 0.0
        %5544 = vmatpush2.msra.mxu0 0.0
        %5545 = vmatprep.subr.mxu0 0.0
        %5546 = vmatpush2.msra.mxu0 0.0
        %5547 = vmatprep.subr.mxu0 0.0
        %5548 = vmatpush2.msra.mxu0 0.0
        %5549 = vmatprep.subr.mxu0 0.0
        %5550 = vmatpush2.msra.mxu0 0.0
        %5551 = vmatprep.subr.mxu0 0.0
        %5552 = vmatpush2.msra.mxu0 0.0
        %5553 = vmatprep.subr.mxu0 0.0
        %5554 = vmatpush2.msra.mxu0 0.0
        %5555 = vmatprep.subr.mxu0 0.0
        %5556 = vmatpush2.msra.mxu0 0.0
        %5557 = vmatprep.subr.mxu0 0.0
        %5558 = vmatpush2.msra.mxu0 0.0
        %5559 = vmatprep.mubr.f32.mxu0 0.0
        %5560 = vmatmul.mubr.f32.gmra.mxu0 %v5472
        %v5561 = vpop.f32.mrf.mxu0
        %v5562 = vadd.f32 0.0, %v5561
        %v5563 = vpop.f32.mrf.mxu0
        %5564 = vmatprep.mubr.f32.mxu0 0.0
        %5565 = vmatmul.mubr.f32.gmra.mxu0 %v5475
        %v5566 = vpop.f32.mrf.mxu0
        %v5567 = vadd.f32 0.0, %v5566
        %v5568 = vpop.f32.mrf.mxu0
        %5569 = vmatprep.mubr.f32.mxu0 0.0
        %5570 = vmatmul.mubr.f32.gmra.mxu0 %v5478
        %v5571 = vpop.f32.mrf.mxu0
        %v5572 = vadd.f32 0.0, %v5571
        %v5573 = vpop.f32.mrf.mxu0
        %5574 = vmatprep.mubr.f32.mxu0 0.0
        %5575 = vmatmul.mubr.f32.gmra.mxu0 %v5481
        %v5576 = vpop.f32.mrf.mxu0
        %v5577 = vadd.f32 0.0, %v5576
        %v5578 = vpop.f32.mrf.mxu0
        %5579 = vmatprep.mubr.f32.mxu0 0.0
        %5580 = vmatmul.mubr.f32.gmra.mxu0 %v5484
        %v5581 = vpop.f32.mrf.mxu0
        %v5582 = vadd.f32 0.0, %v5581
        %v5583 = vpop.f32.mrf.mxu0
        %5584 = vmatprep.mubr.f32.mxu0 0.0
        %5585 = vmatmul.mubr.f32.gmra.mxu0 %v5487
        %v5586 = vpop.f32.mrf.mxu0
        %v5587 = vadd.f32 0.0, %v5586
        %v5588 = vpop.f32.mrf.mxu0
        %5589 = vmatprep.mubr.f32.mxu0 0.0
        %5590 = vmatmul.mubr.f32.gmra.mxu0 %v5490
        %v5591 = vpop.f32.mrf.mxu0
        %v5592 = vadd.f32 0.0, %v5591
        %v5593 = vpop.f32.mrf.mxu0
        %5594 = vmatprep.mubr.f32.mxu0 0.0
        %5595 = vmatmul.mubr.f32.gmra.mxu0 %v5493
        %v5596 = vpop.f32.mrf.mxu0
        %v5597 = vadd.f32 0.0, %v5596
        %v5598 = vpop.f32.mrf.mxu0
        %5599 = vdwg.mxu0
        %v5601 = vsel %vm1186, %v5321, 0
        %v5604 = vsel %vm1186, %v5322, 0
        %v5607 = vsel %vm1186, %v5323, 0
        %v5610 = vsel %vm1186, %v5324, 0
        %v5613 = vsel %vm1186, %v5325, 0
        %v5616 = vsel %vm1186, %v5326, 0
        %v5619 = vsel %vm1186, %v5327, 0
        %v5622 = vsel %vm1186, %v5328, 0
        %5624 = vmatprep.subr.mxu0 0.0
        %5625 = vmatpush1.msra.mxu0 0.0
        %5626 = vmatprep.subr.mxu0 0.0
        %5627 = vmatpush1.msra.mxu0 0.0
        %5628 = vmatprep.subr.mxu0 0.0
        %5629 = vmatpush1.msra.mxu0 0.0
        %5630 = vmatprep.subr.mxu0 0.0
        %5631 = vmatpush1.msra.mxu0 0.0
        %5632 = vmatprep.subr.mxu0 0.0
        %5633 = vmatpush1.msra.mxu0 0.0
        %5634 = vmatprep.subr.mxu0 0.0
        %5635 = vmatpush1.msra.mxu0 0.0
        %5636 = vmatprep.subr.mxu0 0.0
        %5637 = vmatpush1.msra.mxu0 0.0
        %5638 = vmatprep.subr.mxu0 0.0
        %5639 = vmatpush1.msra.mxu0 0.0
        %5640 = vmatprep.subr.mxu0 0.0
        %5641 = vmatpush1.msra.mxu0 0.0
        %5642 = vmatprep.subr.mxu0 0.0
        %5643 = vmatpush1.msra.mxu0 0.0
        %5644 = vmatprep.subr.mxu0 0.0
        %5645 = vmatpush1.msra.mxu0 0.0
        %5646 = vmatprep.subr.mxu0 0.0
        %5647 = vmatpush1.msra.mxu0 0.0
        %5648 = vmatprep.subr.mxu0 0.0
        %5649 = vmatpush1.msra.mxu0 0.0
        %5650 = vmatprep.subr.mxu0 0.0
        %5651 = vmatpush1.msra.mxu0 0.0
        %5652 = vmatprep.subr.mxu0 0.0
        %5653 = vmatpush1.msra.mxu0 0.0
        %5654 = vmatprep.subr.mxu0 0.0
        %5655 = vmatpush1.msra.mxu0 %v5340
        %5656 = vmatprep.subr.mxu0 0.0
        %5657 = vmatpush2.msra.mxu0 0.0
        %5658 = vmatprep.subr.mxu0 0.0
        %5659 = vmatpush2.msra.mxu0 0.0
        %5660 = vmatprep.subr.mxu0 0.0
        %5661 = vmatpush2.msra.mxu0 0.0
        %5662 = vmatprep.subr.mxu0 0.0
        %5663 = vmatpush2.msra.mxu0 0.0
        %5664 = vmatprep.subr.mxu0 0.0
        %5665 = vmatpush2.msra.mxu0 0.0
        %5666 = vmatprep.subr.mxu0 0.0
        %5667 = vmatpush2.msra.mxu0 0.0
        %5668 = vmatprep.subr.mxu0 0.0
        %5669 = vmatpush2.msra.mxu0 0.0
        %5670 = vmatprep.subr.mxu0 0.0
        %5671 = vmatpush2.msra.mxu0 0.0
        %5672 = vmatprep.subr.mxu0 0.0
        %5673 = vmatpush2.msra.mxu0 0.0
        %5674 = vmatprep.subr.mxu0 0.0
        %5675 = vmatpush2.msra.mxu0 0.0
        %5676 = vmatprep.subr.mxu0 0.0
        %5677 = vmatpush2.msra.mxu0 0.0
        %5678 = vmatprep.subr.mxu0 0.0
        %5679 = vmatpush2.msra.mxu0 0.0
        %5680 = vmatprep.subr.mxu0 0.0
        %5681 = vmatpush2.msra.mxu0 0.0
        %5682 = vmatprep.subr.mxu0 0.0
        %5683 = vmatpush2.msra.mxu0 0.0
        %5684 = vmatprep.subr.mxu0 0.0
        %5685 = vmatpush2.msra.mxu0 0.0
        %5686 = vmatprep.subr.mxu0 0.0
        %5687 = vmatpush2.msra.mxu0 0.0
        %5688 = vmatprep.mubr.f32.mxu0 0.0
        %5689 = vmatmul.mubr.f32.gmra.mxu0 %v5601
        %v5690 = vpop.f32.mrf.mxu0
        %v5691 = vadd.f32 0.0, %v5690
        %v5692 = vpop.f32.mrf.mxu0
        %5693 = vmatprep.mubr.f32.mxu0 0.0
        %5694 = vmatmul.mubr.f32.gmra.mxu0 %v5604
        %v5695 = vpop.f32.mrf.mxu0
        %v5696 = vadd.f32 0.0, %v5695
        %v5697 = vpop.f32.mrf.mxu0
        %5698 = vmatprep.mubr.f32.mxu0 0.0
        %5699 = vmatmul.mubr.f32.gmra.mxu0 %v5607
        %v5700 = vpop.f32.mrf.mxu0
        %v5701 = vadd.f32 0.0, %v5700
        %v5702 = vpop.f32.mrf.mxu0
        %5703 = vmatprep.mubr.f32.mxu0 0.0
        %5704 = vmatmul.mubr.f32.gmra.mxu0 %v5610
        %v5705 = vpop.f32.mrf.mxu0
        %v5706 = vadd.f32 0.0, %v5705
        %v5707 = vpop.f32.mrf.mxu0
        %5708 = vmatprep.mubr.f32.mxu0 0.0
        %5709 = vmatmul.mubr.f32.gmra.mxu0 %v5613
        %v5710 = vpop.f32.mrf.mxu0
        %v5711 = vadd.f32 0.0, %v5710
        %v5712 = vpop.f32.mrf.mxu0
        %5713 = vmatprep.mubr.f32.mxu0 0.0
        %5714 = vmatmul.mubr.f32.gmra.mxu0 %v5616
        %v5715 = vpop.f32.mrf.mxu0
        %v5716 = vadd.f32 0.0, %v5715
        %v5717 = vpop.f32.mrf.mxu0
        %5718 = vmatprep.mubr.f32.mxu0 0.0
        %5719 = vmatmul.mubr.f32.gmra.mxu0 %v5619
        %v5720 = vpop.f32.mrf.mxu0
        %v5721 = vadd.f32 0.0, %v5720
        %v5722 = vpop.f32.mrf.mxu0
        %5723 = vmatprep.mubr.f32.mxu0 0.0
        %5724 = vmatmul.mubr.f32.gmra.mxu0 %v5622
        %v5725 = vpop.f32.mrf.mxu0
        %v5726 = vadd.f32 0.0, %v5725
        %v5727 = vpop.f32.mrf.mxu0
        %5728 = vdwg.mxu0
        %v5730 = vsel %vm1186, %v5329, 0
        %v5733 = vsel %vm1186, %v5330, 0
        %v5736 = vsel %vm1186, %v5331, 0
        %v5739 = vsel %vm1186, %v5332, 0
        %v5742 = vsel %vm1186, %v5333, 0
        %v5745 = vsel %vm1186, %v5334, 0
        %v5748 = vsel %vm1186, %v5335, 0
        %v5751 = vsel %vm1186, %v5336, 0
        %5753 = vmatprep.subr.mxu0 0.0
        %5754 = vmatpush1.msra.mxu0 0.0
        %5755 = vmatprep.subr.mxu0 0.0
        %5756 = vmatpush1.msra.mxu0 0.0
        %5757 = vmatprep.subr.mxu0 0.0
        %5758 = vmatpush1.msra.mxu0 0.0
        %5759 = vmatprep.subr.mxu0 0.0
        %5760 = vmatpush1.msra.mxu0 0.0
        %5761 = vmatprep.subr.mxu0 0.0
        %5762 = vmatpush1.msra.mxu0 0.0
        %5763 = vmatprep.subr.mxu0 0.0
        %5764 = vmatpush1.msra.mxu0 0.0
        %5765 = vmatprep.subr.mxu0 0.0
        %5766 = vmatpush1.msra.mxu0 0.0
        %5767 = vmatprep.subr.mxu0 0.0
        %5768 = vmatpush1.msra.mxu0 0.0
        %5769 = vmatprep.subr.mxu0 0.0
        %5770 = vmatpush1.msra.mxu0 0.0
        %5771 = vmatprep.subr.mxu0 0.0
        %5772 = vmatpush1.msra.mxu0 0.0
        %5773 = vmatprep.subr.mxu0 0.0
        %5774 = vmatpush1.msra.mxu0 0.0
        %5775 = vmatprep.subr.mxu0 0.0
        %5776 = vmatpush1.msra.mxu0 0.0
        %5777 = vmatprep.subr.mxu0 0.0
        %5778 = vmatpush1.msra.mxu0 0.0
        %5779 = vmatprep.subr.mxu0 0.0
        %5780 = vmatpush1.msra.mxu0 0.0
        %5781 = vmatprep.subr.mxu0 0.0
        %5782 = vmatpush1.msra.mxu0 0.0
        %5783 = vmatprep.subr.mxu0 0.0
        %5784 = vmatpush1.msra.mxu0 %v5341
        %5785 = vmatprep.subr.mxu0 0.0
        %5786 = vmatpush2.msra.mxu0 0.0
        %5787 = vmatprep.subr.mxu0 0.0
        %5788 = vmatpush2.msra.mxu0 0.0
        %5789 = vmatprep.subr.mxu0 0.0
        %5790 = vmatpush2.msra.mxu0 0.0
        %5791 = vmatprep.subr.mxu0 0.0
        %5792 = vmatpush2.msra.mxu0 0.0
        %5793 = vmatprep.subr.mxu0 0.0
        %5794 = vmatpush2.msra.mxu0 0.0
        %5795 = vmatprep.subr.mxu0 0.0
        %5796 = vmatpush2.msra.mxu0 0.0
        %5797 = vmatprep.subr.mxu0 0.0
        %5798 = vmatpush2.msra.mxu0 0.0
        %5799 = vmatprep.subr.mxu0 0.0
        %5800 = vmatpush2.msra.mxu0 0.0
        %5801 = vmatprep.subr.mxu0 0.0
        %5802 = vmatpush2.msra.mxu0 0.0
        %5803 = vmatprep.subr.mxu0 0.0
        %5804 = vmatpush2.msra.mxu0 0.0
        %5805 = vmatprep.subr.mxu0 0.0
        %5806 = vmatpush2.msra.mxu0 0.0
        %5807 = vmatprep.subr.mxu0 0.0
        %5808 = vmatpush2.msra.mxu0 0.0
        %5809 = vmatprep.subr.mxu0 0.0
        %5810 = vmatpush2.msra.mxu0 0.0
        %5811 = vmatprep.subr.mxu0 0.0
        %5812 = vmatpush2.msra.mxu0 0.0
        %5813 = vmatprep.subr.mxu0 0.0
        %5814 = vmatpush2.msra.mxu0 0.0
        %5815 = vmatprep.subr.mxu0 0.0
        %5816 = vmatpush2.msra.mxu0 0.0
        %5817 = vmatprep.mubr.f32.mxu0 0.0
        %5818 = vmatmul.mubr.f32.gmra.mxu0 %v5730
        %v5819 = vpop.f32.mrf.mxu0
        %v5820 = vadd.f32 0.0, %v5819
        %v5821 = vpop.f32.mrf.mxu0
        %5822 = vmatprep.mubr.f32.mxu0 0.0
        %5823 = vmatmul.mubr.f32.gmra.mxu0 %v5733
        %v5824 = vpop.f32.mrf.mxu0
        %v5825 = vadd.f32 0.0, %v5824
        %v5826 = vpop.f32.mrf.mxu0
        %5827 = vmatprep.mubr.f32.mxu0 0.0
        %5828 = vmatmul.mubr.f32.gmra.mxu0 %v5736
        %v5829 = vpop.f32.mrf.mxu0
        %v5830 = vadd.f32 0.0, %v5829
        %v5831 = vpop.f32.mrf.mxu0
        %5832 = vmatprep.mubr.f32.mxu0 0.0
        %5833 = vmatmul.mubr.f32.gmra.mxu0 %v5739
        %v5834 = vpop.f32.mrf.mxu0
        %v5835 = vadd.f32 0.0, %v5834
        %v5836 = vpop.f32.mrf.mxu0
        %5837 = vmatprep.mubr.f32.mxu0 0.0
        %5838 = vmatmul.mubr.f32.gmra.mxu0 %v5742
        %v5839 = vpop.f32.mrf.mxu0
        %v5840 = vadd.f32 0.0, %v5839
        %v5841 = vpop.f32.mrf.mxu0
        %5842 = vmatprep.mubr.f32.mxu0 0.0
        %5843 = vmatmul.mubr.f32.gmra.mxu0 %v5745
        %v5844 = vpop.f32.mrf.mxu0
        %v5845 = vadd.f32 0.0, %v5844
        %v5846 = vpop.f32.mrf.mxu0
        %5847 = vmatprep.mubr.f32.mxu0 0.0
        %5848 = vmatmul.mubr.f32.gmra.mxu0 %v5748
        %v5849 = vpop.f32.mrf.mxu0
        %v5850 = vadd.f32 0.0, %v5849
        %v5851 = vpop.f32.mrf.mxu0
        %5852 = vmatprep.mubr.f32.mxu0 0.0
        %5853 = vmatmul.mubr.f32.gmra.mxu0 %v5751
        %v5854 = vpop.f32.mrf.mxu0
        %v5855 = vadd.f32 0.0, %v5854
        %v5856 = vpop.f32.mrf.mxu0
        %5857 = vdwg.mxu0
        %v5858 = vsel %vm477, %v5433, 0.0
        %v5859 = vsel %vm477, %v5562, 0.0
        %v5860 = vadd.f32 %v5858, %v5859
        %v5861 = vsel %vm477, %v5691, 0.0
        %v5862 = vadd.f32 %v5860, %v5861
        %v5863 = vsel %vm477, %v5820, 0.0
        %v5864 = vadd.f32 %v5862, %v5863
        %v5865 = vsel %vm477, %v5438, 0.0
        %v5866 = vsel %vm477, %v5567, 0.0
        %v5867 = vadd.f32 %v5865, %v5866
        %v5868 = vsel %vm477, %v5696, 0.0
        %v5869 = vadd.f32 %v5867, %v5868
        %v5870 = vsel %vm477, %v5825, 0.0
        %v5871 = vadd.f32 %v5869, %v5870
        %v5872 = vsel %vm477, %v5443, 0.0
        %v5873 = vsel %vm477, %v5572, 0.0
        %v5874 = vadd.f32 %v5872, %v5873
        %v5875 = vsel %vm477, %v5701, 0.0
        %v5876 = vadd.f32 %v5874, %v5875
        %v5877 = vsel %vm477, %v5830, 0.0
        %v5878 = vadd.f32 %v5876, %v5877
        %v5879 = vsel %vm477, %v5448, 0.0
        %v5880 = vsel %vm477, %v5577, 0.0
        %v5881 = vadd.f32 %v5879, %v5880
        %v5882 = vsel %vm477, %v5706, 0.0
        %v5883 = vadd.f32 %v5881, %v5882
        %v5884 = vsel %vm477, %v5835, 0.0
        %v5885 = vadd.f32 %v5883, %v5884
        %v5886 = vsel %vm477, %v5453, 0.0
        %v5887 = vsel %vm477, %v5582, 0.0
        %v5888 = vadd.f32 %v5886, %v5887
        %v5889 = vsel %vm477, %v5711, 0.0
        %v5890 = vadd.f32 %v5888, %v5889
        %v5891 = vsel %vm477, %v5840, 0.0
        %v5892 = vadd.f32 %v5890, %v5891
        %v5893 = vsel %vm477, %v5458, 0.0
        %v5894 = vsel %vm477, %v5587, 0.0
        %v5895 = vadd.f32 %v5893, %v5894
        %v5896 = vsel %vm477, %v5716, 0.0
        %v5897 = vadd.f32 %v5895, %v5896
        %v5898 = vsel %vm477, %v5845, 0.0
        %v5899 = vadd.f32 %v5897, %v5898
        %v5900 = vsel %vm477, %v5463, 0.0
        %v5901 = vsel %vm477, %v5592, 0.0
        %v5902 = vadd.f32 %v5900, %v5901
        %v5903 = vsel %vm477, %v5721, 0.0
        %v5904 = vadd.f32 %v5902, %v5903
        %v5905 = vsel %vm477, %v5850, 0.0
        %v5906 = vadd.f32 %v5904, %v5905
        %v5907 = vsel %vm477, %v5468, 0.0
        %v5908 = vsel %vm477, %v5597, 0.0
        %v5909 = vadd.f32 %v5907, %v5908
        %v5910 = vsel %vm477, %v5726, 0.0
        %v5911 = vadd.f32 %v5909, %v5910
        %v5912 = vsel %vm477, %v5855, 0.0
        %v5913 = vadd.f32 %v5911, %v5912
        %s5914 = scalar_lea.vmem %s10, 1
        %v5915 = vld [vmem:[%s5914] sm:$0x1]
        %v5917 = vlaneseq
        %v5918 = vshrl.u32 %v5917, 7
        %v5919 = vsub.s32 0, %v5918
        %v5920 = vrot.slane %v5915, %v5919
        %v5922 = vadd.f32 %v5864, %v5920
        %v5923 = vadd.f32 %v5871, %v5920
        %v5924 = vadd.f32 %v5878, %v5920
        %v5925 = vadd.f32 %v5885, %v5920
        %v5926 = vadd.f32 %v5892, %v5920
        %v5927 = vadd.f32 %v5899, %v5920
        %v5928 = vadd.f32 %v5906, %v5920
        %v5929 = vadd.f32 %v5913, %v5920
        %v5930 = vadd.f32 %v5922, %v3298
        %v5931 = vadd.f32 %v5923, %v3303
        %v5932 = vadd.f32 %v5924, %v3308
        %v5933 = vadd.f32 %v5925, %v3313
        %v5934 = vadd.f32 %v5926, %v3318
        %v5935 = vadd.f32 %v5927, %v3323
        %v5936 = vadd.f32 %v5928, %v3328
        %v5937 = vadd.f32 %v5929, %v3333
        %s5938 = scalar_lea.vmem [#allocation6], 32
        %v5939 = vld [vmem:[%s5938] sm:$0xff]
        %v5940 = vld [vmem:[%s5938 + $0x8] sm:$0xff]
        %v5941 = vld [vmem:[%s5938 + $0x10] sm:$0xff]
        %v5942 = vld [vmem:[%s5938 + $0x18] sm:$0xff]
        %v5944 = vsel %vm477, %v5930, 0
        %v5947 = vsel %vm477, %v5931, 0
        %v5950 = vsel %vm477, %v5932, 0
        %v5953 = vsel %vm477, %v5933, 0
        %v5956 = vsel %vm477, %v5934, 0
        %v5959 = vsel %vm477, %v5935, 0
        %v5962 = vsel %vm477, %v5936, 0
        %v5965 = vsel %vm477, %v5937, 0
        %5967 = vmatprep.subr.mxu0 0.0
        %5968 = vmatpush1.msra.mxu0 0.0
        %5969 = vmatprep.subr.mxu0 0.0
        %5970 = vmatpush1.msra.mxu0 0.0
        %5971 = vmatprep.subr.mxu0 0.0
        %5972 = vmatpush1.msra.mxu0 0.0
        %5973 = vmatprep.subr.mxu0 0.0
        %5974 = vmatpush1.msra.mxu0 0.0
        %5975 = vmatprep.subr.mxu0 0.0
        %5976 = vmatpush1.msra.mxu0 0.0
        %5977 = vmatprep.subr.mxu0 0.0
        %5978 = vmatpush1.msra.mxu0 0.0
        %5979 = vmatprep.subr.mxu0 0.0
        %5980 = vmatpush1.msra.mxu0 0.0
        %5981 = vmatprep.subr.mxu0 0.0
        %5982 = vmatpush1.msra.mxu0 0.0
        %5983 = vmatprep.subr.mxu0 0.0
        %5984 = vmatpush1.msra.mxu0 0.0
        %5985 = vmatprep.subr.mxu0 0.0
        %5986 = vmatpush1.msra.mxu0 0.0
        %5987 = vmatprep.subr.mxu0 0.0
        %5988 = vmatpush1.msra.mxu0 0.0
        %5989 = vmatprep.subr.mxu0 0.0
        %5990 = vmatpush1.msra.mxu0 0.0
        %5991 = vmatprep.subr.mxu0 0.0
        %5992 = vmatpush1.msra.mxu0 %v5942
        %5993 = vmatprep.subr.mxu0 0.0
        %5994 = vmatpush1.msra.mxu0 %v5941
        %5995 = vmatprep.subr.mxu0 0.0
        %5996 = vmatpush1.msra.mxu0 %v5940
        %5997 = vmatprep.subr.mxu0 0.0
        %5998 = vmatpush1.msra.mxu0 %v5939
        %5999 = vmatprep.subr.mxu0 0.0
        %6000 = vmatpush2.msra.mxu0 0.0
        %6001 = vmatprep.subr.mxu0 0.0
        %6002 = vmatpush2.msra.mxu0 0.0
        %6003 = vmatprep.subr.mxu0 0.0
        %6004 = vmatpush2.msra.mxu0 0.0
        %6005 = vmatprep.subr.mxu0 0.0
        %6006 = vmatpush2.msra.mxu0 0.0
        %6007 = vmatprep.subr.mxu0 0.0
        %6008 = vmatpush2.msra.mxu0 0.0
        %6009 = vmatprep.subr.mxu0 0.0
        %6010 = vmatpush2.msra.mxu0 0.0
        %6011 = vmatprep.subr.mxu0 0.0
        %6012 = vmatpush2.msra.mxu0 0.0
        %6013 = vmatprep.subr.mxu0 0.0
        %6014 = vmatpush2.msra.mxu0 0.0
        %6015 = vmatprep.subr.mxu0 0.0
        %6016 = vmatpush2.msra.mxu0 0.0
        %6017 = vmatprep.subr.mxu0 0.0
        %6018 = vmatpush2.msra.mxu0 0.0
        %6019 = vmatprep.subr.mxu0 0.0
        %6020 = vmatpush2.msra.mxu0 0.0
        %6021 = vmatprep.subr.mxu0 0.0
        %6022 = vmatpush2.msra.mxu0 0.0
        %6023 = vmatprep.subr.mxu0 0.0
        %6024 = vmatpush2.msra.mxu0 0.0
        %6025 = vmatprep.subr.mxu0 0.0
        %6026 = vmatpush2.msra.mxu0 0.0
        %6027 = vmatprep.subr.mxu0 0.0
        %6028 = vmatpush2.msra.mxu0 0.0
        %6029 = vmatprep.subr.mxu0 0.0
        %6030 = vmatpush2.msra.mxu0 0.0
        %6031 = vmatprep.mubr.f32.mxu0 0.0
        %6032 = vmatmul.mubr.f32.gmra.mxu0 %v5944
        %v6033 = vpop.f32.mrf.mxu0
        %v6034 = vadd.f32 %v5930, %v6033
        %v6035 = vpop.f32.mrf.mxu0
        %6036 = vmatprep.mubr.f32.mxu0 0.0
        %6037 = vmatmul.mubr.f32.gmra.mxu0 %v5947
        %v6038 = vpop.f32.mrf.mxu0
        %v6039 = vadd.f32 %v5931, %v6038
        %v6040 = vpop.f32.mrf.mxu0
        %6041 = vmatprep.mubr.f32.mxu0 0.0
        %6042 = vmatmul.mubr.f32.gmra.mxu0 %v5950
        %v6043 = vpop.f32.mrf.mxu0
        %v6044 = vadd.f32 %v5932, %v6043
        %v6045 = vpop.f32.mrf.mxu0
        %6046 = vmatprep.mubr.f32.mxu0 0.0
        %6047 = vmatmul.mubr.f32.gmra.mxu0 %v5953
        %v6048 = vpop.f32.mrf.mxu0
        %v6049 = vadd.f32 %v5933, %v6048
        %v6050 = vpop.f32.mrf.mxu0
        %6051 = vmatprep.mubr.f32.mxu0 0.0
        %6052 = vmatmul.mubr.f32.gmra.mxu0 %v5956
        %v6053 = vpop.f32.mrf.mxu0
        %v6054 = vadd.f32 %v5934, %v6053
        %v6055 = vpop.f32.mrf.mxu0
        %6056 = vmatprep.mubr.f32.mxu0 0.0
        %6057 = vmatmul.mubr.f32.gmra.mxu0 %v5959
        %v6058 = vpop.f32.mrf.mxu0
        %v6059 = vadd.f32 %v5935, %v6058
        %v6060 = vpop.f32.mrf.mxu0
        %6061 = vmatprep.mubr.f32.mxu0 0.0
        %6062 = vmatmul.mubr.f32.gmra.mxu0 %v5962
        %v6063 = vpop.f32.mrf.mxu0
        %v6064 = vadd.f32 %v5936, %v6063
        %v6065 = vpop.f32.mrf.mxu0
        %6066 = vmatprep.mubr.f32.mxu0 0.0
        %6067 = vmatmul.mubr.f32.gmra.mxu0 %v5965
        %v6068 = vpop.f32.mrf.mxu0
        %v6069 = vadd.f32 %v5937, %v6068
        %v6070 = vpop.f32.mrf.mxu0
        %6071 = vdwg.mxu0
        %6072 = vst.msk [vmem:[%s457] sm:$0xff] %vm477, %v6034
        %6073 = vst.msk [vmem:[%s457 + $0x8] sm:$0xff] %vm477, %v6039
        %6074 = vst.msk [vmem:[%s457 + $0x10] sm:$0xff] %vm477, %v6044
        %6075 = vst.msk [vmem:[%s457 + $0x18] sm:$0xff] %vm477, %v6049
        %6076 = vst.msk [vmem:[%s457 + $0x20] sm:$0xff] %vm477, %v6054
        %6077 = vst.msk [vmem:[%s457 + $0x28] sm:$0xff] %vm477, %v6059
        %6078 = vst.msk [vmem:[%s457 + $0x30] sm:$0xff] %vm477, %v6064
        %6079 = vst.msk [vmem:[%s457 + $0x38] sm:$0xff] %vm477, %v6069
        %p6080 = scmp.lt.s32.totalorder %s25, 1
        %s6081 = scalar_select %p6080, %s25, 1
        %s6082 = smul.addr %s6081, 8
        %s6083 = smul.addr %s6082, 8
        %s6084 = scalar_lea.vmem %s12, %s6083
        // Predicated region
        $region81: #{tpu_custom_call.1} parent=67 // pred_check
          %p6085 = pneg %p300
        $region82: #{tpu_custom_call.1} parent=67 // pred_check_branch
          %6087 = sbr.rel (%p6085) target = $region84
        $region83: #{tpu_custom_call.1} parent=67 // pred_region
          _
        $region84: #{tpu_custom_call.1} parent=67 // pred_fallthru
          _
      $region68: #{tpu_custom_call.1} parent=5 // pred_fallthru
        _
      %p6088 = scmp.le.s32.totalorder 2, %s20
      // Predicated region
      $region85: #{tpu_custom_call.1} parent=5 // pred_check
        %p6089 = pneg %p6088
      $region86: #{tpu_custom_call.1} parent=5 // pred_check_branch
        %6091 = sbr.rel (%p6089) target = $region88
      $region87: #{tpu_custom_call.1} parent=5 // pred_region
        %s6092 = ssub.s32 %s20, 2
        // Predicated region
        $region89: #{tpu_custom_call.1} parent=87 // pred_check
          %p6093 = pneg %p306
        $region90: #{tpu_custom_call.1} parent=87 // pred_check_branch
          %6095 = sbr.rel (%p6093) target = $region92
        $region91: #{tpu_custom_call.1} parent=87 // pred_region
          %p6096 = scmp.lt.s32.totalorder %s26, 1
          %s6097 = scalar_select %p6096, %s26, 1
          %s6098 = smul.addr %s6097, 8
          %s6099 = smul.addr %s6098, 8
          %s6100 = scalar_lea.vmem %s12, %s6099
        $region92: #{tpu_custom_call.1} parent=87 // pred_fallthru
          _
      $region88: #{tpu_custom_call.1} parent=5 // pred_fallthru
        _
    $region6: #{tpu_custom_call.1} parent=1 // loop_footer
      %s24 = sadd.s32 1, %s20
    $region7: #{tpu_custom_call.1} parent=1 // loop_footer_branch
      %19 = sbr.rel target = $region3
    $region8: #{tpu_custom_call.1} parent=1 // loop_exit
      _
    %6101 = vsyncpa [#allocation3], 1
    %s6102 = scalar_lea.sflag [#allocation3], 1
    %6103 = vsyncpa %s6102, 1
    %6104 = vsyncpa [#allocation5], 1

</llo_original>
